<compile_context>
chip_gen: v6e
topology: v6e:2x2x1
jax: 0.10.0
libtpu: 0.0.40
codegen_flags: <defaults>
</compile_context>

<pallas_src>
import functools

import jax
import jax.numpy as jnp
import numpy as np
from jax.experimental import pallas as pl
from jax.experimental.pallas import tpu as pltpu


def _round_up(x, m):
    return ((x + m - 1) // m) * m


def pinn_kernel(t_ref, w1_ref, b1_ref, w2_ref, b2_ref, w3_ref, b3_ref, o_ref,
                *, use_bf16_tanh=False):
    # t_ref: (1, 1, TB) block of normalized times, batch on lanes.
    t = t_ref[0]                         # (1, TB)

    # Hoist weight/bias loads once per grid step, already in consumption shape.
    w1 = w1_ref[...]                     # (32, 1)
    b1 = b1_ref[...]                     # (32, 1)
    w2 = w2_ref[...]                     # (32, 32)  (out, in) -- PyTorch layout
    b2 = b2_ref[...]                     # (32, 1)
    w3 = w3_ref[...]                     # (32, 1)
    b3 = b3_ref[0, 0]                    # SMEM scalar

    def act(x):
        # Binding unit is the single EUP (tanh).  Optional packed-bf16 EUP path
        # for v6e/v7x; keep f32 on v5e / when accuracy is paramount.
        if use_bf16_tanh:
            return jnp.tanh(x.astype(jnp.bfloat16)).astype(jnp.float32)
        return jnp.tanh(x)

    # Layer 1 (1 -> 32): degenerate K=1 matmul done as a VPU broadcast-multiply.
    h1 = act(w1 * t + b1)                # (32, TB)

    # Layer 2 (32 -> 32): MXU matmul; batch fills the wide output (N) dimension.
    # MXU has ample slack here, so exact-f32 (HIGHEST) precision is free.
    z2 = jnp.dot(w2, h1,
                 preferred_element_type=jnp.float32,
                 precision=jax.lax.Precision.HIGHEST) + b2
    h2 = act(z2)                         # (32, TB)

    # Layer 3 (32 -> 1): VPU multiply + XLU sublane reduction over features.
    out = jnp.sum(w3 * h2, axis=0, keepdims=True) + b3   # (1, TB)

    o_ref[0] = out


def pinn_forward(t_normalized, params, *, tile_b=8192, use_bf16_tanh=False):
    """t_normalized: (N, 1) float32.  params: PyTorch-layout weights/biases."""
    N = t_normalized.shape[0]
    assert t_normalized.ndim == 2 and t_normalized.shape[1] == 1

    # --- choose a lane-aligned tile and a (possibly even) grid ----------------
    n_lane = _round_up(max(N, 1), 128)
    tile_b = max(128, _round_up(min(tile_b, n_lane), 128))
    grid_steps = pl.cdiv(n_lane, tile_b)
    if grid_steps > 1:
        # Even step count so ("parallel",) shards across both v7x TensorCores.
        grid_steps = _round_up(grid_steps, 2)
    elif tile_b >= 256:
        # Split a single slab in two for v7x; harmless on single-TC chips.
        tile_b //= 2
        grid_steps = 2
    n_pad = grid_steps * tile_b

    # --- pad the batch to a whole number of lane-dense tiles ------------------
    t_in = t_normalized.astype(jnp.float32)
    if n_pad != N:
        t_in = jnp.pad(t_in, ((0, n_pad - N), (0, 0)))
    # Batch on lanes: (n_pad, 1) -> (grid, 1, tile_b) lane-dense slabs.
    t_lanes = t_in.reshape(grid_steps, 1, tile_b)

    w1 = params["w1"].astype(jnp.float32)                  # (32, 1)
    b1 = params["b1"].astype(jnp.float32).reshape(32, 1)
    w2 = params["w2"].astype(jnp.float32)                  # (32, 32)
    b2 = params["b2"].astype(jnp.float32).reshape(32, 1)
    w3 = params["w3"].astype(jnp.float32).reshape(32, 1)   # (1, 32) -> (32, 1)
    b3 = params["b3"].astype(jnp.float32).reshape(1, 1)    # SMEM scalar

    # Full-array blocks with constant index maps: weights stay resident in VMEM.
    def full(a):
        return pl.BlockSpec(a.shape, lambda i, nd=a.ndim: (0,) * nd)

    # --- VMEM budget: ~3x(32,TB) f32 intermediates + double-buffered I/O ------
    vmem_bytes = 4 * tile_b * (3 * 32 + 2 * 2) + (8 << 10)
    vmem_limit = None
    if vmem_bytes > (16 << 20):
        vmem_limit = int(min(2 * vmem_bytes, 60 << 20))    # headroom under v7x 64 MiB

    weight_bytes = 4 * (32 + 32 + 32 * 32 + 32 + 32 + 1)
    cost = pl.CostEstimate(
        flops=2 * n_pad * (32 + 32 * 32 + 32),
        transcendentals=2 * 32 * n_pad,
        bytes_accessed=8 * n_pad + weight_bytes,
    )

    kernel = functools.partial(pinn_kernel, use_bf16_tanh=use_bf16_tanh)

    out = pl.pallas_call(
        kernel,
        out_shape=jax.ShapeDtypeStruct((grid_steps, 1, tile_b), jnp.float32),
        grid_spec=pl.GridSpec(
            grid=(grid_steps,),
            in_specs=[
                pl.BlockSpec((1, 1, tile_b), lambda i: (i, 0, 0)),  # t
                full(w1), full(b1),
                full(w2), full(b2),
                full(w3),
                pl.BlockSpec(memory_space=pltpu.MemorySpace.SMEM),  # b3 scalar
            ],
            out_specs=pl.BlockSpec((1, 1, tile_b), lambda i: (i, 0, 0)),
        ),
        compiler_params=pltpu.CompilerParams(
            dimension_semantics=("parallel",),
            vmem_limit_bytes=vmem_limit,
        ),
        cost_estimate=cost,
    )(t_lanes, w1, b1, w2, b2, w3, b3)

    return out.reshape(n_pad, 1)[:N]


def init_params(key):
    """PyTorch nn.Linear default init: U(-1/sqrt(fan_in), 1/sqrt(fan_in)).
    Weights stored in PyTorch (out_features, in_features) orientation."""
    sizes = [(1, 32), (32, 32), (32, 1)]   # (in, out)
    params = {}
    keys = jax.random.split(key, 2 * len(sizes))
    for idx, (fan_in, fan_out) in enumerate(sizes):
        bound = 1.0 / np.sqrt(fan_in)
        kw, kb = keys[2 * idx], keys[2 * idx + 1]
        params[f"w{idx + 1}"] = jax.random.uniform(
            kw, (fan_out, fan_in), jnp.float32, minval=-bound, maxval=bound
        )
        params[f"b{idx + 1}"] = jax.random.uniform(
            kb, (fan_out,), jnp.float32, minval=-bound, maxval=bound
        )
    return params


def pinn_reference(t_normalized, params):
    """Pure-JAX reference (PyTorch convention y = x @ W^T + b), exact-f32 matmuls."""
    hp = jax.lax.Precision.HIGHEST
    h1 = jnp.tanh(jnp.dot(t_normalized, params["w1"].T, precision=hp) + params["b1"])
    h2 = jnp.tanh(jnp.dot(h1, params["w2"].T, precision=hp) + params["b2"])
    return jnp.dot(h2, params["w3"].T, precision=hp) + params["b3"]


if __name__ == "__main__":
    key = jax.random.PRNGKey(0)
    pkey, tkey = jax.random.split(key)

    params = init_params(pkey)

    # Batch of normalized times, (N, 1) like the PyTorch module expects.
    # N=2048 -> the wrapper splits it into 2 parallel 1024-lane grid steps
    # (both v7x TensorCores); at real sizes the same wrapper picks 8K tiles.
    N = 2048
    t_normalized = jax.random.uniform(
        tkey, (N, 1), jnp.float32, minval=0.0, maxval=1.0
    )

    out = pinn_forward(t_normalized, params)
    out = jax.block_until_ready(out)

    ref = pinn_reference(t_normalized, params)
    np.testing.assert_allclose(np.asarray(out), np.asarray(ref), rtol=1e-5, atol=1e-5)

    print("KERNEL_OK")
</pallas_src>

<mosaic_0001>
module attributes {stable_mosaic.version = 11 : i64} {
  func.func @pinn_kernel(%arg0: i32, %arg1: memref<1x1x1024xf32, #tpu.memory_space<vmem>>, %arg2: memref<32x1xf32, #tpu.memory_space<vmem>>, %arg3: memref<32x1xf32, #tpu.memory_space<vmem>>, %arg4: memref<32x32xf32, #tpu.memory_space<vmem>>, %arg5: memref<32x1xf32, #tpu.memory_space<vmem>>, %arg6: memref<32x1xf32, #tpu.memory_space<vmem>>, %arg7: memref<1x1xf32, #tpu.memory_space<smem>>, %arg8: memref<1x1x1024xf32, #tpu.memory_space<vmem>>) attributes {dimension_semantics = [#tpu.dimension_semantics<parallel>], iteration_bounds = array<i64: 2>, scalar_prefetch = 0 : i64, scratch_operands = 0 : i64, tpu.core_type = #tpu.core_type<tc>, window_params = [{transform_indices = @transform_0, window_bounds = array<i64: 1, 1, 1024>}, {pipeline_mode = #tpu.pipeline_mode<synchronous>, transform_indices = @transform_1, window_bounds = array<i64: 32, 1>}, {pipeline_mode = #tpu.pipeline_mode<synchronous>, transform_indices = @transform_2, window_bounds = array<i64: 32, 1>}, {pipeline_mode = #tpu.pipeline_mode<synchronous>, transform_indices = @transform_3, window_bounds = array<i64: 32, 32>}, {pipeline_mode = #tpu.pipeline_mode<synchronous>, transform_indices = @transform_4, window_bounds = array<i64: 32, 1>}, {pipeline_mode = #tpu.pipeline_mode<synchronous>, transform_indices = @transform_5, window_bounds = array<i64: 32, 1>}, {transform_indices = @transform_6, window_bounds = array<i64: 1, 1>}, {transform_indices = @transform_7, window_bounds = array<i64: 1, 1, 1024>}]} {
    %c0 = arith.constant 0 : index
    %c0_0 = arith.constant 0 : index
    %c0_1 = arith.constant 0 : index
    %0 = vector.load %arg1[%c0, %c0_0, %c0_1] : memref<1x1x1024xf32, #tpu.memory_space<vmem>>, vector<1x1x1024xf32>
    %1 = vector.shape_cast %0 : vector<1x1x1024xf32> to vector<1x1024xf32>
    %c0_2 = arith.constant 0 : index
    %c0_3 = arith.constant 0 : index
    %2 = vector.load %arg2[%c0_2, %c0_3] : memref<32x1xf32, #tpu.memory_space<vmem>>, vector<32x1xf32>
    %c0_4 = arith.constant 0 : index
    %c0_5 = arith.constant 0 : index
    %3 = vector.load %arg3[%c0_4, %c0_5] : memref<32x1xf32, #tpu.memory_space<vmem>>, vector<32x1xf32>
    %c0_6 = arith.constant 0 : index
    %c0_7 = arith.constant 0 : index
    %4 = vector.load %arg4[%c0_6, %c0_7] : memref<32x32xf32, #tpu.memory_space<vmem>>, vector<32x32xf32>
    %c0_8 = arith.constant 0 : index
    %c0_9 = arith.constant 0 : index
    %5 = vector.load %arg5[%c0_8, %c0_9] : memref<32x1xf32, #tpu.memory_space<vmem>>, vector<32x1xf32>
    %c0_10 = arith.constant 0 : index
    %c0_11 = arith.constant 0 : index
    %6 = vector.load %arg6[%c0_10, %c0_11] : memref<32x1xf32, #tpu.memory_space<vmem>>, vector<32x1xf32>
    %c0_12 = arith.constant 0 : index
    %c0_13 = arith.constant 0 : index
    %7 = memref.load %arg7[%c0_12, %c0_13] : memref<1x1xf32, #tpu.memory_space<smem>>
    %8 = vector.broadcast %2 : vector<32x1xf32> to vector<32x1024xf32>
    %9 = vector.broadcast %1 : vector<1x1024xf32> to vector<32x1024xf32>
    %10 = arith.mulf %8, %9 : vector<32x1024xf32>
    %11 = vector.broadcast %3 : vector<32x1xf32> to vector<32x1024xf32>
    %12 = arith.addf %10, %11 : vector<32x1024xf32>
    %13 = math.tanh %12 : vector<32x1024xf32>
    %cst = arith.constant dense<0.000000e+00> : vector<32x1024xf32>
    %14 = tpu.matmul %4, %13, %cst {dimension_numbers = #tpu.dot_dimension_numbers<[1], [0], [0], [1], [0, 0, 1, 1], [], []>, precision = #tpu.contract_precision<fp32>} : vector<32x32xf32>, vector<32x1024xf32>, vector<32x1024xf32> -> vector<32x1024xf32>
    %15 = vector.broadcast %5 : vector<32x1xf32> to vector<32x1024xf32>
    %16 = arith.addf %14, %15 : vector<32x1024xf32>
    %17 = math.tanh %16 : vector<32x1024xf32>
    %18 = vector.broadcast %6 : vector<32x1xf32> to vector<32x1024xf32>
    %19 = arith.mulf %18, %17 : vector<32x1024xf32>
    %cst_14 = arith.constant dense<0.000000e+00> : vector<1024xf32>
    %20 = vector.multi_reduction <add>, %19, %cst_14 [0] : vector<32x1024xf32> to vector<1024xf32>
    %21 = vector.shape_cast %20 : vector<1024xf32> to vector<1x1024xf32>
    %22 = vector.broadcast %7 : f32 to vector<1x1024xf32>
    %23 = arith.addf %21, %22 : vector<1x1024xf32>
    %c0_15 = arith.constant 0 : index
    %c0_16 = arith.constant 0 : index
    %c0_17 = arith.constant 0 : index
    %24 = vector.load %arg8[%c0_15, %c0_16, %c0_17] : memref<1x1x1024xf32, #tpu.memory_space<vmem>>, vector<1x1x1024xf32>
    %25 = vector.shape_cast %24 : vector<1x1x1024xf32> to vector<1x1024xf32>
    %26 = vector.shape_cast %23 : vector<1x1024xf32> to vector<1x1x1024xf32>
    tpu.vector_store %arg8[%c0_15, %c0_16, %c0_17], %26 {strides = array<i32>} : memref<1x1x1024xf32, #tpu.memory_space<vmem>>, vector<1x1x1024xf32>,
    return
  }
  func.func @transform_0(%arg0: i32) -> (i32, i32, i32) {
    %c0_i32 = arith.constant 0 : i32
    %c0_i32_0 = arith.constant 0 : i32
    %c0_i32_1 = arith.constant 0 : i32
    return %arg0, %c0_i32, %c0_i32_0 : i32, i32, i32
  }
  func.func @transform_1(%arg0: i32) -> (i32, i32) {
    %c0_i32 = arith.constant 0 : i32
    %c0_i32_0 = arith.constant 0 : i32
    %c0_i32_1 = arith.constant 0 : i32
    return %c0_i32, %c0_i32_0 : i32, i32
  }
  func.func @transform_2(%arg0: i32) -> (i32, i32) {
    %c0_i32 = arith.constant 0 : i32
    %c0_i32_0 = arith.constant 0 : i32
    %c0_i32_1 = arith.constant 0 : i32
    return %c0_i32, %c0_i32_0 : i32, i32
  }
  func.func @transform_3(%arg0: i32) -> (i32, i32) {
    %c0_i32 = arith.constant 0 : i32
    %c0_i32_0 = arith.constant 0 : i32
    %c0_i32_1 = arith.constant 0 : i32
    return %c0_i32, %c0_i32_0 : i32, i32
  }
  func.func @transform_4(%arg0: i32) -> (i32, i32) {
    %c0_i32 = arith.constant 0 : i32
    %c0_i32_0 = arith.constant 0 : i32
    %c0_i32_1 = arith.constant 0 : i32
    return %c0_i32, %c0_i32_0 : i32, i32
  }
  func.func @transform_5(%arg0: i32) -> (i32, i32) {
    %c0_i32 = arith.constant 0 : i32
    %c0_i32_0 = arith.constant 0 : i32
    %c0_i32_1 = arith.constant 0 : i32
    return %c0_i32, %c0_i32_0 : i32, i32
  }
  func.func @transform_6(%arg0: i32) -> (i32, i32) {
    %c0_i32 = arith.constant 0 : i32
    %c0_i32_0 = arith.constant 0 : i32
    %c0_i32_1 = arith.constant 0 : i32
    return %c0_i32, %c0_i32_0 : i32, i32
  }
  func.func @transform_7(%arg0: i32) -> (i32, i32, i32) {
    %c0_i32 = arith.constant 0 : i32
    %c0_i32_0 = arith.constant 0 : i32
    %c0_i32_1 = arith.constant 0 : i32
    return %arg0, %c0_i32, %c0_i32_0 : i32, i32, i32
  }
}

</mosaic_0001>

<llo_original>
// kernel: tpu_custom_call.1
$region0: #{tpu_custom_call.1}
  #allocation0 [shape = 'u32[]', space=smem, size = 0x4, offset = 0x4, fixed_abs, tag = 'smem constant byte address 0x4 - core index']
  #allocation1 [shape = 'u32[144,128]{1,0:T(1,128)}', space=vmem, size = 0x12000, scoped, tag = 'internal scratch']
  #allocation2 [shape = 'f32[1,1]{1,0:T(1,128)S(6)}', space=smem, size = 0x200, scoped, tag = 'scoped memory for tpu_custom_call.1']
  %s0 = inlined_call_operand.vmem [shape: f32[2,1,1024], index: 0, kind: input, shape index: {}]
  %s1 = inlined_call_operand.vmem [shape: f32[32,1], index: 1, kind: input, shape index: {}]
  %s2 = inlined_call_operand.vmem [shape: f32[32,1], index: 2, kind: input, shape index: {}]
  %s3 = inlined_call_operand.vmem [shape: f32[32,32], index: 3, kind: input, shape index: {}]
  %s4 = inlined_call_operand.vmem [shape: f32[32,1], index: 4, kind: input, shape index: {}]
  %s5 = inlined_call_operand.vmem [shape: f32[32,1], index: 5, kind: input, shape index: {}]
  %s6 = inlined_call_operand.<no memory space> [shape: f32[1,1], index: 6, kind: input, shape index: {}]
  %s7 = inlined_call_operand.hbm [shape: f32[2,1,1024], index: 7, kind: output, shape index: {}]
  %s8 = sld [smem:[#allocation0]]
  $region61: #{tpu_custom_call.1} parent=0
    _
  %s10 = ssub.s32 1, %s8
  %s11 = scalar_select 0, %s10, %s8
  %12 = sst [smem:[#allocation2]] %s6
  $region1: #{tpu_custom_call.1} parent=0
    #allocation3 [shape = 'u8[8192]{0}', space=vmem, size = 0x2000, scoped, tag = 'output window, operand 0']
    #allocation4 [shape = 's32[2]{0}', space=sflag, size = 0x8, scoped, tag = 'scoped memory for tpu_custom_call.1']
    %13 = vsyncpa [#allocation4], 0
    %s14 = scalar_lea.sflag [#allocation4], 1
    %15 = vsyncpa %s14, 0
    loop: start=0, step=1, limit=4
    $region2: #{tpu_custom_call.1} parent=1 // loop_pre_header
      _
    $region3: #{tpu_custom_call.1} parent=1 // loop_header
      %s17 = sphi 0, %s21
      %p18 = scmp.ge.s32.totalorder %s17, 4
      %s27 = sphi 0, %s29
      %s30 = sphi 0, %s27
      %s31 = sphi 0, %s30
      %s47 = sphi 0, %s31
      %s51 = sphi 0, %s51
      %s53 = sphi 0, %s51
      %s54 = sphi 0, %s53
      %s68 = sphi 0, %s54
      %s72 = sphi 0, %s72
      %s74 = sphi 0, %s72
      %s75 = sphi 0, %s74
      %s89 = sphi 0, %s75
      %s93 = sphi 0, %s93
      %s95 = sphi 0, %s93
      %s96 = sphi 0, %s95
      %s110 = sphi 0, %s96
      %s114 = sphi 0, %s114
      %s116 = sphi 0, %s114
      %s117 = sphi 0, %s116
      %s131 = sphi 0, %s117
      %s135 = sphi 0, %s135
      %s137 = sphi 0, %s135
      %s138 = sphi 0, %s137
      %s152 = sphi 0, %s138
      %s156 = sphi 0, %s156
      %s158 = sphi 0, %s156
      %s159 = sphi 0, %s158
      %s173 = sphi 0, %s159
      %s179 = sphi 0, %s181
      %s182 = sphi 0, %s179
      %s183 = sphi 0, %s182
      %s199 = sphi 0, %s183
    $region4: #{tpu_custom_call.1} parent=1 // loop_header_branch
      %20 = sbr.rel (%p18) target = $region8
    $region5: #{tpu_custom_call.1} parent=1 // loop_body
      %s22 = ssub.s32 %s17, 1
      %s23 = ssub.s32 %s17, 2
      %s24 = sadd.s32 %s17, 1
      %s25 = ssub.s32 %s17, %s24
      %p26 = scmp.eq.s32.totalorder %s25, 0
      %s28 = sadd.s32 %s27, 1
      %s29 = scalar_select %p26, %s27, %s28
      %p32 = pneg %p26
      %p33 = scmp.eq.s32.totalorder %s17, 1
      %p34 = por %p32, %p33
      %p35 = scmp.ne.s32.totalorder %s27, %s30
      %p36 = scmp.eq.s32.totalorder %s17, 0
      %p37 = por %p35, %p36
      %p38 = scmp.ne.s32.totalorder %s27, %s30
      %p39 = scmp.eq.s32.totalorder %s22, 1
      %p40 = por %p38, %p39
      %p41 = scmp.ne.s32.totalorder %s30, %s31
      %p42 = scmp.eq.s32.totalorder %s22, 0
      %p43 = por %p41, %p42
      %p44 = scmp.ne.s32.totalorder %s30, %s31
      %p45 = scmp.eq.s32.totalorder %s23, 1
      %p46 = por %p44, %p45
      %p48 = scmp.ne.s32.totalorder %s31, %s47
      %p49 = scmp.eq.s32.totalorder %s23, 0
      %p50 = por %p48, %p49
      %s52 = sadd.s32 %s51, 1
      %p55 = scmp.eq.s32.totalorder %s17, 1
      %p56 = scmp.ne.s32.totalorder %s51, %s53
      %p57 = scmp.eq.s32.totalorder %s17, 0
      %p58 = por %p56, %p57
      %p59 = scmp.ne.s32.totalorder %s51, %s53
      %p60 = scmp.eq.s32.totalorder %s22, 1
      %p61 = por %p59, %p60
      %p62 = scmp.ne.s32.totalorder %s53, %s54
      %p63 = scmp.eq.s32.totalorder %s22, 0
      %p64 = por %p62, %p63
      %p65 = scmp.ne.s32.totalorder %s53, %s54
      %p66 = scmp.eq.s32.totalorder %s23, 1
      %p67 = por %p65, %p66
      %p69 = scmp.ne.s32.totalorder %s54, %s68
      %p70 = scmp.eq.s32.totalorder %s23, 0
      %p71 = por %p69, %p70
      %s73 = sadd.s32 %s72, 1
      %p76 = scmp.eq.s32.totalorder %s17, 1
      %p77 = scmp.ne.s32.totalorder %s72, %s74
      %p78 = scmp.eq.s32.totalorder %s17, 0
      %p79 = por %p77, %p78
      %p80 = scmp.ne.s32.totalorder %s72, %s74
      %p81 = scmp.eq.s32.totalorder %s22, 1
      %p82 = por %p80, %p81
      %p83 = scmp.ne.s32.totalorder %s74, %s75
      %p84 = scmp.eq.s32.totalorder %s22, 0
      %p85 = por %p83, %p84
      %p86 = scmp.ne.s32.totalorder %s74, %s75
      %p87 = scmp.eq.s32.totalorder %s23, 1
      %p88 = por %p86, %p87
      %p90 = scmp.ne.s32.totalorder %s75, %s89
      %p91 = scmp.eq.s32.totalorder %s23, 0
      %p92 = por %p90, %p91
      %s94 = sadd.s32 %s93, 1
      %p97 = scmp.eq.s32.totalorder %s17, 1
      %p98 = scmp.ne.s32.totalorder %s93, %s95
      %p99 = scmp.eq.s32.totalorder %s17, 0
      %p100 = por %p98, %p99
      %p101 = scmp.ne.s32.totalorder %s93, %s95
      %p102 = scmp.eq.s32.totalorder %s22, 1
      %p103 = por %p101, %p102
      %p104 = scmp.ne.s32.totalorder %s95, %s96
      %p105 = scmp.eq.s32.totalorder %s22, 0
      %p106 = por %p104, %p105
      %p107 = scmp.ne.s32.totalorder %s95, %s96
      %p108 = scmp.eq.s32.totalorder %s23, 1
      %p109 = por %p107, %p108
      %p111 = scmp.ne.s32.totalorder %s96, %s110
      %p112 = scmp.eq.s32.totalorder %s23, 0
      %p113 = por %p111, %p112
      %s115 = sadd.s32 %s114, 1
      %p118 = scmp.eq.s32.totalorder %s17, 1
      %p119 = scmp.ne.s32.totalorder %s114, %s116
      %p120 = scmp.eq.s32.totalorder %s17, 0
      %p121 = por %p119, %p120
      %p122 = scmp.ne.s32.totalorder %s114, %s116
      %p123 = scmp.eq.s32.totalorder %s22, 1
      %p124 = por %p122, %p123
      %p125 = scmp.ne.s32.totalorder %s116, %s117
      %p126 = scmp.eq.s32.totalorder %s22, 0
      %p127 = por %p125, %p126
      %p128 = scmp.ne.s32.totalorder %s116, %s117
      %p129 = scmp.eq.s32.totalorder %s23, 1
      %p130 = por %p128, %p129
      %p132 = scmp.ne.s32.totalorder %s117, %s131
      %p133 = scmp.eq.s32.totalorder %s23, 0
      %p134 = por %p132, %p133
      %s136 = sadd.s32 %s135, 1
      %p139 = scmp.eq.s32.totalorder %s17, 1
      %p140 = scmp.ne.s32.totalorder %s135, %s137
      %p141 = scmp.eq.s32.totalorder %s17, 0
      %p142 = por %p140, %p141
      %p143 = scmp.ne.s32.totalorder %s135, %s137
      %p144 = scmp.eq.s32.totalorder %s22, 1
      %p145 = por %p143, %p144
      %p146 = scmp.ne.s32.totalorder %s137, %s138
      %p147 = scmp.eq.s32.totalorder %s22, 0
      %p148 = por %p146, %p147
      %p149 = scmp.ne.s32.totalorder %s137, %s138
      %p150 = scmp.eq.s32.totalorder %s23, 1
      %p151 = por %p149, %p150
      %p153 = scmp.ne.s32.totalorder %s138, %s152
      %p154 = scmp.eq.s32.totalorder %s23, 0
      %p155 = por %p153, %p154
      %s157 = sadd.s32 %s156, 1
      %p160 = scmp.eq.s32.totalorder %s17, 1
      %p161 = scmp.ne.s32.totalorder %s156, %s158
      %p162 = scmp.eq.s32.totalorder %s17, 0
      %p163 = por %p161, %p162
      %p164 = scmp.ne.s32.totalorder %s156, %s158
      %p165 = scmp.eq.s32.totalorder %s22, 1
      %p166 = por %p164, %p165
      %p167 = scmp.ne.s32.totalorder %s158, %s159
      %p168 = scmp.eq.s32.totalorder %s22, 0
      %p169 = por %p167, %p168
      %p170 = scmp.ne.s32.totalorder %s158, %s159
      %p171 = scmp.eq.s32.totalorder %s23, 1
      %p172 = por %p170, %p171
      %p174 = scmp.ne.s32.totalorder %s159, %s173
      %p175 = scmp.eq.s32.totalorder %s23, 0
      %p176 = por %p174, %p175
      %s177 = ssub.s32 %s17, %s24
      %p178 = scmp.eq.s32.totalorder %s177, 0
      %s180 = sadd.s32 %s179, 1
      %s181 = scalar_select %p178, %s179, %s180
      %p184 = pneg %p178
      %p185 = scmp.eq.s32.totalorder %s17, 1
      %p186 = por %p184, %p185
      %p187 = scmp.ne.s32.totalorder %s179, %s182
      %p188 = scmp.eq.s32.totalorder %s17, 0
      %p189 = por %p187, %p188
      %p190 = scmp.ne.s32.totalorder %s179, %s182
      %p191 = scmp.eq.s32.totalorder %s22, 1
      %p192 = por %p190, %p191
      %p193 = scmp.ne.s32.totalorder %s182, %s183
      %p194 = scmp.eq.s32.totalorder %s22, 0
      %p195 = por %p193, %p194
      %p196 = scmp.ne.s32.totalorder %s182, %s183
      %p197 = scmp.eq.s32.totalorder %s23, 1
      %p198 = por %p196, %p197
      %p200 = scmp.ne.s32.totalorder %s183, %s199
      %p201 = scmp.eq.s32.totalorder %s23, 0
      %p202 = por %p200, %p201
      %p203 = scmp.le.s32.totalorder 1, %s17
      %p204 = scmp.lt.s32.totalorder %s17, 3
      %p205 = pnand %p203, %p204
      %p206 = pneg %p205
      // Predicated region
      $region9: #{tpu_custom_call.1} parent=5 // pred_check
        _
      $region10: #{tpu_custom_call.1} parent=5 // pred_check_branch
        %208 = sbr.rel (%p205) target = $region12
      $region11: #{tpu_custom_call.1} parent=5 // pred_region
        %s209 = ssub.s32 %s17, 1
        // Predicated region
        $region13: #{tpu_custom_call.1} parent=11 // pred_check
          %p210 = pneg %p64
        $region14: #{tpu_custom_call.1} parent=11 // pred_check_branch
          %212 = sbr.rel (%p210) target = $region16
        $region15: #{tpu_custom_call.1} parent=11 // pred_region
          _
        $region16: #{tpu_custom_call.1} parent=11 // pred_fallthru
          _
        // Predicated region
        $region17: #{tpu_custom_call.1} parent=11 // pred_check
          %p213 = pneg %p85
        $region18: #{tpu_custom_call.1} parent=11 // pred_check_branch
          %215 = sbr.rel (%p213) target = $region20
        $region19: #{tpu_custom_call.1} parent=11 // pred_region
          _
        $region20: #{tpu_custom_call.1} parent=11 // pred_fallthru
          _
        // Predicated region
        $region21: #{tpu_custom_call.1} parent=11 // pred_check
          %p216 = pneg %p106
        $region22: #{tpu_custom_call.1} parent=11 // pred_check_branch
          %218 = sbr.rel (%p216) target = $region24
        $region23: #{tpu_custom_call.1} parent=11 // pred_region
          _
        $region24: #{tpu_custom_call.1} parent=11 // pred_fallthru
          _
        // Predicated region
        $region25: #{tpu_custom_call.1} parent=11 // pred_check
          %p219 = pneg %p127
        $region26: #{tpu_custom_call.1} parent=11 // pred_check_branch
          %221 = sbr.rel (%p219) target = $region28
        $region27: #{tpu_custom_call.1} parent=11 // pred_region
          _
        $region28: #{tpu_custom_call.1} parent=11 // pred_fallthru
          _
        // Predicated region
        $region29: #{tpu_custom_call.1} parent=11 // pred_check
          %p222 = pneg %p148
        $region30: #{tpu_custom_call.1} parent=11 // pred_check_branch
          %224 = sbr.rel (%p222) target = $region32
        $region31: #{tpu_custom_call.1} parent=11 // pred_region
          _
        $region32: #{tpu_custom_call.1} parent=11 // pred_fallthru
          _
        // Predicated region
        $region33: #{tpu_custom_call.1} parent=11 // pred_check
          %p225 = pneg %p169
        $region34: #{tpu_custom_call.1} parent=11 // pred_check_branch
          %227 = sbr.rel (%p225) target = $region36
        $region35: #{tpu_custom_call.1} parent=11 // pred_region
          _
        $region36: #{tpu_custom_call.1} parent=11 // pred_fallthru
          _
      $region12: #{tpu_custom_call.1} parent=5 // pred_fallthru
        _
      %p228 = scmp.lt.s32.totalorder %s17, 2
      // Predicated region
      $region37: #{tpu_custom_call.1} parent=5 // pred_check
        %p229 = pneg %p228
      $region38: #{tpu_custom_call.1} parent=5 // pred_check_branch
        %231 = sbr.rel (%p229) target = $region40
      $region39: #{tpu_custom_call.1} parent=5 // pred_region
        // Predicated region
        $region41: #{tpu_custom_call.1} parent=39 // pred_check
          %p232 = pneg %p37
        $region42: #{tpu_custom_call.1} parent=39 // pred_check_branch
          %234 = sbr.rel (%p232) target = $region44
        $region43: #{tpu_custom_call.1} parent=39 // pred_region
          %p235 = scmp.lt.s32.totalorder %s17, 1
          %s236 = scalar_select %p235, %s17, 1
          %s237 = smul.addr %s236, 8
          %s238 = scalar_lea.vmem %s0, %s237
        $region44: #{tpu_custom_call.1} parent=39 // pred_fallthru
          _
      $region40: #{tpu_custom_call.1} parent=5 // pred_fallthru
        _
      %p239 = scmp.le.s32.totalorder 1, %s17
      %p240 = scmp.lt.s32.totalorder %s17, 3
      %p241 = pnand %p239, %p240
      %p242 = pneg %p241
      // Predicated region
      $region45: #{tpu_custom_call.1} parent=5 // pred_check
        _
      $region46: #{tpu_custom_call.1} parent=5 // pred_check_branch
        %244 = sbr.rel (%p241) target = $region48
      $region47: #{tpu_custom_call.1} parent=5 // pred_region
        %s245 = ssub.s32 %s17, 1
        %p246 = scmp.lt.s32.totalorder %s22, 1
        %s247 = scalar_select %p246, %s22, 1
        %s248 = smul.addr %s247, 8
        %s249 = scalar_lea.vmem %s0, %s248
        %p250 = pneg %p43
        %p251 = pneg %p40
        %p252 = pneg %p64
        %p253 = pneg %p61
        %p254 = pneg %p85
        %p255 = pneg %p82
        %p256 = pneg %p106
        %p257 = pneg %p103
        %p258 = pneg %p127
        %p259 = pneg %p124
        %p260 = pneg %p148
        %p261 = pneg %p145
        %p262 = pneg %p169
        %p263 = pneg %p166
        %p264 = pneg %p195
        %p265 = pneg %p192
        %s266 = sand.u32 %s182, 1
        %s267 = scalar_lea.sflag [#allocation4], %s266
        %s268 = sand.u32 %s182, 1
        %s269 = smul.addr %s268, 8
        %s270 = scalar_lea.vmem [#allocation3], %s269
        %p271 = scmp.lt.s32.totalorder %s22, 1
        %s272 = scalar_select %p271, %s22, 1
        %s273 = smul.addr %s272, 8
        %s274 = scalar_lea.vmem %s0, %s273
        %v275 = vld [vmem:[%s274] sm:$0xff]
        %v276 = vld [vmem:[%s1] sm:$0xff]
        %v277 = vld [vmem:[%s1 + $0x8] sm:$0xff]
        %v278 = vld [vmem:[%s1 + $0x10] sm:$0xff]
        %v279 = vld [vmem:[%s1 + $0x18] sm:$0xff]
        %v280 = vld [vmem:[%s2] sm:$0xff]
        %v281 = vld [vmem:[%s2 + $0x8] sm:$0xff]
        %v282 = vld [vmem:[%s2 + $0x10] sm:$0xff]
        %v283 = vld [vmem:[%s2 + $0x18] sm:$0xff]
        %v284 = vld [vmem:[%s3] sm:$0xff]
        %v285 = vld [vmem:[%s3 + $0x8] sm:$0xff]
        %v286 = vld [vmem:[%s3 + $0x10] sm:$0xff]
        %v287 = vld [vmem:[%s3 + $0x18] sm:$0xff]
        %v288 = vld [vmem:[%s4] sm:$0xff]
        %v289 = vld [vmem:[%s4 + $0x8] sm:$0xff]
        %v290 = vld [vmem:[%s4 + $0x10] sm:$0xff]
        %v291 = vld [vmem:[%s4 + $0x18] sm:$0xff]
        %v292 = vld [vmem:[%s5] sm:$0xff]
        %v293 = vld [vmem:[%s5 + $0x8] sm:$0xff]
        %v294 = vld [vmem:[%s5 + $0x10] sm:$0xff]
        %v295 = vld [vmem:[%s5 + $0x18] sm:$0xff]
        %s296 = sld [smem:[#allocation2]]
        %298 = vset.pattern.permute.xlu0 0
        %299 = vperm.xlu0 %298, %v276
        %v300 = vpop.permute.xlu0 %299
        %303 = vset.pattern.permute.xlu0 0
        %304 = vperm.xlu0 %303, %v277
        %v305 = vpop.permute.xlu0 %304
        %308 = vset.pattern.permute.xlu0 0
        %309 = vperm.xlu0 %308, %v278
        %v310 = vpop.permute.xlu0 %309
        %313 = vset.pattern.permute.xlu0 0
        %314 = vperm.xlu0 %313, %v279
        %v315 = vpop.permute.xlu0 %314
        %v318 = vlaneseq
        %v319 = vshrl.u32 %v318, 7
        %v320 = vsub.s32 0, %v319
        %v321 = vrot.slane %v275, %v320
        %v322 = vlaneseq
        %v323 = vshrl.u32 %v322, 7
        %v324 = vsub.s32 1, %v323
        %v325 = vrot.slane %v275, %v324
        %v326 = vlaneseq
        %v327 = vshrl.u32 %v326, 7
        %v328 = vsub.s32 2, %v327
        %v329 = vrot.slane %v275, %v328
        %v330 = vlaneseq
        %v331 = vshrl.u32 %v330, 7
        %v332 = vsub.s32 3, %v331
        %v333 = vrot.slane %v275, %v332
        %v334 = vlaneseq
        %v335 = vshrl.u32 %v334, 7
        %v336 = vsub.s32 4, %v335
        %v337 = vrot.slane %v275, %v336
        %v338 = vlaneseq
        %v339 = vshrl.u32 %v338, 7
        %v340 = vsub.s32 5, %v339
        %v341 = vrot.slane %v275, %v340
        %v342 = vlaneseq
        %v343 = vshrl.u32 %v342, 7
        %v344 = vsub.s32 6, %v343
        %v345 = vrot.slane %v275, %v344
        %v346 = vlaneseq
        %v347 = vshrl.u32 %v346, 7
        %v348 = vsub.s32 7, %v347
        %v349 = vrot.slane %v275, %v348
        %v358 = vmul.f32 %v300, %v321
        %v359 = vmul.f32 %v300, %v325
        %v360 = vmul.f32 %v300, %v329
        %v361 = vmul.f32 %v300, %v333
        %v362 = vmul.f32 %v300, %v337
        %v363 = vmul.f32 %v300, %v341
        %v364 = vmul.f32 %v300, %v345
        %v365 = vmul.f32 %v300, %v349
        %v366 = vmul.f32 %v305, %v321
        %v367 = vmul.f32 %v305, %v325
        %v368 = vmul.f32 %v305, %v329
        %v369 = vmul.f32 %v305, %v333
        %v370 = vmul.f32 %v305, %v337
        %v371 = vmul.f32 %v305, %v341
        %v372 = vmul.f32 %v305, %v345
        %v373 = vmul.f32 %v305, %v349
        %v374 = vmul.f32 %v310, %v321
        %v375 = vmul.f32 %v310, %v325
        %v376 = vmul.f32 %v310, %v329
        %v377 = vmul.f32 %v310, %v333
        %v378 = vmul.f32 %v310, %v337
        %v379 = vmul.f32 %v310, %v341
        %v380 = vmul.f32 %v310, %v345
        %v381 = vmul.f32 %v310, %v349
        %v382 = vmul.f32 %v315, %v321
        %v383 = vmul.f32 %v315, %v325
        %v384 = vmul.f32 %v315, %v329
        %v385 = vmul.f32 %v315, %v333
        %v386 = vmul.f32 %v315, %v337
        %v387 = vmul.f32 %v315, %v341
        %v388 = vmul.f32 %v315, %v345
        %v389 = vmul.f32 %v315, %v349
        %391 = vset.pattern.permute.xlu0 0
        %392 = vperm.xlu0 %391, %v280
        %v393 = vpop.permute.xlu0 %392
        %396 = vset.pattern.permute.xlu0 0
        %397 = vperm.xlu0 %396, %v281
        %v398 = vpop.permute.xlu0 %397
        %401 = vset.pattern.permute.xlu0 0
        %402 = vperm.xlu0 %401, %v282
        %v403 = vpop.permute.xlu0 %402
        %406 = vset.pattern.permute.xlu0 0
        %407 = vperm.xlu0 %406, %v283
        %v408 = vpop.permute.xlu0 %407
        %v410 = vadd.f32 %v358, %v393
        %v411 = vadd.f32 %v359, %v393
        %v412 = vadd.f32 %v360, %v393
        %v413 = vadd.f32 %v361, %v393
        %v414 = vadd.f32 %v362, %v393
        %v415 = vadd.f32 %v363, %v393
        %v416 = vadd.f32 %v364, %v393
        %v417 = vadd.f32 %v365, %v393
        %v418 = vadd.f32 %v366, %v398
        %v419 = vadd.f32 %v367, %v398
        %v420 = vadd.f32 %v368, %v398
        %v421 = vadd.f32 %v369, %v398
        %v422 = vadd.f32 %v370, %v398
        %v423 = vadd.f32 %v371, %v398
        %v424 = vadd.f32 %v372, %v398
        %v425 = vadd.f32 %v373, %v398
        %v426 = vadd.f32 %v374, %v403
        %v427 = vadd.f32 %v375, %v403
        %v428 = vadd.f32 %v376, %v403
        %v429 = vadd.f32 %v377, %v403
        %v430 = vadd.f32 %v378, %v403
        %v431 = vadd.f32 %v379, %v403
        %v432 = vadd.f32 %v380, %v403
        %v433 = vadd.f32 %v381, %v403
        %v434 = vadd.f32 %v382, %v408
        %v435 = vadd.f32 %v383, %v408
        %v436 = vadd.f32 %v384, %v408
        %v437 = vadd.f32 %v385, %v408
        %v438 = vadd.f32 %v386, %v408
        %v439 = vadd.f32 %v387, %v408
        %v440 = vadd.f32 %v388, %v408
        %v441 = vadd.f32 %v389, %v408
        %v442 = vtanh.pop %v410
        %v443 = vtanh.pop %v411
        %v444 = vtanh.pop %v412
        %v445 = vtanh.pop %v413
        %v446 = vtanh.pop %v414
        %v447 = vtanh.pop %v415
        %v448 = vtanh.pop %v416
        %v449 = vtanh.pop %v417
        %v450 = vtanh.pop %v418
        %v451 = vtanh.pop %v419
        %v452 = vtanh.pop %v420
        %v453 = vtanh.pop %v421
        %v454 = vtanh.pop %v422
        %v455 = vtanh.pop %v423
        %v456 = vtanh.pop %v424
        %v457 = vtanh.pop %v425
        %v458 = vtanh.pop %v426
        %v459 = vtanh.pop %v427
        %v460 = vtanh.pop %v428
        %v461 = vtanh.pop %v429
        %v462 = vtanh.pop %v430
        %v463 = vtanh.pop %v431
        %v464 = vtanh.pop %v432
        %v465 = vtanh.pop %v433
        %v466 = vtanh.pop %v434
        %v467 = vtanh.pop %v435
        %v468 = vtanh.pop %v436
        %v469 = vtanh.pop %v437
        %v470 = vtanh.pop %v438
        %v471 = vtanh.pop %v439
        %v472 = vtanh.pop %v440
        %v473 = vtanh.pop %v441
        %475 = vset.pattern.permute.xlu0 0
        %476 = vperm.xlu0 %475, %v288
        %v477 = vpop.permute.xlu0 %476
        %480 = vset.pattern.permute.xlu0 0
        %481 = vperm.xlu0 %480, %v289
        %v482 = vpop.permute.xlu0 %481
        %485 = vset.pattern.permute.xlu0 0
        %486 = vperm.xlu0 %485, %v290
        %v487 = vpop.permute.xlu0 %486
        %490 = vset.pattern.permute.xlu0 0
        %491 = vperm.xlu0 %490, %v291
        %v492 = vpop.permute.xlu0 %491
        %vm494 = vcmask 261120
        %v496 = vsel %vm494, %v284, 0
        %v499 = vsel %vm494, %v285, 0
        %v502 = vsel %vm494, %v286, 0
        %v505 = vsel %vm494, %v287, 0
        %507 = vmatprep.subr.mxu0 0.0
        %508 = vmatpush1.msra.mxu0 0.0
        %509 = vmatprep.subr.mxu0 0.0
        %510 = vmatpush1.msra.mxu0 0.0
        %511 = vmatprep.subr.mxu0 0.0
        %512 = vmatpush1.msra.mxu0 0.0
        %513 = vmatprep.subr.mxu0 0.0
        %514 = vmatpush1.msra.mxu0 0.0
        %515 = vmatprep.subr.mxu0 0.0
        %516 = vmatpush1.msra.mxu0 0.0
        %517 = vmatprep.subr.mxu0 0.0
        %518 = vmatpush1.msra.mxu0 0.0
        %519 = vmatprep.subr.mxu0 0.0
        %520 = vmatpush1.msra.mxu0 0.0
        %521 = vmatprep.subr.mxu0 0.0
        %522 = vmatpush1.msra.mxu0 0.0
        %523 = vmatprep.subr.mxu0 0.0
        %524 = vmatpush1.msra.mxu0 0.0
        %525 = vmatprep.subr.mxu0 0.0
        %526 = vmatpush1.msra.mxu0 0.0
        %527 = vmatprep.subr.mxu0 0.0
        %528 = vmatpush1.msra.mxu0 0.0
        %529 = vmatprep.subr.mxu0 0.0
        %530 = vmatpush1.msra.mxu0 0.0
        %v531 = vand.u32 %v467, 4294901760
        %532 = vmatprep.subr.mxu0 %v531
        %v533 = vand.u32 %v466, 4294901760
        %534 = vmatpush1.msra.mxu0 %v533
        %v535 = vand.u32 %v459, 4294901760
        %536 = vmatprep.subr.mxu0 %v535
        %v537 = vand.u32 %v458, 4294901760
        %538 = vmatpush1.msra.mxu0 %v537
        %v539 = vand.u32 %v451, 4294901760
        %540 = vmatprep.subr.mxu0 %v539
        %v541 = vand.u32 %v450, 4294901760
        %542 = vmatpush1.msra.mxu0 %v541
        %v543 = vand.u32 %v443, 4294901760
        %544 = vmatprep.subr.mxu0 %v543
        %v545 = vand.u32 %v442, 4294901760
        %546 = vmatpush1.msra.mxu0 %v545
        %547 = vmatprep.subr.mxu0 0.0
        %548 = vmatpush2.msra.mxu0 0.0
        %549 = vmatprep.subr.mxu0 0.0
        %550 = vmatpush2.msra.mxu0 0.0
        %551 = vmatprep.subr.mxu0 0.0
        %552 = vmatpush2.msra.mxu0 0.0
        %553 = vmatprep.subr.mxu0 0.0
        %554 = vmatpush2.msra.mxu0 0.0
        %555 = vmatprep.subr.mxu0 0.0
        %556 = vmatpush2.msra.mxu0 0.0
        %557 = vmatprep.subr.mxu0 0.0
        %558 = vmatpush2.msra.mxu0 0.0
        %559 = vmatprep.subr.mxu0 0.0
        %560 = vmatpush2.msra.mxu0 0.0
        %561 = vmatprep.subr.mxu0 0.0
        %562 = vmatpush2.msra.mxu0 0.0
        %563 = vmatprep.subr.mxu0 0.0
        %564 = vmatpush2.msra.mxu0 0.0
        %565 = vmatprep.subr.mxu0 0.0
        %566 = vmatpush2.msra.mxu0 0.0
        %567 = vmatprep.subr.mxu0 0.0
        %568 = vmatpush2.msra.mxu0 0.0
        %569 = vmatprep.subr.mxu0 0.0
        %570 = vmatpush2.msra.mxu0 0.0
        %571 = vmatprep.subr.mxu0 0.0
        %572 = vmatpush2.msra.mxu0 0.0
        %573 = vmatprep.subr.mxu0 0.0
        %574 = vmatpush2.msra.mxu0 0.0
        %575 = vmatprep.subr.mxu0 0.0
        %576 = vmatpush2.msra.mxu0 0.0
        %577 = vmatprep.subr.mxu0 0.0
        %578 = vmatpush2.msra.mxu0 0.0
        %579 = vmatprep.mubr.f32.mxu0 0.0
        %v580 = vand.u32 %v496, 4294901760
        %v581 = vsub.f32 %v496, %v580
        %v582 = vand.u32 %v581, 4294901760
        %v583 = vsub.f32 %v581, %v582
        %v584 = vand.u32 %v583, 4294901760
        %585 = vmatmul.mubr.f32.gmra.mxu0 %v584
        %v586 = vpop.f32.mrf.mxu0
        %v587 = vadd.f32 %v477, %v586
        %v588 = vpop.f32.mrf.mxu0
        %v589 = vadd.f32 %v477, %v588
        %590 = vmatprep.mubr.f32.mxu0 0.0
        %v591 = vand.u32 %v499, 4294901760
        %v592 = vsub.f32 %v499, %v591
        %v593 = vand.u32 %v592, 4294901760
        %v594 = vsub.f32 %v592, %v593
        %v595 = vand.u32 %v594, 4294901760
        %596 = vmatmul.mubr.f32.gmra.mxu0 %v595
        %v597 = vpop.f32.mrf.mxu0
        %v598 = vadd.f32 %v482, %v597
        %v599 = vpop.f32.mrf.mxu0
        %v600 = vadd.f32 %v482, %v599
        %601 = vmatprep.mubr.f32.mxu0 0.0
        %v602 = vand.u32 %v502, 4294901760
        %v603 = vsub.f32 %v502, %v602
        %v604 = vand.u32 %v603, 4294901760
        %v605 = vsub.f32 %v603, %v604
        %v606 = vand.u32 %v605, 4294901760
        %607 = vmatmul.mubr.f32.gmra.mxu0 %v606
        %v608 = vpop.f32.mrf.mxu0
        %v609 = vadd.f32 %v487, %v608
        %v610 = vpop.f32.mrf.mxu0
        %v611 = vadd.f32 %v487, %v610
        %612 = vmatprep.mubr.f32.mxu0 0.0
        %v613 = vand.u32 %v505, 4294901760
        %v614 = vsub.f32 %v505, %v613
        %v615 = vand.u32 %v614, 4294901760
        %v616 = vsub.f32 %v614, %v615
        %v617 = vand.u32 %v616, 4294901760
        %618 = vmatmul.mubr.f32.gmra.mxu0 %v617
        %v619 = vpop.f32.mrf.mxu0
        %v620 = vadd.f32 %v492, %v619
        %v621 = vpop.f32.mrf.mxu0
        %v622 = vadd.f32 %v492, %v621
        %623 = vdwg.mxu0
        %624 = vmatprep.subr.mxu0 0.0
        %625 = vmatpush1.msra.mxu0 0.0
        %626 = vmatprep.subr.mxu0 0.0
        %627 = vmatpush1.msra.mxu0 0.0
        %628 = vmatprep.subr.mxu0 0.0
        %629 = vmatpush1.msra.mxu0 0.0
        %630 = vmatprep.subr.mxu0 0.0
        %631 = vmatpush1.msra.mxu0 0.0
        %632 = vmatprep.subr.mxu0 0.0
        %633 = vmatpush1.msra.mxu0 0.0
        %634 = vmatprep.subr.mxu0 0.0
        %635 = vmatpush1.msra.mxu0 0.0
        %636 = vmatprep.subr.mxu0 0.0
        %637 = vmatpush1.msra.mxu0 0.0
        %638 = vmatprep.subr.mxu0 0.0
        %639 = vmatpush1.msra.mxu0 0.0
        %640 = vmatprep.subr.mxu0 0.0
        %641 = vmatpush1.msra.mxu0 0.0
        %642 = vmatprep.subr.mxu0 0.0
        %643 = vmatpush1.msra.mxu0 0.0
        %644 = vmatprep.subr.mxu0 0.0
        %645 = vmatpush1.msra.mxu0 0.0
        %646 = vmatprep.subr.mxu0 0.0
        %647 = vmatpush1.msra.mxu0 0.0
        %v648 = vand.u32 %v467, 4294901760
        %v649 = vsub.f32 %v467, %v648
        %v650 = vand.u32 %v649, 4294901760
        %v651 = vsub.f32 %v649, %v650
        %v652 = vand.u32 %v651, 4294901760
        %653 = vmatprep.subr.mxu0 %v652
        %v654 = vand.u32 %v466, 4294901760
        %v655 = vsub.f32 %v466, %v654
        %v656 = vand.u32 %v655, 4294901760
        %v657 = vsub.f32 %v655, %v656
        %v658 = vand.u32 %v657, 4294901760
        %659 = vmatpush1.msra.mxu0 %v658
        %v660 = vand.u32 %v459, 4294901760
        %v661 = vsub.f32 %v459, %v660
        %v662 = vand.u32 %v661, 4294901760
        %v663 = vsub.f32 %v661, %v662
        %v664 = vand.u32 %v663, 4294901760
        %665 = vmatprep.subr.mxu0 %v664
        %v666 = vand.u32 %v458, 4294901760
        %v667 = vsub.f32 %v458, %v666
        %v668 = vand.u32 %v667, 4294901760
        %v669 = vsub.f32 %v667, %v668
        %v670 = vand.u32 %v669, 4294901760
        %671 = vmatpush1.msra.mxu0 %v670
        %v672 = vand.u32 %v451, 4294901760
        %v673 = vsub.f32 %v451, %v672
        %v674 = vand.u32 %v673, 4294901760
        %v675 = vsub.f32 %v673, %v674
        %v676 = vand.u32 %v675, 4294901760
        %677 = vmatprep.subr.mxu0 %v676
        %v678 = vand.u32 %v450, 4294901760
        %v679 = vsub.f32 %v450, %v678
        %v680 = vand.u32 %v679, 4294901760
        %v681 = vsub.f32 %v679, %v680
        %v682 = vand.u32 %v681, 4294901760
        %683 = vmatpush1.msra.mxu0 %v682
        %v684 = vand.u32 %v443, 4294901760
        %v685 = vsub.f32 %v443, %v684
        %v686 = vand.u32 %v685, 4294901760
        %v687 = vsub.f32 %v685, %v686
        %v688 = vand.u32 %v687, 4294901760
        %689 = vmatprep.subr.mxu0 %v688
        %v690 = vand.u32 %v442, 4294901760
        %v691 = vsub.f32 %v442, %v690
        %v692 = vand.u32 %v691, 4294901760
        %v693 = vsub.f32 %v691, %v692
        %v694 = vand.u32 %v693, 4294901760
        %695 = vmatpush1.msra.mxu0 %v694
        %696 = vmatprep.subr.mxu0 0.0
        %697 = vmatpush2.msra.mxu0 0.0
        %698 = vmatprep.subr.mxu0 0.0
        %699 = vmatpush2.msra.mxu0 0.0
        %700 = vmatprep.subr.mxu0 0.0
        %701 = vmatpush2.msra.mxu0 0.0
        %702 = vmatprep.subr.mxu0 0.0
        %703 = vmatpush2.msra.mxu0 0.0
        %704 = vmatprep.subr.mxu0 0.0
        %705 = vmatpush2.msra.mxu0 0.0
        %706 = vmatprep.subr.mxu0 0.0
        %707 = vmatpush2.msra.mxu0 0.0
        %708 = vmatprep.subr.mxu0 0.0
        %709 = vmatpush2.msra.mxu0 0.0
        %710 = vmatprep.subr.mxu0 0.0
        %711 = vmatpush2.msra.mxu0 0.0
        %712 = vmatprep.subr.mxu0 0.0
        %713 = vmatpush2.msra.mxu0 0.0
        %714 = vmatprep.subr.mxu0 0.0
        %715 = vmatpush2.msra.mxu0 0.0
        %716 = vmatprep.subr.mxu0 0.0
        %717 = vmatpush2.msra.mxu0 0.0
        %718 = vmatprep.subr.mxu0 0.0
        %719 = vmatpush2.msra.mxu0 0.0
        %720 = vmatprep.subr.mxu0 0.0
        %721 = vmatpush2.msra.mxu0 0.0
        %722 = vmatprep.subr.mxu0 0.0
        %723 = vmatpush2.msra.mxu0 0.0
        %724 = vmatprep.subr.mxu0 0.0
        %725 = vmatpush2.msra.mxu0 0.0
        %726 = vmatprep.subr.mxu0 0.0
        %727 = vmatpush2.msra.mxu0 0.0
        %728 = vmatprep.mubr.f32.mxu0 0.0
        %v729 = vand.u32 %v496, 4294901760
        %730 = vmatmul.mubr.f32.gmra.mxu0 %v729
        %v731 = vpop.f32.mrf.mxu0
        %v732 = vadd.f32 %v587, %v731
        %v733 = vpop.f32.mrf.mxu0
        %v734 = vadd.f32 %v589, %v733
        %735 = vmatprep.mubr.f32.mxu0 0.0
        %v736 = vand.u32 %v499, 4294901760
        %737 = vmatmul.mubr.f32.gmra.mxu0 %v736
        %v738 = vpop.f32.mrf.mxu0
        %v739 = vadd.f32 %v598, %v738
        %v740 = vpop.f32.mrf.mxu0
        %v741 = vadd.f32 %v600, %v740
        %742 = vmatprep.mubr.f32.mxu0 0.0
        %v743 = vand.u32 %v502, 4294901760
        %744 = vmatmul.mubr.f32.gmra.mxu0 %v743
        %v745 = vpop.f32.mrf.mxu0
        %v746 = vadd.f32 %v609, %v745
        %v747 = vpop.f32.mrf.mxu0
        %v748 = vadd.f32 %v611, %v747
        %749 = vmatprep.mubr.f32.mxu0 0.0
        %v750 = vand.u32 %v505, 4294901760
        %751 = vmatmul.mubr.f32.gmra.mxu0 %v750
        %v752 = vpop.f32.mrf.mxu0
        %v753 = vadd.f32 %v620, %v752
        %v754 = vpop.f32.mrf.mxu0
        %v755 = vadd.f32 %v622, %v754
        %756 = vdwg.mxu0
        %757 = vmatprep.subr.mxu0 0.0
        %758 = vmatpush1.msra.mxu0 0.0
        %759 = vmatprep.subr.mxu0 0.0
        %760 = vmatpush1.msra.mxu0 0.0
        %761 = vmatprep.subr.mxu0 0.0
        %762 = vmatpush1.msra.mxu0 0.0
        %763 = vmatprep.subr.mxu0 0.0
        %764 = vmatpush1.msra.mxu0 0.0
        %765 = vmatprep.subr.mxu0 0.0
        %766 = vmatpush1.msra.mxu0 0.0
        %767 = vmatprep.subr.mxu0 0.0
        %768 = vmatpush1.msra.mxu0 0.0
        %769 = vmatprep.subr.mxu0 0.0
        %770 = vmatpush1.msra.mxu0 0.0
        %771 = vmatprep.subr.mxu0 0.0
        %772 = vmatpush1.msra.mxu0 0.0
        %773 = vmatprep.subr.mxu0 0.0
        %774 = vmatpush1.msra.mxu0 0.0
        %775 = vmatprep.subr.mxu0 0.0
        %776 = vmatpush1.msra.mxu0 0.0
        %777 = vmatprep.subr.mxu0 0.0
        %778 = vmatpush1.msra.mxu0 0.0
        %779 = vmatprep.subr.mxu0 0.0
        %780 = vmatpush1.msra.mxu0 0.0
        %v781 = vand.u32 %v467, 4294901760
        %v782 = vsub.f32 %v467, %v781
        %783 = vmatprep.subr.mxu0 %v782
        %v784 = vand.u32 %v466, 4294901760
        %v785 = vsub.f32 %v466, %v784
        %786 = vmatpush1.msra.mxu0 %v785
        %v787 = vand.u32 %v459, 4294901760
        %v788 = vsub.f32 %v459, %v787
        %789 = vmatprep.subr.mxu0 %v788
        %v790 = vand.u32 %v458, 4294901760
        %v791 = vsub.f32 %v458, %v790
        %792 = vmatpush1.msra.mxu0 %v791
        %v793 = vand.u32 %v451, 4294901760
        %v794 = vsub.f32 %v451, %v793
        %795 = vmatprep.subr.mxu0 %v794
        %v796 = vand.u32 %v450, 4294901760
        %v797 = vsub.f32 %v450, %v796
        %798 = vmatpush1.msra.mxu0 %v797
        %v799 = vand.u32 %v443, 4294901760
        %v800 = vsub.f32 %v443, %v799
        %801 = vmatprep.subr.mxu0 %v800
        %v802 = vand.u32 %v442, 4294901760
        %v803 = vsub.f32 %v442, %v802
        %804 = vmatpush1.msra.mxu0 %v803
        %805 = vmatprep.subr.mxu0 0.0
        %806 = vmatpush2.msra.mxu0 0.0
        %807 = vmatprep.subr.mxu0 0.0
        %808 = vmatpush2.msra.mxu0 0.0
        %809 = vmatprep.subr.mxu0 0.0
        %810 = vmatpush2.msra.mxu0 0.0
        %811 = vmatprep.subr.mxu0 0.0
        %812 = vmatpush2.msra.mxu0 0.0
        %813 = vmatprep.subr.mxu0 0.0
        %814 = vmatpush2.msra.mxu0 0.0
        %815 = vmatprep.subr.mxu0 0.0
        %816 = vmatpush2.msra.mxu0 0.0
        %817 = vmatprep.subr.mxu0 0.0
        %818 = vmatpush2.msra.mxu0 0.0
        %819 = vmatprep.subr.mxu0 0.0
        %820 = vmatpush2.msra.mxu0 0.0
        %821 = vmatprep.subr.mxu0 0.0
        %822 = vmatpush2.msra.mxu0 0.0
        %823 = vmatprep.subr.mxu0 0.0
        %824 = vmatpush2.msra.mxu0 0.0
        %825 = vmatprep.subr.mxu0 0.0
        %826 = vmatpush2.msra.mxu0 0.0
        %827 = vmatprep.subr.mxu0 0.0
        %828 = vmatpush2.msra.mxu0 0.0
        %829 = vmatprep.subr.mxu0 0.0
        %830 = vmatpush2.msra.mxu0 0.0
        %831 = vmatprep.subr.mxu0 0.0
        %832 = vmatpush2.msra.mxu0 0.0
        %833 = vmatprep.subr.mxu0 0.0
        %834 = vmatpush2.msra.mxu0 0.0
        %835 = vmatprep.subr.mxu0 0.0
        %836 = vmatpush2.msra.mxu0 0.0
        %837 = vmatprep.mubr.f32.mxu0 0.0
        %v838 = vand.u32 %v496, 4294901760
        %v839 = vsub.f32 %v496, %v838
        %840 = vmatmul.mubr.f32.gmra.mxu0 %v839
        %v841 = vpop.f32.mrf.mxu0
        %v842 = vadd.f32 %v732, %v841
        %v843 = vpop.f32.mrf.mxu0
        %v844 = vadd.f32 %v734, %v843
        %845 = vmatprep.mubr.f32.mxu0 0.0
        %v846 = vand.u32 %v499, 4294901760
        %v847 = vsub.f32 %v499, %v846
        %848 = vmatmul.mubr.f32.gmra.mxu0 %v847
        %v849 = vpop.f32.mrf.mxu0
        %v850 = vadd.f32 %v739, %v849
        %v851 = vpop.f32.mrf.mxu0
        %v852 = vadd.f32 %v741, %v851
        %853 = vmatprep.mubr.f32.mxu0 0.0
        %v854 = vand.u32 %v502, 4294901760
        %v855 = vsub.f32 %v502, %v854
        %856 = vmatmul.mubr.f32.gmra.mxu0 %v855
        %v857 = vpop.f32.mrf.mxu0
        %v858 = vadd.f32 %v746, %v857
        %v859 = vpop.f32.mrf.mxu0
        %v860 = vadd.f32 %v748, %v859
        %861 = vmatprep.mubr.f32.mxu0 0.0
        %v862 = vand.u32 %v505, 4294901760
        %v863 = vsub.f32 %v505, %v862
        %864 = vmatmul.mubr.f32.gmra.mxu0 %v863
        %v865 = vpop.f32.mrf.mxu0
        %v866 = vadd.f32 %v753, %v865
        %v867 = vpop.f32.mrf.mxu0
        %v868 = vadd.f32 %v755, %v867
        %869 = vdwg.mxu0
        %870 = vmatprep.subr.mxu0 0.0
        %871 = vmatpush1.msra.mxu0 0.0
        %872 = vmatprep.subr.mxu0 0.0
        %873 = vmatpush1.msra.mxu0 0.0
        %874 = vmatprep.subr.mxu0 0.0
        %875 = vmatpush1.msra.mxu0 0.0
        %876 = vmatprep.subr.mxu0 0.0
        %877 = vmatpush1.msra.mxu0 0.0
        %878 = vmatprep.subr.mxu0 0.0
        %879 = vmatpush1.msra.mxu0 0.0
        %880 = vmatprep.subr.mxu0 0.0
        %881 = vmatpush1.msra.mxu0 0.0
        %882 = vmatprep.subr.mxu0 0.0
        %883 = vmatpush1.msra.mxu0 0.0
        %884 = vmatprep.subr.mxu0 0.0
        %885 = vmatpush1.msra.mxu0 0.0
        %886 = vmatprep.subr.mxu0 0.0
        %887 = vmatpush1.msra.mxu0 0.0
        %888 = vmatprep.subr.mxu0 0.0
        %889 = vmatpush1.msra.mxu0 0.0
        %890 = vmatprep.subr.mxu0 0.0
        %891 = vmatpush1.msra.mxu0 0.0
        %892 = vmatprep.subr.mxu0 0.0
        %893 = vmatpush1.msra.mxu0 0.0
        %v894 = vand.u32 %v467, 4294901760
        %895 = vmatprep.subr.mxu0 %v894
        %v896 = vand.u32 %v466, 4294901760
        %897 = vmatpush1.msra.mxu0 %v896
        %v898 = vand.u32 %v459, 4294901760
        %899 = vmatprep.subr.mxu0 %v898
        %v900 = vand.u32 %v458, 4294901760
        %901 = vmatpush1.msra.mxu0 %v900
        %v902 = vand.u32 %v451, 4294901760
        %903 = vmatprep.subr.mxu0 %v902
        %v904 = vand.u32 %v450, 4294901760
        %905 = vmatpush1.msra.mxu0 %v904
        %v906 = vand.u32 %v443, 4294901760
        %907 = vmatprep.subr.mxu0 %v906
        %v908 = vand.u32 %v442, 4294901760
        %909 = vmatpush1.msra.mxu0 %v908
        %910 = vmatprep.subr.mxu0 0.0
        %911 = vmatpush2.msra.mxu0 0.0
        %912 = vmatprep.subr.mxu0 0.0
        %913 = vmatpush2.msra.mxu0 0.0
        %914 = vmatprep.subr.mxu0 0.0
        %915 = vmatpush2.msra.mxu0 0.0
        %916 = vmatprep.subr.mxu0 0.0
        %917 = vmatpush2.msra.mxu0 0.0
        %918 = vmatprep.subr.mxu0 0.0
        %919 = vmatpush2.msra.mxu0 0.0
        %920 = vmatprep.subr.mxu0 0.0
        %921 = vmatpush2.msra.mxu0 0.0
        %922 = vmatprep.subr.mxu0 0.0
        %923 = vmatpush2.msra.mxu0 0.0
        %924 = vmatprep.subr.mxu0 0.0
        %925 = vmatpush2.msra.mxu0 0.0
        %926 = vmatprep.subr.mxu0 0.0
        %927 = vmatpush2.msra.mxu0 0.0
        %928 = vmatprep.subr.mxu0 0.0
        %929 = vmatpush2.msra.mxu0 0.0
        %930 = vmatprep.subr.mxu0 0.0
        %931 = vmatpush2.msra.mxu0 0.0
        %932 = vmatprep.subr.mxu0 0.0
        %933 = vmatpush2.msra.mxu0 0.0
        %934 = vmatprep.subr.mxu0 0.0
        %935 = vmatpush2.msra.mxu0 0.0
        %936 = vmatprep.subr.mxu0 0.0
        %937 = vmatpush2.msra.mxu0 0.0
        %938 = vmatprep.subr.mxu0 0.0
        %939 = vmatpush2.msra.mxu0 0.0
        %940 = vmatprep.subr.mxu0 0.0
        %941 = vmatpush2.msra.mxu0 0.0
        %942 = vmatprep.mubr.f32.mxu0 0.0
        %v943 = vand.u32 %v496, 4294901760
        %v944 = vsub.f32 %v496, %v943
        %v945 = vand.u32 %v944, 4294901760
        %946 = vmatmul.mubr.f32.gmra.mxu0 %v945
        %v947 = vpop.f32.mrf.mxu0
        %v948 = vadd.f32 %v842, %v947
        %v949 = vpop.f32.mrf.mxu0
        %v950 = vadd.f32 %v844, %v949
        %951 = vmatprep.mubr.f32.mxu0 0.0
        %v952 = vand.u32 %v499, 4294901760
        %v953 = vsub.f32 %v499, %v952
        %v954 = vand.u32 %v953, 4294901760
        %955 = vmatmul.mubr.f32.gmra.mxu0 %v954
        %v956 = vpop.f32.mrf.mxu0
        %v957 = vadd.f32 %v850, %v956
        %v958 = vpop.f32.mrf.mxu0
        %v959 = vadd.f32 %v852, %v958
        %960 = vmatprep.mubr.f32.mxu0 0.0
        %v961 = vand.u32 %v502, 4294901760
        %v962 = vsub.f32 %v502, %v961
        %v963 = vand.u32 %v962, 4294901760
        %964 = vmatmul.mubr.f32.gmra.mxu0 %v963
        %v965 = vpop.f32.mrf.mxu0
        %v966 = vadd.f32 %v858, %v965
        %v967 = vpop.f32.mrf.mxu0
        %v968 = vadd.f32 %v860, %v967
        %969 = vmatprep.mubr.f32.mxu0 0.0
        %v970 = vand.u32 %v505, 4294901760
        %v971 = vsub.f32 %v505, %v970
        %v972 = vand.u32 %v971, 4294901760
        %973 = vmatmul.mubr.f32.gmra.mxu0 %v972
        %v974 = vpop.f32.mrf.mxu0
        %v975 = vadd.f32 %v866, %v974
        %v976 = vpop.f32.mrf.mxu0
        %v977 = vadd.f32 %v868, %v976
        %978 = vdwg.mxu0
        %979 = vmatprep.subr.mxu0 0.0
        %980 = vmatpush1.msra.mxu0 0.0
        %981 = vmatprep.subr.mxu0 0.0
        %982 = vmatpush1.msra.mxu0 0.0
        %983 = vmatprep.subr.mxu0 0.0
        %984 = vmatpush1.msra.mxu0 0.0
        %985 = vmatprep.subr.mxu0 0.0
        %986 = vmatpush1.msra.mxu0 0.0
        %987 = vmatprep.subr.mxu0 0.0
        %988 = vmatpush1.msra.mxu0 0.0
        %989 = vmatprep.subr.mxu0 0.0
        %990 = vmatpush1.msra.mxu0 0.0
        %991 = vmatprep.subr.mxu0 0.0
        %992 = vmatpush1.msra.mxu0 0.0
        %993 = vmatprep.subr.mxu0 0.0
        %994 = vmatpush1.msra.mxu0 0.0
        %995 = vmatprep.subr.mxu0 0.0
        %996 = vmatpush1.msra.mxu0 0.0
        %997 = vmatprep.subr.mxu0 0.0
        %998 = vmatpush1.msra.mxu0 0.0
        %999 = vmatprep.subr.mxu0 0.0
        %1000 = vmatpush1.msra.mxu0 0.0
        %1001 = vmatprep.subr.mxu0 0.0
        %1002 = vmatpush1.msra.mxu0 0.0
        %v1003 = vand.u32 %v467, 4294901760
        %v1004 = vsub.f32 %v467, %v1003
        %v1005 = vand.u32 %v1004, 4294901760
        %1006 = vmatprep.subr.mxu0 %v1005
        %v1007 = vand.u32 %v466, 4294901760
        %v1008 = vsub.f32 %v466, %v1007
        %v1009 = vand.u32 %v1008, 4294901760
        %1010 = vmatpush1.msra.mxu0 %v1009
        %v1011 = vand.u32 %v459, 4294901760
        %v1012 = vsub.f32 %v459, %v1011
        %v1013 = vand.u32 %v1012, 4294901760
        %1014 = vmatprep.subr.mxu0 %v1013
        %v1015 = vand.u32 %v458, 4294901760
        %v1016 = vsub.f32 %v458, %v1015
        %v1017 = vand.u32 %v1016, 4294901760
        %1018 = vmatpush1.msra.mxu0 %v1017
        %v1019 = vand.u32 %v451, 4294901760
        %v1020 = vsub.f32 %v451, %v1019
        %v1021 = vand.u32 %v1020, 4294901760
        %1022 = vmatprep.subr.mxu0 %v1021
        %v1023 = vand.u32 %v450, 4294901760
        %v1024 = vsub.f32 %v450, %v1023
        %v1025 = vand.u32 %v1024, 4294901760
        %1026 = vmatpush1.msra.mxu0 %v1025
        %v1027 = vand.u32 %v443, 4294901760
        %v1028 = vsub.f32 %v443, %v1027
        %v1029 = vand.u32 %v1028, 4294901760
        %1030 = vmatprep.subr.mxu0 %v1029
        %v1031 = vand.u32 %v442, 4294901760
        %v1032 = vsub.f32 %v442, %v1031
        %v1033 = vand.u32 %v1032, 4294901760
        %1034 = vmatpush1.msra.mxu0 %v1033
        %1035 = vmatprep.subr.mxu0 0.0
        %1036 = vmatpush2.msra.mxu0 0.0
        %1037 = vmatprep.subr.mxu0 0.0
        %1038 = vmatpush2.msra.mxu0 0.0
        %1039 = vmatprep.subr.mxu0 0.0
        %1040 = vmatpush2.msra.mxu0 0.0
        %1041 = vmatprep.subr.mxu0 0.0
        %1042 = vmatpush2.msra.mxu0 0.0
        %1043 = vmatprep.subr.mxu0 0.0
        %1044 = vmatpush2.msra.mxu0 0.0
        %1045 = vmatprep.subr.mxu0 0.0
        %1046 = vmatpush2.msra.mxu0 0.0
        %1047 = vmatprep.subr.mxu0 0.0
        %1048 = vmatpush2.msra.mxu0 0.0
        %1049 = vmatprep.subr.mxu0 0.0
        %1050 = vmatpush2.msra.mxu0 0.0
        %1051 = vmatprep.subr.mxu0 0.0
        %1052 = vmatpush2.msra.mxu0 0.0
        %1053 = vmatprep.subr.mxu0 0.0
        %1054 = vmatpush2.msra.mxu0 0.0
        %1055 = vmatprep.subr.mxu0 0.0
        %1056 = vmatpush2.msra.mxu0 0.0
        %1057 = vmatprep.subr.mxu0 0.0
        %1058 = vmatpush2.msra.mxu0 0.0
        %1059 = vmatprep.subr.mxu0 0.0
        %1060 = vmatpush2.msra.mxu0 0.0
        %1061 = vmatprep.subr.mxu0 0.0
        %1062 = vmatpush2.msra.mxu0 0.0
        %1063 = vmatprep.subr.mxu0 0.0
        %1064 = vmatpush2.msra.mxu0 0.0
        %1065 = vmatprep.subr.mxu0 0.0
        %1066 = vmatpush2.msra.mxu0 0.0
        %1067 = vmatprep.mubr.f32.mxu0 0.0
        %v1068 = vand.u32 %v496, 4294901760
        %1069 = vmatmul.mubr.f32.gmra.mxu0 %v1068
        %v1070 = vpop.f32.mrf.mxu0
        %v1071 = vadd.f32 %v948, %v1070
        %v1072 = vpop.f32.mrf.mxu0
        %v1073 = vadd.f32 %v950, %v1072
        %1074 = vmatprep.mubr.f32.mxu0 0.0
        %v1075 = vand.u32 %v499, 4294901760
        %1076 = vmatmul.mubr.f32.gmra.mxu0 %v1075
        %v1077 = vpop.f32.mrf.mxu0
        %v1078 = vadd.f32 %v957, %v1077
        %v1079 = vpop.f32.mrf.mxu0
        %v1080 = vadd.f32 %v959, %v1079
        %1081 = vmatprep.mubr.f32.mxu0 0.0
        %v1082 = vand.u32 %v502, 4294901760
        %1083 = vmatmul.mubr.f32.gmra.mxu0 %v1082
        %v1084 = vpop.f32.mrf.mxu0
        %v1085 = vadd.f32 %v966, %v1084
        %v1086 = vpop.f32.mrf.mxu0
        %v1087 = vadd.f32 %v968, %v1086
        %1088 = vmatprep.mubr.f32.mxu0 0.0
        %v1089 = vand.u32 %v505, 4294901760
        %1090 = vmatmul.mubr.f32.gmra.mxu0 %v1089
        %v1091 = vpop.f32.mrf.mxu0
        %v1092 = vadd.f32 %v975, %v1091
        %v1093 = vpop.f32.mrf.mxu0
        %v1094 = vadd.f32 %v977, %v1093
        %1095 = vdwg.mxu0
        %1096 = vmatprep.subr.mxu0 0.0
        %1097 = vmatpush1.msra.mxu0 0.0
        %1098 = vmatprep.subr.mxu0 0.0
        %1099 = vmatpush1.msra.mxu0 0.0
        %1100 = vmatprep.subr.mxu0 0.0
        %1101 = vmatpush1.msra.mxu0 0.0
        %1102 = vmatprep.subr.mxu0 0.0
        %1103 = vmatpush1.msra.mxu0 0.0
        %1104 = vmatprep.subr.mxu0 0.0
        %1105 = vmatpush1.msra.mxu0 0.0
        %1106 = vmatprep.subr.mxu0 0.0
        %1107 = vmatpush1.msra.mxu0 0.0
        %1108 = vmatprep.subr.mxu0 0.0
        %1109 = vmatpush1.msra.mxu0 0.0
        %1110 = vmatprep.subr.mxu0 0.0
        %1111 = vmatpush1.msra.mxu0 0.0
        %1112 = vmatprep.subr.mxu0 0.0
        %1113 = vmatpush1.msra.mxu0 0.0
        %1114 = vmatprep.subr.mxu0 0.0
        %1115 = vmatpush1.msra.mxu0 0.0
        %1116 = vmatprep.subr.mxu0 0.0
        %1117 = vmatpush1.msra.mxu0 0.0
        %1118 = vmatprep.subr.mxu0 0.0
        %1119 = vmatpush1.msra.mxu0 0.0
        %v1120 = vand.u32 %v467, 4294901760
        %1121 = vmatprep.subr.mxu0 %v1120
        %v1122 = vand.u32 %v466, 4294901760
        %1123 = vmatpush1.msra.mxu0 %v1122
        %v1124 = vand.u32 %v459, 4294901760
        %1125 = vmatprep.subr.mxu0 %v1124
        %v1126 = vand.u32 %v458, 4294901760
        %1127 = vmatpush1.msra.mxu0 %v1126
        %v1128 = vand.u32 %v451, 4294901760
        %1129 = vmatprep.subr.mxu0 %v1128
        %v1130 = vand.u32 %v450, 4294901760
        %1131 = vmatpush1.msra.mxu0 %v1130
        %v1132 = vand.u32 %v443, 4294901760
        %1133 = vmatprep.subr.mxu0 %v1132
        %v1134 = vand.u32 %v442, 4294901760
        %1135 = vmatpush1.msra.mxu0 %v1134
        %1136 = vmatprep.subr.mxu0 0.0
        %1137 = vmatpush2.msra.mxu0 0.0
        %1138 = vmatprep.subr.mxu0 0.0
        %1139 = vmatpush2.msra.mxu0 0.0
        %1140 = vmatprep.subr.mxu0 0.0
        %1141 = vmatpush2.msra.mxu0 0.0
        %1142 = vmatprep.subr.mxu0 0.0
        %1143 = vmatpush2.msra.mxu0 0.0
        %1144 = vmatprep.subr.mxu0 0.0
        %1145 = vmatpush2.msra.mxu0 0.0
        %1146 = vmatprep.subr.mxu0 0.0
        %1147 = vmatpush2.msra.mxu0 0.0
        %1148 = vmatprep.subr.mxu0 0.0
        %1149 = vmatpush2.msra.mxu0 0.0
        %1150 = vmatprep.subr.mxu0 0.0
        %1151 = vmatpush2.msra.mxu0 0.0
        %1152 = vmatprep.subr.mxu0 0.0
        %1153 = vmatpush2.msra.mxu0 0.0
        %1154 = vmatprep.subr.mxu0 0.0
        %1155 = vmatpush2.msra.mxu0 0.0
        %1156 = vmatprep.subr.mxu0 0.0
        %1157 = vmatpush2.msra.mxu0 0.0
        %1158 = vmatprep.subr.mxu0 0.0
        %1159 = vmatpush2.msra.mxu0 0.0
        %1160 = vmatprep.subr.mxu0 0.0
        %1161 = vmatpush2.msra.mxu0 0.0
        %1162 = vmatprep.subr.mxu0 0.0
        %1163 = vmatpush2.msra.mxu0 0.0
        %1164 = vmatprep.subr.mxu0 0.0
        %1165 = vmatpush2.msra.mxu0 0.0
        %1166 = vmatprep.subr.mxu0 0.0
        %1167 = vmatpush2.msra.mxu0 0.0
        %1168 = vmatprep.mubr.f32.mxu0 0.0
        %v1169 = vand.u32 %v496, 4294901760
        %1170 = vmatmul.mubr.f32.gmra.mxu0 %v1169
        %v1171 = vpop.f32.mrf.mxu0
        %v1172 = vadd.f32 %v1071, %v1171
        %v1173 = vpop.f32.mrf.mxu0
        %v1174 = vadd.f32 %v1073, %v1173
        %1175 = vmatprep.mubr.f32.mxu0 0.0
        %v1176 = vand.u32 %v499, 4294901760
        %1177 = vmatmul.mubr.f32.gmra.mxu0 %v1176
        %v1178 = vpop.f32.mrf.mxu0
        %v1179 = vadd.f32 %v1078, %v1178
        %v1180 = vpop.f32.mrf.mxu0
        %v1181 = vadd.f32 %v1080, %v1180
        %1182 = vmatprep.mubr.f32.mxu0 0.0
        %v1183 = vand.u32 %v502, 4294901760
        %1184 = vmatmul.mubr.f32.gmra.mxu0 %v1183
        %v1185 = vpop.f32.mrf.mxu0
        %v1186 = vadd.f32 %v1085, %v1185
        %v1187 = vpop.f32.mrf.mxu0
        %v1188 = vadd.f32 %v1087, %v1187
        %1189 = vmatprep.mubr.f32.mxu0 0.0
        %v1190 = vand.u32 %v505, 4294901760
        %1191 = vmatmul.mubr.f32.gmra.mxu0 %v1190
        %v1192 = vpop.f32.mrf.mxu0
        %v1193 = vadd.f32 %v1092, %v1192
        %v1194 = vpop.f32.mrf.mxu0
        %v1195 = vadd.f32 %v1094, %v1194
        %1196 = vdwg.mxu0
        %1197 = vmatprep.subr.mxu0 0.0
        %1198 = vmatpush1.msra.mxu0 0.0
        %1199 = vmatprep.subr.mxu0 0.0
        %1200 = vmatpush1.msra.mxu0 0.0
        %1201 = vmatprep.subr.mxu0 0.0
        %1202 = vmatpush1.msra.mxu0 0.0
        %1203 = vmatprep.subr.mxu0 0.0
        %1204 = vmatpush1.msra.mxu0 0.0
        %1205 = vmatprep.subr.mxu0 0.0
        %1206 = vmatpush1.msra.mxu0 0.0
        %1207 = vmatprep.subr.mxu0 0.0
        %1208 = vmatpush1.msra.mxu0 0.0
        %1209 = vmatprep.subr.mxu0 0.0
        %1210 = vmatpush1.msra.mxu0 0.0
        %1211 = vmatprep.subr.mxu0 0.0
        %1212 = vmatpush1.msra.mxu0 0.0
        %1213 = vmatprep.subr.mxu0 0.0
        %1214 = vmatpush1.msra.mxu0 0.0
        %1215 = vmatprep.subr.mxu0 0.0
        %1216 = vmatpush1.msra.mxu0 0.0
        %1217 = vmatprep.subr.mxu0 0.0
        %1218 = vmatpush1.msra.mxu0 0.0
        %1219 = vmatprep.subr.mxu0 0.0
        %1220 = vmatpush1.msra.mxu0 0.0
        %v1221 = vand.u32 %v469, 4294901760
        %1222 = vmatprep.subr.mxu0 %v1221
        %v1223 = vand.u32 %v468, 4294901760
        %1224 = vmatpush1.msra.mxu0 %v1223
        %v1225 = vand.u32 %v461, 4294901760
        %1226 = vmatprep.subr.mxu0 %v1225
        %v1227 = vand.u32 %v460, 4294901760
        %1228 = vmatpush1.msra.mxu0 %v1227
        %v1229 = vand.u32 %v453, 4294901760
        %1230 = vmatprep.subr.mxu0 %v1229
        %v1231 = vand.u32 %v452, 4294901760
        %1232 = vmatpush1.msra.mxu0 %v1231
        %v1233 = vand.u32 %v445, 4294901760
        %1234 = vmatprep.subr.mxu0 %v1233
        %v1235 = vand.u32 %v444, 4294901760
        %1236 = vmatpush1.msra.mxu0 %v1235
        %1237 = vmatprep.subr.mxu0 0.0
        %1238 = vmatpush2.msra.mxu0 0.0
        %1239 = vmatprep.subr.mxu0 0.0
        %1240 = vmatpush2.msra.mxu0 0.0
        %1241 = vmatprep.subr.mxu0 0.0
        %1242 = vmatpush2.msra.mxu0 0.0
        %1243 = vmatprep.subr.mxu0 0.0
        %1244 = vmatpush2.msra.mxu0 0.0
        %1245 = vmatprep.subr.mxu0 0.0
        %1246 = vmatpush2.msra.mxu0 0.0
        %1247 = vmatprep.subr.mxu0 0.0
        %1248 = vmatpush2.msra.mxu0 0.0
        %1249 = vmatprep.subr.mxu0 0.0
        %1250 = vmatpush2.msra.mxu0 0.0
        %1251 = vmatprep.subr.mxu0 0.0
        %1252 = vmatpush2.msra.mxu0 0.0
        %1253 = vmatprep.subr.mxu0 0.0
        %1254 = vmatpush2.msra.mxu0 0.0
        %1255 = vmatprep.subr.mxu0 0.0
        %1256 = vmatpush2.msra.mxu0 0.0
        %1257 = vmatprep.subr.mxu0 0.0
        %1258 = vmatpush2.msra.mxu0 0.0
        %1259 = vmatprep.subr.mxu0 0.0
        %1260 = vmatpush2.msra.mxu0 0.0
        %1261 = vmatprep.subr.mxu0 0.0
        %1262 = vmatpush2.msra.mxu0 0.0
        %1263 = vmatprep.subr.mxu0 0.0
        %1264 = vmatpush2.msra.mxu0 0.0
        %1265 = vmatprep.subr.mxu0 0.0
        %1266 = vmatpush2.msra.mxu0 0.0
        %1267 = vmatprep.subr.mxu0 0.0
        %1268 = vmatpush2.msra.mxu0 0.0
        %1269 = vmatprep.mubr.f32.mxu0 0.0
        %v1270 = vand.u32 %v496, 4294901760
        %v1271 = vsub.f32 %v496, %v1270
        %v1272 = vand.u32 %v1271, 4294901760
        %v1273 = vsub.f32 %v1271, %v1272
        %v1274 = vand.u32 %v1273, 4294901760
        %1275 = vmatmul.mubr.f32.gmra.mxu0 %v1274
        %v1276 = vpop.f32.mrf.mxu0
        %v1277 = vadd.f32 %v477, %v1276
        %v1278 = vpop.f32.mrf.mxu0
        %v1279 = vadd.f32 %v477, %v1278
        %1280 = vmatprep.mubr.f32.mxu0 0.0
        %v1281 = vand.u32 %v499, 4294901760
        %v1282 = vsub.f32 %v499, %v1281
        %v1283 = vand.u32 %v1282, 4294901760
        %v1284 = vsub.f32 %v1282, %v1283
        %v1285 = vand.u32 %v1284, 4294901760
        %1286 = vmatmul.mubr.f32.gmra.mxu0 %v1285
        %v1287 = vpop.f32.mrf.mxu0
        %v1288 = vadd.f32 %v482, %v1287
        %v1289 = vpop.f32.mrf.mxu0
        %v1290 = vadd.f32 %v482, %v1289
        %1291 = vmatprep.mubr.f32.mxu0 0.0
        %v1292 = vand.u32 %v502, 4294901760
        %v1293 = vsub.f32 %v502, %v1292
        %v1294 = vand.u32 %v1293, 4294901760
        %v1295 = vsub.f32 %v1293, %v1294
        %v1296 = vand.u32 %v1295, 4294901760
        %1297 = vmatmul.mubr.f32.gmra.mxu0 %v1296
        %v1298 = vpop.f32.mrf.mxu0
        %v1299 = vadd.f32 %v487, %v1298
        %v1300 = vpop.f32.mrf.mxu0
        %v1301 = vadd.f32 %v487, %v1300
        %1302 = vmatprep.mubr.f32.mxu0 0.0
        %v1303 = vand.u32 %v505, 4294901760
        %v1304 = vsub.f32 %v505, %v1303
        %v1305 = vand.u32 %v1304, 4294901760
        %v1306 = vsub.f32 %v1304, %v1305
        %v1307 = vand.u32 %v1306, 4294901760
        %1308 = vmatmul.mubr.f32.gmra.mxu0 %v1307
        %v1309 = vpop.f32.mrf.mxu0
        %v1310 = vadd.f32 %v492, %v1309
        %v1311 = vpop.f32.mrf.mxu0
        %v1312 = vadd.f32 %v492, %v1311
        %1313 = vdwg.mxu0
        %1314 = vmatprep.subr.mxu0 0.0
        %1315 = vmatpush1.msra.mxu0 0.0
        %1316 = vmatprep.subr.mxu0 0.0
        %1317 = vmatpush1.msra.mxu0 0.0
        %1318 = vmatprep.subr.mxu0 0.0
        %1319 = vmatpush1.msra.mxu0 0.0
        %1320 = vmatprep.subr.mxu0 0.0
        %1321 = vmatpush1.msra.mxu0 0.0
        %1322 = vmatprep.subr.mxu0 0.0
        %1323 = vmatpush1.msra.mxu0 0.0
        %1324 = vmatprep.subr.mxu0 0.0
        %1325 = vmatpush1.msra.mxu0 0.0
        %1326 = vmatprep.subr.mxu0 0.0
        %1327 = vmatpush1.msra.mxu0 0.0
        %1328 = vmatprep.subr.mxu0 0.0
        %1329 = vmatpush1.msra.mxu0 0.0
        %1330 = vmatprep.subr.mxu0 0.0
        %1331 = vmatpush1.msra.mxu0 0.0
        %1332 = vmatprep.subr.mxu0 0.0
        %1333 = vmatpush1.msra.mxu0 0.0
        %1334 = vmatprep.subr.mxu0 0.0
        %1335 = vmatpush1.msra.mxu0 0.0
        %1336 = vmatprep.subr.mxu0 0.0
        %1337 = vmatpush1.msra.mxu0 0.0
        %v1338 = vand.u32 %v469, 4294901760
        %v1339 = vsub.f32 %v469, %v1338
        %v1340 = vand.u32 %v1339, 4294901760
        %v1341 = vsub.f32 %v1339, %v1340
        %v1342 = vand.u32 %v1341, 4294901760
        %1343 = vmatprep.subr.mxu0 %v1342
        %v1344 = vand.u32 %v468, 4294901760
        %v1345 = vsub.f32 %v468, %v1344
        %v1346 = vand.u32 %v1345, 4294901760
        %v1347 = vsub.f32 %v1345, %v1346
        %v1348 = vand.u32 %v1347, 4294901760
        %1349 = vmatpush1.msra.mxu0 %v1348
        %v1350 = vand.u32 %v461, 4294901760
        %v1351 = vsub.f32 %v461, %v1350
        %v1352 = vand.u32 %v1351, 4294901760
        %v1353 = vsub.f32 %v1351, %v1352
        %v1354 = vand.u32 %v1353, 4294901760
        %1355 = vmatprep.subr.mxu0 %v1354
        %v1356 = vand.u32 %v460, 4294901760
        %v1357 = vsub.f32 %v460, %v1356
        %v1358 = vand.u32 %v1357, 4294901760
        %v1359 = vsub.f32 %v1357, %v1358
        %v1360 = vand.u32 %v1359, 4294901760
        %1361 = vmatpush1.msra.mxu0 %v1360
        %v1362 = vand.u32 %v453, 4294901760
        %v1363 = vsub.f32 %v453, %v1362
        %v1364 = vand.u32 %v1363, 4294901760
        %v1365 = vsub.f32 %v1363, %v1364
        %v1366 = vand.u32 %v1365, 4294901760
        %1367 = vmatprep.subr.mxu0 %v1366
        %v1368 = vand.u32 %v452, 4294901760
        %v1369 = vsub.f32 %v452, %v1368
        %v1370 = vand.u32 %v1369, 4294901760
        %v1371 = vsub.f32 %v1369, %v1370
        %v1372 = vand.u32 %v1371, 4294901760
        %1373 = vmatpush1.msra.mxu0 %v1372
        %v1374 = vand.u32 %v445, 4294901760
        %v1375 = vsub.f32 %v445, %v1374
        %v1376 = vand.u32 %v1375, 4294901760
        %v1377 = vsub.f32 %v1375, %v1376
        %v1378 = vand.u32 %v1377, 4294901760
        %1379 = vmatprep.subr.mxu0 %v1378
        %v1380 = vand.u32 %v444, 4294901760
        %v1381 = vsub.f32 %v444, %v1380
        %v1382 = vand.u32 %v1381, 4294901760
        %v1383 = vsub.f32 %v1381, %v1382
        %v1384 = vand.u32 %v1383, 4294901760
        %1385 = vmatpush1.msra.mxu0 %v1384
        %1386 = vmatprep.subr.mxu0 0.0
        %1387 = vmatpush2.msra.mxu0 0.0
        %1388 = vmatprep.subr.mxu0 0.0
        %1389 = vmatpush2.msra.mxu0 0.0
        %1390 = vmatprep.subr.mxu0 0.0
        %1391 = vmatpush2.msra.mxu0 0.0
        %1392 = vmatprep.subr.mxu0 0.0
        %1393 = vmatpush2.msra.mxu0 0.0
        %1394 = vmatprep.subr.mxu0 0.0
        %1395 = vmatpush2.msra.mxu0 0.0
        %1396 = vmatprep.subr.mxu0 0.0
        %1397 = vmatpush2.msra.mxu0 0.0
        %1398 = vmatprep.subr.mxu0 0.0
        %1399 = vmatpush2.msra.mxu0 0.0
        %1400 = vmatprep.subr.mxu0 0.0
        %1401 = vmatpush2.msra.mxu0 0.0
        %1402 = vmatprep.subr.mxu0 0.0
        %1403 = vmatpush2.msra.mxu0 0.0
        %1404 = vmatprep.subr.mxu0 0.0
        %1405 = vmatpush2.msra.mxu0 0.0
        %1406 = vmatprep.subr.mxu0 0.0
        %1407 = vmatpush2.msra.mxu0 0.0
        %1408 = vmatprep.subr.mxu0 0.0
        %1409 = vmatpush2.msra.mxu0 0.0
        %1410 = vmatprep.subr.mxu0 0.0
        %1411 = vmatpush2.msra.mxu0 0.0
        %1412 = vmatprep.subr.mxu0 0.0
        %1413 = vmatpush2.msra.mxu0 0.0
        %1414 = vmatprep.subr.mxu0 0.0
        %1415 = vmatpush2.msra.mxu0 0.0
        %1416 = vmatprep.subr.mxu0 0.0
        %1417 = vmatpush2.msra.mxu0 0.0
        %1418 = vmatprep.mubr.f32.mxu0 0.0
        %v1419 = vand.u32 %v496, 4294901760
        %1420 = vmatmul.mubr.f32.gmra.mxu0 %v1419
        %v1421 = vpop.f32.mrf.mxu0
        %v1422 = vadd.f32 %v1277, %v1421
        %v1423 = vpop.f32.mrf.mxu0
        %v1424 = vadd.f32 %v1279, %v1423
        %1425 = vmatprep.mubr.f32.mxu0 0.0
        %v1426 = vand.u32 %v499, 4294901760
        %1427 = vmatmul.mubr.f32.gmra.mxu0 %v1426
        %v1428 = vpop.f32.mrf.mxu0
        %v1429 = vadd.f32 %v1288, %v1428
        %v1430 = vpop.f32.mrf.mxu0
        %v1431 = vadd.f32 %v1290, %v1430
        %1432 = vmatprep.mubr.f32.mxu0 0.0
        %v1433 = vand.u32 %v502, 4294901760
        %1434 = vmatmul.mubr.f32.gmra.mxu0 %v1433
        %v1435 = vpop.f32.mrf.mxu0
        %v1436 = vadd.f32 %v1299, %v1435
        %v1437 = vpop.f32.mrf.mxu0
        %v1438 = vadd.f32 %v1301, %v1437
        %1439 = vmatprep.mubr.f32.mxu0 0.0
        %v1440 = vand.u32 %v505, 4294901760
        %1441 = vmatmul.mubr.f32.gmra.mxu0 %v1440
        %v1442 = vpop.f32.mrf.mxu0
        %v1443 = vadd.f32 %v1310, %v1442
        %v1444 = vpop.f32.mrf.mxu0
        %v1445 = vadd.f32 %v1312, %v1444
        %1446 = vdwg.mxu0
        %1447 = vmatprep.subr.mxu0 0.0
        %1448 = vmatpush1.msra.mxu0 0.0
        %1449 = vmatprep.subr.mxu0 0.0
        %1450 = vmatpush1.msra.mxu0 0.0
        %1451 = vmatprep.subr.mxu0 0.0
        %1452 = vmatpush1.msra.mxu0 0.0
        %1453 = vmatprep.subr.mxu0 0.0
        %1454 = vmatpush1.msra.mxu0 0.0
        %1455 = vmatprep.subr.mxu0 0.0
        %1456 = vmatpush1.msra.mxu0 0.0
        %1457 = vmatprep.subr.mxu0 0.0
        %1458 = vmatpush1.msra.mxu0 0.0
        %1459 = vmatprep.subr.mxu0 0.0
        %1460 = vmatpush1.msra.mxu0 0.0
        %1461 = vmatprep.subr.mxu0 0.0
        %1462 = vmatpush1.msra.mxu0 0.0
        %1463 = vmatprep.subr.mxu0 0.0
        %1464 = vmatpush1.msra.mxu0 0.0
        %1465 = vmatprep.subr.mxu0 0.0
        %1466 = vmatpush1.msra.mxu0 0.0
        %1467 = vmatprep.subr.mxu0 0.0
        %1468 = vmatpush1.msra.mxu0 0.0
        %1469 = vmatprep.subr.mxu0 0.0
        %1470 = vmatpush1.msra.mxu0 0.0
        %v1471 = vand.u32 %v469, 4294901760
        %v1472 = vsub.f32 %v469, %v1471
        %1473 = vmatprep.subr.mxu0 %v1472
        %v1474 = vand.u32 %v468, 4294901760
        %v1475 = vsub.f32 %v468, %v1474
        %1476 = vmatpush1.msra.mxu0 %v1475
        %v1477 = vand.u32 %v461, 4294901760
        %v1478 = vsub.f32 %v461, %v1477
        %1479 = vmatprep.subr.mxu0 %v1478
        %v1480 = vand.u32 %v460, 4294901760
        %v1481 = vsub.f32 %v460, %v1480
        %1482 = vmatpush1.msra.mxu0 %v1481
        %v1483 = vand.u32 %v453, 4294901760
        %v1484 = vsub.f32 %v453, %v1483
        %1485 = vmatprep.subr.mxu0 %v1484
        %v1486 = vand.u32 %v452, 4294901760
        %v1487 = vsub.f32 %v452, %v1486
        %1488 = vmatpush1.msra.mxu0 %v1487
        %v1489 = vand.u32 %v445, 4294901760
        %v1490 = vsub.f32 %v445, %v1489
        %1491 = vmatprep.subr.mxu0 %v1490
        %v1492 = vand.u32 %v444, 4294901760
        %v1493 = vsub.f32 %v444, %v1492
        %1494 = vmatpush1.msra.mxu0 %v1493
        %1495 = vmatprep.subr.mxu0 0.0
        %1496 = vmatpush2.msra.mxu0 0.0
        %1497 = vmatprep.subr.mxu0 0.0
        %1498 = vmatpush2.msra.mxu0 0.0
        %1499 = vmatprep.subr.mxu0 0.0
        %1500 = vmatpush2.msra.mxu0 0.0
        %1501 = vmatprep.subr.mxu0 0.0
        %1502 = vmatpush2.msra.mxu0 0.0
        %1503 = vmatprep.subr.mxu0 0.0
        %1504 = vmatpush2.msra.mxu0 0.0
        %1505 = vmatprep.subr.mxu0 0.0
        %1506 = vmatpush2.msra.mxu0 0.0
        %1507 = vmatprep.subr.mxu0 0.0
        %1508 = vmatpush2.msra.mxu0 0.0
        %1509 = vmatprep.subr.mxu0 0.0
        %1510 = vmatpush2.msra.mxu0 0.0
        %1511 = vmatprep.subr.mxu0 0.0
        %1512 = vmatpush2.msra.mxu0 0.0
        %1513 = vmatprep.subr.mxu0 0.0
        %1514 = vmatpush2.msra.mxu0 0.0
        %1515 = vmatprep.subr.mxu0 0.0
        %1516 = vmatpush2.msra.mxu0 0.0
        %1517 = vmatprep.subr.mxu0 0.0
        %1518 = vmatpush2.msra.mxu0 0.0
        %1519 = vmatprep.subr.mxu0 0.0
        %1520 = vmatpush2.msra.mxu0 0.0
        %1521 = vmatprep.subr.mxu0 0.0
        %1522 = vmatpush2.msra.mxu0 0.0
        %1523 = vmatprep.subr.mxu0 0.0
        %1524 = vmatpush2.msra.mxu0 0.0
        %1525 = vmatprep.subr.mxu0 0.0
        %1526 = vmatpush2.msra.mxu0 0.0
        %1527 = vmatprep.mubr.f32.mxu0 0.0
        %v1528 = vand.u32 %v496, 4294901760
        %v1529 = vsub.f32 %v496, %v1528
        %1530 = vmatmul.mubr.f32.gmra.mxu0 %v1529
        %v1531 = vpop.f32.mrf.mxu0
        %v1532 = vadd.f32 %v1422, %v1531
        %v1533 = vpop.f32.mrf.mxu0
        %v1534 = vadd.f32 %v1424, %v1533
        %1535 = vmatprep.mubr.f32.mxu0 0.0
        %v1536 = vand.u32 %v499, 4294901760
        %v1537 = vsub.f32 %v499, %v1536
        %1538 = vmatmul.mubr.f32.gmra.mxu0 %v1537
        %v1539 = vpop.f32.mrf.mxu0
        %v1540 = vadd.f32 %v1429, %v1539
        %v1541 = vpop.f32.mrf.mxu0
        %v1542 = vadd.f32 %v1431, %v1541
        %1543 = vmatprep.mubr.f32.mxu0 0.0
        %v1544 = vand.u32 %v502, 4294901760
        %v1545 = vsub.f32 %v502, %v1544
        %1546 = vmatmul.mubr.f32.gmra.mxu0 %v1545
        %v1547 = vpop.f32.mrf.mxu0
        %v1548 = vadd.f32 %v1436, %v1547
        %v1549 = vpop.f32.mrf.mxu0
        %v1550 = vadd.f32 %v1438, %v1549
        %1551 = vmatprep.mubr.f32.mxu0 0.0
        %v1552 = vand.u32 %v505, 4294901760
        %v1553 = vsub.f32 %v505, %v1552
        %1554 = vmatmul.mubr.f32.gmra.mxu0 %v1553
        %v1555 = vpop.f32.mrf.mxu0
        %v1556 = vadd.f32 %v1443, %v1555
        %v1557 = vpop.f32.mrf.mxu0
        %v1558 = vadd.f32 %v1445, %v1557
        %1559 = vdwg.mxu0
        %1560 = vmatprep.subr.mxu0 0.0
        %1561 = vmatpush1.msra.mxu0 0.0
        %1562 = vmatprep.subr.mxu0 0.0
        %1563 = vmatpush1.msra.mxu0 0.0
        %1564 = vmatprep.subr.mxu0 0.0
        %1565 = vmatpush1.msra.mxu0 0.0
        %1566 = vmatprep.subr.mxu0 0.0
        %1567 = vmatpush1.msra.mxu0 0.0
        %1568 = vmatprep.subr.mxu0 0.0
        %1569 = vmatpush1.msra.mxu0 0.0
        %1570 = vmatprep.subr.mxu0 0.0
        %1571 = vmatpush1.msra.mxu0 0.0
        %1572 = vmatprep.subr.mxu0 0.0
        %1573 = vmatpush1.msra.mxu0 0.0
        %1574 = vmatprep.subr.mxu0 0.0
        %1575 = vmatpush1.msra.mxu0 0.0
        %1576 = vmatprep.subr.mxu0 0.0
        %1577 = vmatpush1.msra.mxu0 0.0
        %1578 = vmatprep.subr.mxu0 0.0
        %1579 = vmatpush1.msra.mxu0 0.0
        %1580 = vmatprep.subr.mxu0 0.0
        %1581 = vmatpush1.msra.mxu0 0.0
        %1582 = vmatprep.subr.mxu0 0.0
        %1583 = vmatpush1.msra.mxu0 0.0
        %v1584 = vand.u32 %v469, 4294901760
        %1585 = vmatprep.subr.mxu0 %v1584
        %v1586 = vand.u32 %v468, 4294901760
        %1587 = vmatpush1.msra.mxu0 %v1586
        %v1588 = vand.u32 %v461, 4294901760
        %1589 = vmatprep.subr.mxu0 %v1588
        %v1590 = vand.u32 %v460, 4294901760
        %1591 = vmatpush1.msra.mxu0 %v1590
        %v1592 = vand.u32 %v453, 4294901760
        %1593 = vmatprep.subr.mxu0 %v1592
        %v1594 = vand.u32 %v452, 4294901760
        %1595 = vmatpush1.msra.mxu0 %v1594
        %v1596 = vand.u32 %v445, 4294901760
        %1597 = vmatprep.subr.mxu0 %v1596
        %v1598 = vand.u32 %v444, 4294901760
        %1599 = vmatpush1.msra.mxu0 %v1598
        %1600 = vmatprep.subr.mxu0 0.0
        %1601 = vmatpush2.msra.mxu0 0.0
        %1602 = vmatprep.subr.mxu0 0.0
        %1603 = vmatpush2.msra.mxu0 0.0
        %1604 = vmatprep.subr.mxu0 0.0
        %1605 = vmatpush2.msra.mxu0 0.0
        %1606 = vmatprep.subr.mxu0 0.0
        %1607 = vmatpush2.msra.mxu0 0.0
        %1608 = vmatprep.subr.mxu0 0.0
        %1609 = vmatpush2.msra.mxu0 0.0
        %1610 = vmatprep.subr.mxu0 0.0
        %1611 = vmatpush2.msra.mxu0 0.0
        %1612 = vmatprep.subr.mxu0 0.0
        %1613 = vmatpush2.msra.mxu0 0.0
        %1614 = vmatprep.subr.mxu0 0.0
        %1615 = vmatpush2.msra.mxu0 0.0
        %1616 = vmatprep.subr.mxu0 0.0
        %1617 = vmatpush2.msra.mxu0 0.0
        %1618 = vmatprep.subr.mxu0 0.0
        %1619 = vmatpush2.msra.mxu0 0.0
        %1620 = vmatprep.subr.mxu0 0.0
        %1621 = vmatpush2.msra.mxu0 0.0
        %1622 = vmatprep.subr.mxu0 0.0
        %1623 = vmatpush2.msra.mxu0 0.0
        %1624 = vmatprep.subr.mxu0 0.0
        %1625 = vmatpush2.msra.mxu0 0.0
        %1626 = vmatprep.subr.mxu0 0.0
        %1627 = vmatpush2.msra.mxu0 0.0
        %1628 = vmatprep.subr.mxu0 0.0
        %1629 = vmatpush2.msra.mxu0 0.0
        %1630 = vmatprep.subr.mxu0 0.0
        %1631 = vmatpush2.msra.mxu0 0.0
        %1632 = vmatprep.mubr.f32.mxu0 0.0
        %v1633 = vand.u32 %v496, 4294901760
        %v1634 = vsub.f32 %v496, %v1633
        %v1635 = vand.u32 %v1634, 4294901760
        %1636 = vmatmul.mubr.f32.gmra.mxu0 %v1635
        %v1637 = vpop.f32.mrf.mxu0
        %v1638 = vadd.f32 %v1532, %v1637
        %v1639 = vpop.f32.mrf.mxu0
        %v1640 = vadd.f32 %v1534, %v1639
        %1641 = vmatprep.mubr.f32.mxu0 0.0
        %v1642 = vand.u32 %v499, 4294901760
        %v1643 = vsub.f32 %v499, %v1642
        %v1644 = vand.u32 %v1643, 4294901760
        %1645 = vmatmul.mubr.f32.gmra.mxu0 %v1644
        %v1646 = vpop.f32.mrf.mxu0
        %v1647 = vadd.f32 %v1540, %v1646
        %v1648 = vpop.f32.mrf.mxu0
        %v1649 = vadd.f32 %v1542, %v1648
        %1650 = vmatprep.mubr.f32.mxu0 0.0
        %v1651 = vand.u32 %v502, 4294901760
        %v1652 = vsub.f32 %v502, %v1651
        %v1653 = vand.u32 %v1652, 4294901760
        %1654 = vmatmul.mubr.f32.gmra.mxu0 %v1653
        %v1655 = vpop.f32.mrf.mxu0
        %v1656 = vadd.f32 %v1548, %v1655
        %v1657 = vpop.f32.mrf.mxu0
        %v1658 = vadd.f32 %v1550, %v1657
        %1659 = vmatprep.mubr.f32.mxu0 0.0
        %v1660 = vand.u32 %v505, 4294901760
        %v1661 = vsub.f32 %v505, %v1660
        %v1662 = vand.u32 %v1661, 4294901760
        %1663 = vmatmul.mubr.f32.gmra.mxu0 %v1662
        %v1664 = vpop.f32.mrf.mxu0
        %v1665 = vadd.f32 %v1556, %v1664
        %v1666 = vpop.f32.mrf.mxu0
        %v1667 = vadd.f32 %v1558, %v1666
        %1668 = vdwg.mxu0
        %1669 = vmatprep.subr.mxu0 0.0
        %1670 = vmatpush1.msra.mxu0 0.0
        %1671 = vmatprep.subr.mxu0 0.0
        %1672 = vmatpush1.msra.mxu0 0.0
        %1673 = vmatprep.subr.mxu0 0.0
        %1674 = vmatpush1.msra.mxu0 0.0
        %1675 = vmatprep.subr.mxu0 0.0
        %1676 = vmatpush1.msra.mxu0 0.0
        %1677 = vmatprep.subr.mxu0 0.0
        %1678 = vmatpush1.msra.mxu0 0.0
        %1679 = vmatprep.subr.mxu0 0.0
        %1680 = vmatpush1.msra.mxu0 0.0
        %1681 = vmatprep.subr.mxu0 0.0
        %1682 = vmatpush1.msra.mxu0 0.0
        %1683 = vmatprep.subr.mxu0 0.0
        %1684 = vmatpush1.msra.mxu0 0.0
        %1685 = vmatprep.subr.mxu0 0.0
        %1686 = vmatpush1.msra.mxu0 0.0
        %1687 = vmatprep.subr.mxu0 0.0
        %1688 = vmatpush1.msra.mxu0 0.0
        %1689 = vmatprep.subr.mxu0 0.0
        %1690 = vmatpush1.msra.mxu0 0.0
        %1691 = vmatprep.subr.mxu0 0.0
        %1692 = vmatpush1.msra.mxu0 0.0
        %v1693 = vand.u32 %v469, 4294901760
        %v1694 = vsub.f32 %v469, %v1693
        %v1695 = vand.u32 %v1694, 4294901760
        %1696 = vmatprep.subr.mxu0 %v1695
        %v1697 = vand.u32 %v468, 4294901760
        %v1698 = vsub.f32 %v468, %v1697
        %v1699 = vand.u32 %v1698, 4294901760
        %1700 = vmatpush1.msra.mxu0 %v1699
        %v1701 = vand.u32 %v461, 4294901760
        %v1702 = vsub.f32 %v461, %v1701
        %v1703 = vand.u32 %v1702, 4294901760
        %1704 = vmatprep.subr.mxu0 %v1703
        %v1705 = vand.u32 %v460, 4294901760
        %v1706 = vsub.f32 %v460, %v1705
        %v1707 = vand.u32 %v1706, 4294901760
        %1708 = vmatpush1.msra.mxu0 %v1707
        %v1709 = vand.u32 %v453, 4294901760
        %v1710 = vsub.f32 %v453, %v1709
        %v1711 = vand.u32 %v1710, 4294901760
        %1712 = vmatprep.subr.mxu0 %v1711
        %v1713 = vand.u32 %v452, 4294901760
        %v1714 = vsub.f32 %v452, %v1713
        %v1715 = vand.u32 %v1714, 4294901760
        %1716 = vmatpush1.msra.mxu0 %v1715
        %v1717 = vand.u32 %v445, 4294901760
        %v1718 = vsub.f32 %v445, %v1717
        %v1719 = vand.u32 %v1718, 4294901760
        %1720 = vmatprep.subr.mxu0 %v1719
        %v1721 = vand.u32 %v444, 4294901760
        %v1722 = vsub.f32 %v444, %v1721
        %v1723 = vand.u32 %v1722, 4294901760
        %1724 = vmatpush1.msra.mxu0 %v1723
        %1725 = vmatprep.subr.mxu0 0.0
        %1726 = vmatpush2.msra.mxu0 0.0
        %1727 = vmatprep.subr.mxu0 0.0
        %1728 = vmatpush2.msra.mxu0 0.0
        %1729 = vmatprep.subr.mxu0 0.0
        %1730 = vmatpush2.msra.mxu0 0.0
        %1731 = vmatprep.subr.mxu0 0.0
        %1732 = vmatpush2.msra.mxu0 0.0
        %1733 = vmatprep.subr.mxu0 0.0
        %1734 = vmatpush2.msra.mxu0 0.0
        %1735 = vmatprep.subr.mxu0 0.0
        %1736 = vmatpush2.msra.mxu0 0.0
        %1737 = vmatprep.subr.mxu0 0.0
        %1738 = vmatpush2.msra.mxu0 0.0
        %1739 = vmatprep.subr.mxu0 0.0
        %1740 = vmatpush2.msra.mxu0 0.0
        %1741 = vmatprep.subr.mxu0 0.0
        %1742 = vmatpush2.msra.mxu0 0.0
        %1743 = vmatprep.subr.mxu0 0.0
        %1744 = vmatpush2.msra.mxu0 0.0
        %1745 = vmatprep.subr.mxu0 0.0
        %1746 = vmatpush2.msra.mxu0 0.0
        %1747 = vmatprep.subr.mxu0 0.0
        %1748 = vmatpush2.msra.mxu0 0.0
        %1749 = vmatprep.subr.mxu0 0.0
        %1750 = vmatpush2.msra.mxu0 0.0
        %1751 = vmatprep.subr.mxu0 0.0
        %1752 = vmatpush2.msra.mxu0 0.0
        %1753 = vmatprep.subr.mxu0 0.0
        %1754 = vmatpush2.msra.mxu0 0.0
        %1755 = vmatprep.subr.mxu0 0.0
        %1756 = vmatpush2.msra.mxu0 0.0
        %1757 = vmatprep.mubr.f32.mxu0 0.0
        %v1758 = vand.u32 %v496, 4294901760
        %1759 = vmatmul.mubr.f32.gmra.mxu0 %v1758
        %v1760 = vpop.f32.mrf.mxu0
        %v1761 = vadd.f32 %v1638, %v1760
        %v1762 = vpop.f32.mrf.mxu0
        %v1763 = vadd.f32 %v1640, %v1762
        %1764 = vmatprep.mubr.f32.mxu0 0.0
        %v1765 = vand.u32 %v499, 4294901760
        %1766 = vmatmul.mubr.f32.gmra.mxu0 %v1765
        %v1767 = vpop.f32.mrf.mxu0
        %v1768 = vadd.f32 %v1647, %v1767
        %v1769 = vpop.f32.mrf.mxu0
        %v1770 = vadd.f32 %v1649, %v1769
        %1771 = vmatprep.mubr.f32.mxu0 0.0
        %v1772 = vand.u32 %v502, 4294901760
        %1773 = vmatmul.mubr.f32.gmra.mxu0 %v1772
        %v1774 = vpop.f32.mrf.mxu0
        %v1775 = vadd.f32 %v1656, %v1774
        %v1776 = vpop.f32.mrf.mxu0
        %v1777 = vadd.f32 %v1658, %v1776
        %1778 = vmatprep.mubr.f32.mxu0 0.0
        %v1779 = vand.u32 %v505, 4294901760
        %1780 = vmatmul.mubr.f32.gmra.mxu0 %v1779
        %v1781 = vpop.f32.mrf.mxu0
        %v1782 = vadd.f32 %v1665, %v1781
        %v1783 = vpop.f32.mrf.mxu0
        %v1784 = vadd.f32 %v1667, %v1783
        %1785 = vdwg.mxu0
        %1786 = vmatprep.subr.mxu0 0.0
        %1787 = vmatpush1.msra.mxu0 0.0
        %1788 = vmatprep.subr.mxu0 0.0
        %1789 = vmatpush1.msra.mxu0 0.0
        %1790 = vmatprep.subr.mxu0 0.0
        %1791 = vmatpush1.msra.mxu0 0.0
        %1792 = vmatprep.subr.mxu0 0.0
        %1793 = vmatpush1.msra.mxu0 0.0
        %1794 = vmatprep.subr.mxu0 0.0
        %1795 = vmatpush1.msra.mxu0 0.0
        %1796 = vmatprep.subr.mxu0 0.0
        %1797 = vmatpush1.msra.mxu0 0.0
        %1798 = vmatprep.subr.mxu0 0.0
        %1799 = vmatpush1.msra.mxu0 0.0
        %1800 = vmatprep.subr.mxu0 0.0
        %1801 = vmatpush1.msra.mxu0 0.0
        %1802 = vmatprep.subr.mxu0 0.0
        %1803 = vmatpush1.msra.mxu0 0.0
        %1804 = vmatprep.subr.mxu0 0.0
        %1805 = vmatpush1.msra.mxu0 0.0
        %1806 = vmatprep.subr.mxu0 0.0
        %1807 = vmatpush1.msra.mxu0 0.0
        %1808 = vmatprep.subr.mxu0 0.0
        %1809 = vmatpush1.msra.mxu0 0.0
        %v1810 = vand.u32 %v469, 4294901760
        %1811 = vmatprep.subr.mxu0 %v1810
        %v1812 = vand.u32 %v468, 4294901760
        %1813 = vmatpush1.msra.mxu0 %v1812
        %v1814 = vand.u32 %v461, 4294901760
        %1815 = vmatprep.subr.mxu0 %v1814
        %v1816 = vand.u32 %v460, 4294901760
        %1817 = vmatpush1.msra.mxu0 %v1816
        %v1818 = vand.u32 %v453, 4294901760
        %1819 = vmatprep.subr.mxu0 %v1818
        %v1820 = vand.u32 %v452, 4294901760
        %1821 = vmatpush1.msra.mxu0 %v1820
        %v1822 = vand.u32 %v445, 4294901760
        %1823 = vmatprep.subr.mxu0 %v1822
        %v1824 = vand.u32 %v444, 4294901760
        %1825 = vmatpush1.msra.mxu0 %v1824
        %1826 = vmatprep.subr.mxu0 0.0
        %1827 = vmatpush2.msra.mxu0 0.0
        %1828 = vmatprep.subr.mxu0 0.0
        %1829 = vmatpush2.msra.mxu0 0.0
        %1830 = vmatprep.subr.mxu0 0.0
        %1831 = vmatpush2.msra.mxu0 0.0
        %1832 = vmatprep.subr.mxu0 0.0
        %1833 = vmatpush2.msra.mxu0 0.0
        %1834 = vmatprep.subr.mxu0 0.0
        %1835 = vmatpush2.msra.mxu0 0.0
        %1836 = vmatprep.subr.mxu0 0.0
        %1837 = vmatpush2.msra.mxu0 0.0
        %1838 = vmatprep.subr.mxu0 0.0
        %1839 = vmatpush2.msra.mxu0 0.0
        %1840 = vmatprep.subr.mxu0 0.0
        %1841 = vmatpush2.msra.mxu0 0.0
        %1842 = vmatprep.subr.mxu0 0.0
        %1843 = vmatpush2.msra.mxu0 0.0
        %1844 = vmatprep.subr.mxu0 0.0
        %1845 = vmatpush2.msra.mxu0 0.0
        %1846 = vmatprep.subr.mxu0 0.0
        %1847 = vmatpush2.msra.mxu0 0.0
        %1848 = vmatprep.subr.mxu0 0.0
        %1849 = vmatpush2.msra.mxu0 0.0
        %1850 = vmatprep.subr.mxu0 0.0
        %1851 = vmatpush2.msra.mxu0 0.0
        %1852 = vmatprep.subr.mxu0 0.0
        %1853 = vmatpush2.msra.mxu0 0.0
        %1854 = vmatprep.subr.mxu0 0.0
        %1855 = vmatpush2.msra.mxu0 0.0
        %1856 = vmatprep.subr.mxu0 0.0
        %1857 = vmatpush2.msra.mxu0 0.0
        %1858 = vmatprep.mubr.f32.mxu0 0.0
        %v1859 = vand.u32 %v496, 4294901760
        %1860 = vmatmul.mubr.f32.gmra.mxu0 %v1859
        %v1861 = vpop.f32.mrf.mxu0
        %v1862 = vadd.f32 %v1761, %v1861
        %v1863 = vpop.f32.mrf.mxu0
        %v1864 = vadd.f32 %v1763, %v1863
        %1865 = vmatprep.mubr.f32.mxu0 0.0
        %v1866 = vand.u32 %v499, 4294901760
        %1867 = vmatmul.mubr.f32.gmra.mxu0 %v1866
        %v1868 = vpop.f32.mrf.mxu0
        %v1869 = vadd.f32 %v1768, %v1868
        %v1870 = vpop.f32.mrf.mxu0
        %v1871 = vadd.f32 %v1770, %v1870
        %1872 = vmatprep.mubr.f32.mxu0 0.0
        %v1873 = vand.u32 %v502, 4294901760
        %1874 = vmatmul.mubr.f32.gmra.mxu0 %v1873
        %v1875 = vpop.f32.mrf.mxu0
        %v1876 = vadd.f32 %v1775, %v1875
        %v1877 = vpop.f32.mrf.mxu0
        %v1878 = vadd.f32 %v1777, %v1877
        %1879 = vmatprep.mubr.f32.mxu0 0.0
        %v1880 = vand.u32 %v505, 4294901760
        %1881 = vmatmul.mubr.f32.gmra.mxu0 %v1880
        %v1882 = vpop.f32.mrf.mxu0
        %v1883 = vadd.f32 %v1782, %v1882
        %v1884 = vpop.f32.mrf.mxu0
        %v1885 = vadd.f32 %v1784, %v1884
        %1886 = vdwg.mxu0
        %1887 = vmatprep.subr.mxu0 0.0
        %1888 = vmatpush1.msra.mxu0 0.0
        %1889 = vmatprep.subr.mxu0 0.0
        %1890 = vmatpush1.msra.mxu0 0.0
        %1891 = vmatprep.subr.mxu0 0.0
        %1892 = vmatpush1.msra.mxu0 0.0
        %1893 = vmatprep.subr.mxu0 0.0
        %1894 = vmatpush1.msra.mxu0 0.0
        %1895 = vmatprep.subr.mxu0 0.0
        %1896 = vmatpush1.msra.mxu0 0.0
        %1897 = vmatprep.subr.mxu0 0.0
        %1898 = vmatpush1.msra.mxu0 0.0
        %1899 = vmatprep.subr.mxu0 0.0
        %1900 = vmatpush1.msra.mxu0 0.0
        %1901 = vmatprep.subr.mxu0 0.0
        %1902 = vmatpush1.msra.mxu0 0.0
        %1903 = vmatprep.subr.mxu0 0.0
        %1904 = vmatpush1.msra.mxu0 0.0
        %1905 = vmatprep.subr.mxu0 0.0
        %1906 = vmatpush1.msra.mxu0 0.0
        %1907 = vmatprep.subr.mxu0 0.0
        %1908 = vmatpush1.msra.mxu0 0.0
        %1909 = vmatprep.subr.mxu0 0.0
        %1910 = vmatpush1.msra.mxu0 0.0
        %v1911 = vand.u32 %v471, 4294901760
        %1912 = vmatprep.subr.mxu0 %v1911
        %v1913 = vand.u32 %v470, 4294901760
        %1914 = vmatpush1.msra.mxu0 %v1913
        %v1915 = vand.u32 %v463, 4294901760
        %1916 = vmatprep.subr.mxu0 %v1915
        %v1917 = vand.u32 %v462, 4294901760
        %1918 = vmatpush1.msra.mxu0 %v1917
        %v1919 = vand.u32 %v455, 4294901760
        %1920 = vmatprep.subr.mxu0 %v1919
        %v1921 = vand.u32 %v454, 4294901760
        %1922 = vmatpush1.msra.mxu0 %v1921
        %v1923 = vand.u32 %v447, 4294901760
        %1924 = vmatprep.subr.mxu0 %v1923
        %v1925 = vand.u32 %v446, 4294901760
        %1926 = vmatpush1.msra.mxu0 %v1925
        %1927 = vmatprep.subr.mxu0 0.0
        %1928 = vmatpush2.msra.mxu0 0.0
        %1929 = vmatprep.subr.mxu0 0.0
        %1930 = vmatpush2.msra.mxu0 0.0
        %1931 = vmatprep.subr.mxu0 0.0
        %1932 = vmatpush2.msra.mxu0 0.0
        %1933 = vmatprep.subr.mxu0 0.0
        %1934 = vmatpush2.msra.mxu0 0.0
        %1935 = vmatprep.subr.mxu0 0.0
        %1936 = vmatpush2.msra.mxu0 0.0
        %1937 = vmatprep.subr.mxu0 0.0
        %1938 = vmatpush2.msra.mxu0 0.0
        %1939 = vmatprep.subr.mxu0 0.0
        %1940 = vmatpush2.msra.mxu0 0.0
        %1941 = vmatprep.subr.mxu0 0.0
        %1942 = vmatpush2.msra.mxu0 0.0
        %1943 = vmatprep.subr.mxu0 0.0
        %1944 = vmatpush2.msra.mxu0 0.0
        %1945 = vmatprep.subr.mxu0 0.0
        %1946 = vmatpush2.msra.mxu0 0.0
        %1947 = vmatprep.subr.mxu0 0.0
        %1948 = vmatpush2.msra.mxu0 0.0
        %1949 = vmatprep.subr.mxu0 0.0
        %1950 = vmatpush2.msra.mxu0 0.0
        %1951 = vmatprep.subr.mxu0 0.0
        %1952 = vmatpush2.msra.mxu0 0.0
        %1953 = vmatprep.subr.mxu0 0.0
        %1954 = vmatpush2.msra.mxu0 0.0
        %1955 = vmatprep.subr.mxu0 0.0
        %1956 = vmatpush2.msra.mxu0 0.0
        %1957 = vmatprep.subr.mxu0 0.0
        %1958 = vmatpush2.msra.mxu0 0.0
        %1959 = vmatprep.mubr.f32.mxu0 0.0
        %v1960 = vand.u32 %v496, 4294901760
        %v1961 = vsub.f32 %v496, %v1960
        %v1962 = vand.u32 %v1961, 4294901760
        %v1963 = vsub.f32 %v1961, %v1962
        %v1964 = vand.u32 %v1963, 4294901760
        %1965 = vmatmul.mubr.f32.gmra.mxu0 %v1964
        %v1966 = vpop.f32.mrf.mxu0
        %v1967 = vadd.f32 %v477, %v1966
        %v1968 = vpop.f32.mrf.mxu0
        %v1969 = vadd.f32 %v477, %v1968
        %1970 = vmatprep.mubr.f32.mxu0 0.0
        %v1971 = vand.u32 %v499, 4294901760
        %v1972 = vsub.f32 %v499, %v1971
        %v1973 = vand.u32 %v1972, 4294901760
        %v1974 = vsub.f32 %v1972, %v1973
        %v1975 = vand.u32 %v1974, 4294901760
        %1976 = vmatmul.mubr.f32.gmra.mxu0 %v1975
        %v1977 = vpop.f32.mrf.mxu0
        %v1978 = vadd.f32 %v482, %v1977
        %v1979 = vpop.f32.mrf.mxu0
        %v1980 = vadd.f32 %v482, %v1979
        %1981 = vmatprep.mubr.f32.mxu0 0.0
        %v1982 = vand.u32 %v502, 4294901760
        %v1983 = vsub.f32 %v502, %v1982
        %v1984 = vand.u32 %v1983, 4294901760
        %v1985 = vsub.f32 %v1983, %v1984
        %v1986 = vand.u32 %v1985, 4294901760
        %1987 = vmatmul.mubr.f32.gmra.mxu0 %v1986
        %v1988 = vpop.f32.mrf.mxu0
        %v1989 = vadd.f32 %v487, %v1988
        %v1990 = vpop.f32.mrf.mxu0
        %v1991 = vadd.f32 %v487, %v1990
        %1992 = vmatprep.mubr.f32.mxu0 0.0
        %v1993 = vand.u32 %v505, 4294901760
        %v1994 = vsub.f32 %v505, %v1993
        %v1995 = vand.u32 %v1994, 4294901760
        %v1996 = vsub.f32 %v1994, %v1995
        %v1997 = vand.u32 %v1996, 4294901760
        %1998 = vmatmul.mubr.f32.gmra.mxu0 %v1997
        %v1999 = vpop.f32.mrf.mxu0
        %v2000 = vadd.f32 %v492, %v1999
        %v2001 = vpop.f32.mrf.mxu0
        %v2002 = vadd.f32 %v492, %v2001
        %2003 = vdwg.mxu0
        %2004 = vmatprep.subr.mxu0 0.0
        %2005 = vmatpush1.msra.mxu0 0.0
        %2006 = vmatprep.subr.mxu0 0.0
        %2007 = vmatpush1.msra.mxu0 0.0
        %2008 = vmatprep.subr.mxu0 0.0
        %2009 = vmatpush1.msra.mxu0 0.0
        %2010 = vmatprep.subr.mxu0 0.0
        %2011 = vmatpush1.msra.mxu0 0.0
        %2012 = vmatprep.subr.mxu0 0.0
        %2013 = vmatpush1.msra.mxu0 0.0
        %2014 = vmatprep.subr.mxu0 0.0
        %2015 = vmatpush1.msra.mxu0 0.0
        %2016 = vmatprep.subr.mxu0 0.0
        %2017 = vmatpush1.msra.mxu0 0.0
        %2018 = vmatprep.subr.mxu0 0.0
        %2019 = vmatpush1.msra.mxu0 0.0
        %2020 = vmatprep.subr.mxu0 0.0
        %2021 = vmatpush1.msra.mxu0 0.0
        %2022 = vmatprep.subr.mxu0 0.0
        %2023 = vmatpush1.msra.mxu0 0.0
        %2024 = vmatprep.subr.mxu0 0.0
        %2025 = vmatpush1.msra.mxu0 0.0
        %2026 = vmatprep.subr.mxu0 0.0
        %2027 = vmatpush1.msra.mxu0 0.0
        %v2028 = vand.u32 %v471, 4294901760
        %v2029 = vsub.f32 %v471, %v2028
        %v2030 = vand.u32 %v2029, 4294901760
        %v2031 = vsub.f32 %v2029, %v2030
        %v2032 = vand.u32 %v2031, 4294901760
        %2033 = vmatprep.subr.mxu0 %v2032
        %v2034 = vand.u32 %v470, 4294901760
        %v2035 = vsub.f32 %v470, %v2034
        %v2036 = vand.u32 %v2035, 4294901760
        %v2037 = vsub.f32 %v2035, %v2036
        %v2038 = vand.u32 %v2037, 4294901760
        %2039 = vmatpush1.msra.mxu0 %v2038
        %v2040 = vand.u32 %v463, 4294901760
        %v2041 = vsub.f32 %v463, %v2040
        %v2042 = vand.u32 %v2041, 4294901760
        %v2043 = vsub.f32 %v2041, %v2042
        %v2044 = vand.u32 %v2043, 4294901760
        %2045 = vmatprep.subr.mxu0 %v2044
        %v2046 = vand.u32 %v462, 4294901760
        %v2047 = vsub.f32 %v462, %v2046
        %v2048 = vand.u32 %v2047, 4294901760
        %v2049 = vsub.f32 %v2047, %v2048
        %v2050 = vand.u32 %v2049, 4294901760
        %2051 = vmatpush1.msra.mxu0 %v2050
        %v2052 = vand.u32 %v455, 4294901760
        %v2053 = vsub.f32 %v455, %v2052
        %v2054 = vand.u32 %v2053, 4294901760
        %v2055 = vsub.f32 %v2053, %v2054
        %v2056 = vand.u32 %v2055, 4294901760
        %2057 = vmatprep.subr.mxu0 %v2056
        %v2058 = vand.u32 %v454, 4294901760
        %v2059 = vsub.f32 %v454, %v2058
        %v2060 = vand.u32 %v2059, 4294901760
        %v2061 = vsub.f32 %v2059, %v2060
        %v2062 = vand.u32 %v2061, 4294901760
        %2063 = vmatpush1.msra.mxu0 %v2062
        %v2064 = vand.u32 %v447, 4294901760
        %v2065 = vsub.f32 %v447, %v2064
        %v2066 = vand.u32 %v2065, 4294901760
        %v2067 = vsub.f32 %v2065, %v2066
        %v2068 = vand.u32 %v2067, 4294901760
        %2069 = vmatprep.subr.mxu0 %v2068
        %v2070 = vand.u32 %v446, 4294901760
        %v2071 = vsub.f32 %v446, %v2070
        %v2072 = vand.u32 %v2071, 4294901760
        %v2073 = vsub.f32 %v2071, %v2072
        %v2074 = vand.u32 %v2073, 4294901760
        %2075 = vmatpush1.msra.mxu0 %v2074
        %2076 = vmatprep.subr.mxu0 0.0
        %2077 = vmatpush2.msra.mxu0 0.0
        %2078 = vmatprep.subr.mxu0 0.0
        %2079 = vmatpush2.msra.mxu0 0.0
        %2080 = vmatprep.subr.mxu0 0.0
        %2081 = vmatpush2.msra.mxu0 0.0
        %2082 = vmatprep.subr.mxu0 0.0
        %2083 = vmatpush2.msra.mxu0 0.0
        %2084 = vmatprep.subr.mxu0 0.0
        %2085 = vmatpush2.msra.mxu0 0.0
        %2086 = vmatprep.subr.mxu0 0.0
        %2087 = vmatpush2.msra.mxu0 0.0
        %2088 = vmatprep.subr.mxu0 0.0
        %2089 = vmatpush2.msra.mxu0 0.0
        %2090 = vmatprep.subr.mxu0 0.0
        %2091 = vmatpush2.msra.mxu0 0.0
        %2092 = vmatprep.subr.mxu0 0.0
        %2093 = vmatpush2.msra.mxu0 0.0
        %2094 = vmatprep.subr.mxu0 0.0
        %2095 = vmatpush2.msra.mxu0 0.0
        %2096 = vmatprep.subr.mxu0 0.0
        %2097 = vmatpush2.msra.mxu0 0.0
        %2098 = vmatprep.subr.mxu0 0.0
        %2099 = vmatpush2.msra.mxu0 0.0
        %2100 = vmatprep.subr.mxu0 0.0
        %2101 = vmatpush2.msra.mxu0 0.0
        %2102 = vmatprep.subr.mxu0 0.0
        %2103 = vmatpush2.msra.mxu0 0.0
        %2104 = vmatprep.subr.mxu0 0.0
        %2105 = vmatpush2.msra.mxu0 0.0
        %2106 = vmatprep.subr.mxu0 0.0
        %2107 = vmatpush2.msra.mxu0 0.0
        %2108 = vmatprep.mubr.f32.mxu0 0.0
        %v2109 = vand.u32 %v496, 4294901760
        %2110 = vmatmul.mubr.f32.gmra.mxu0 %v2109
        %v2111 = vpop.f32.mrf.mxu0
        %v2112 = vadd.f32 %v1967, %v2111
        %v2113 = vpop.f32.mrf.mxu0
        %v2114 = vadd.f32 %v1969, %v2113
        %2115 = vmatprep.mubr.f32.mxu0 0.0
        %v2116 = vand.u32 %v499, 4294901760
        %2117 = vmatmul.mubr.f32.gmra.mxu0 %v2116
        %v2118 = vpop.f32.mrf.mxu0
        %v2119 = vadd.f32 %v1978, %v2118
        %v2120 = vpop.f32.mrf.mxu0
        %v2121 = vadd.f32 %v1980, %v2120
        %2122 = vmatprep.mubr.f32.mxu0 0.0
        %v2123 = vand.u32 %v502, 4294901760
        %2124 = vmatmul.mubr.f32.gmra.mxu0 %v2123
        %v2125 = vpop.f32.mrf.mxu0
        %v2126 = vadd.f32 %v1989, %v2125
        %v2127 = vpop.f32.mrf.mxu0
        %v2128 = vadd.f32 %v1991, %v2127
        %2129 = vmatprep.mubr.f32.mxu0 0.0
        %v2130 = vand.u32 %v505, 4294901760
        %2131 = vmatmul.mubr.f32.gmra.mxu0 %v2130
        %v2132 = vpop.f32.mrf.mxu0
        %v2133 = vadd.f32 %v2000, %v2132
        %v2134 = vpop.f32.mrf.mxu0
        %v2135 = vadd.f32 %v2002, %v2134
        %2136 = vdwg.mxu0
        %2137 = vmatprep.subr.mxu0 0.0
        %2138 = vmatpush1.msra.mxu0 0.0
        %2139 = vmatprep.subr.mxu0 0.0
        %2140 = vmatpush1.msra.mxu0 0.0
        %2141 = vmatprep.subr.mxu0 0.0
        %2142 = vmatpush1.msra.mxu0 0.0
        %2143 = vmatprep.subr.mxu0 0.0
        %2144 = vmatpush1.msra.mxu0 0.0
        %2145 = vmatprep.subr.mxu0 0.0
        %2146 = vmatpush1.msra.mxu0 0.0
        %2147 = vmatprep.subr.mxu0 0.0
        %2148 = vmatpush1.msra.mxu0 0.0
        %2149 = vmatprep.subr.mxu0 0.0
        %2150 = vmatpush1.msra.mxu0 0.0
        %2151 = vmatprep.subr.mxu0 0.0
        %2152 = vmatpush1.msra.mxu0 0.0
        %2153 = vmatprep.subr.mxu0 0.0
        %2154 = vmatpush1.msra.mxu0 0.0
        %2155 = vmatprep.subr.mxu0 0.0
        %2156 = vmatpush1.msra.mxu0 0.0
        %2157 = vmatprep.subr.mxu0 0.0
        %2158 = vmatpush1.msra.mxu0 0.0
        %2159 = vmatprep.subr.mxu0 0.0
        %2160 = vmatpush1.msra.mxu0 0.0
        %v2161 = vand.u32 %v471, 4294901760
        %v2162 = vsub.f32 %v471, %v2161
        %2163 = vmatprep.subr.mxu0 %v2162
        %v2164 = vand.u32 %v470, 4294901760
        %v2165 = vsub.f32 %v470, %v2164
        %2166 = vmatpush1.msra.mxu0 %v2165
        %v2167 = vand.u32 %v463, 4294901760
        %v2168 = vsub.f32 %v463, %v2167
        %2169 = vmatprep.subr.mxu0 %v2168
        %v2170 = vand.u32 %v462, 4294901760
        %v2171 = vsub.f32 %v462, %v2170
        %2172 = vmatpush1.msra.mxu0 %v2171
        %v2173 = vand.u32 %v455, 4294901760
        %v2174 = vsub.f32 %v455, %v2173
        %2175 = vmatprep.subr.mxu0 %v2174
        %v2176 = vand.u32 %v454, 4294901760
        %v2177 = vsub.f32 %v454, %v2176
        %2178 = vmatpush1.msra.mxu0 %v2177
        %v2179 = vand.u32 %v447, 4294901760
        %v2180 = vsub.f32 %v447, %v2179
        %2181 = vmatprep.subr.mxu0 %v2180
        %v2182 = vand.u32 %v446, 4294901760
        %v2183 = vsub.f32 %v446, %v2182
        %2184 = vmatpush1.msra.mxu0 %v2183
        %2185 = vmatprep.subr.mxu0 0.0
        %2186 = vmatpush2.msra.mxu0 0.0
        %2187 = vmatprep.subr.mxu0 0.0
        %2188 = vmatpush2.msra.mxu0 0.0
        %2189 = vmatprep.subr.mxu0 0.0
        %2190 = vmatpush2.msra.mxu0 0.0
        %2191 = vmatprep.subr.mxu0 0.0
        %2192 = vmatpush2.msra.mxu0 0.0
        %2193 = vmatprep.subr.mxu0 0.0
        %2194 = vmatpush2.msra.mxu0 0.0
        %2195 = vmatprep.subr.mxu0 0.0
        %2196 = vmatpush2.msra.mxu0 0.0
        %2197 = vmatprep.subr.mxu0 0.0
        %2198 = vmatpush2.msra.mxu0 0.0
        %2199 = vmatprep.subr.mxu0 0.0
        %2200 = vmatpush2.msra.mxu0 0.0
        %2201 = vmatprep.subr.mxu0 0.0
        %2202 = vmatpush2.msra.mxu0 0.0
        %2203 = vmatprep.subr.mxu0 0.0
        %2204 = vmatpush2.msra.mxu0 0.0
        %2205 = vmatprep.subr.mxu0 0.0
        %2206 = vmatpush2.msra.mxu0 0.0
        %2207 = vmatprep.subr.mxu0 0.0
        %2208 = vmatpush2.msra.mxu0 0.0
        %2209 = vmatprep.subr.mxu0 0.0
        %2210 = vmatpush2.msra.mxu0 0.0
        %2211 = vmatprep.subr.mxu0 0.0
        %2212 = vmatpush2.msra.mxu0 0.0
        %2213 = vmatprep.subr.mxu0 0.0
        %2214 = vmatpush2.msra.mxu0 0.0
        %2215 = vmatprep.subr.mxu0 0.0
        %2216 = vmatpush2.msra.mxu0 0.0
        %2217 = vmatprep.mubr.f32.mxu0 0.0
        %v2218 = vand.u32 %v496, 4294901760
        %v2219 = vsub.f32 %v496, %v2218
        %2220 = vmatmul.mubr.f32.gmra.mxu0 %v2219
        %v2221 = vpop.f32.mrf.mxu0
        %v2222 = vadd.f32 %v2112, %v2221
        %v2223 = vpop.f32.mrf.mxu0
        %v2224 = vadd.f32 %v2114, %v2223
        %2225 = vmatprep.mubr.f32.mxu0 0.0
        %v2226 = vand.u32 %v499, 4294901760
        %v2227 = vsub.f32 %v499, %v2226
        %2228 = vmatmul.mubr.f32.gmra.mxu0 %v2227
        %v2229 = vpop.f32.mrf.mxu0
        %v2230 = vadd.f32 %v2119, %v2229
        %v2231 = vpop.f32.mrf.mxu0
        %v2232 = vadd.f32 %v2121, %v2231
        %2233 = vmatprep.mubr.f32.mxu0 0.0
        %v2234 = vand.u32 %v502, 4294901760
        %v2235 = vsub.f32 %v502, %v2234
        %2236 = vmatmul.mubr.f32.gmra.mxu0 %v2235
        %v2237 = vpop.f32.mrf.mxu0
        %v2238 = vadd.f32 %v2126, %v2237
        %v2239 = vpop.f32.mrf.mxu0
        %v2240 = vadd.f32 %v2128, %v2239
        %2241 = vmatprep.mubr.f32.mxu0 0.0
        %v2242 = vand.u32 %v505, 4294901760
        %v2243 = vsub.f32 %v505, %v2242
        %2244 = vmatmul.mubr.f32.gmra.mxu0 %v2243
        %v2245 = vpop.f32.mrf.mxu0
        %v2246 = vadd.f32 %v2133, %v2245
        %v2247 = vpop.f32.mrf.mxu0
        %v2248 = vadd.f32 %v2135, %v2247
        %2249 = vdwg.mxu0
        %2250 = vmatprep.subr.mxu0 0.0
        %2251 = vmatpush1.msra.mxu0 0.0
        %2252 = vmatprep.subr.mxu0 0.0
        %2253 = vmatpush1.msra.mxu0 0.0
        %2254 = vmatprep.subr.mxu0 0.0
        %2255 = vmatpush1.msra.mxu0 0.0
        %2256 = vmatprep.subr.mxu0 0.0
        %2257 = vmatpush1.msra.mxu0 0.0
        %2258 = vmatprep.subr.mxu0 0.0
        %2259 = vmatpush1.msra.mxu0 0.0
        %2260 = vmatprep.subr.mxu0 0.0
        %2261 = vmatpush1.msra.mxu0 0.0
        %2262 = vmatprep.subr.mxu0 0.0
        %2263 = vmatpush1.msra.mxu0 0.0
        %2264 = vmatprep.subr.mxu0 0.0
        %2265 = vmatpush1.msra.mxu0 0.0
        %2266 = vmatprep.subr.mxu0 0.0
        %2267 = vmatpush1.msra.mxu0 0.0
        %2268 = vmatprep.subr.mxu0 0.0
        %2269 = vmatpush1.msra.mxu0 0.0
        %2270 = vmatprep.subr.mxu0 0.0
        %2271 = vmatpush1.msra.mxu0 0.0
        %2272 = vmatprep.subr.mxu0 0.0
        %2273 = vmatpush1.msra.mxu0 0.0
        %v2274 = vand.u32 %v471, 4294901760
        %2275 = vmatprep.subr.mxu0 %v2274
        %v2276 = vand.u32 %v470, 4294901760
        %2277 = vmatpush1.msra.mxu0 %v2276
        %v2278 = vand.u32 %v463, 4294901760
        %2279 = vmatprep.subr.mxu0 %v2278
        %v2280 = vand.u32 %v462, 4294901760
        %2281 = vmatpush1.msra.mxu0 %v2280
        %v2282 = vand.u32 %v455, 4294901760
        %2283 = vmatprep.subr.mxu0 %v2282
        %v2284 = vand.u32 %v454, 4294901760
        %2285 = vmatpush1.msra.mxu0 %v2284
        %v2286 = vand.u32 %v447, 4294901760
        %2287 = vmatprep.subr.mxu0 %v2286
        %v2288 = vand.u32 %v446, 4294901760
        %2289 = vmatpush1.msra.mxu0 %v2288
        %2290 = vmatprep.subr.mxu0 0.0
        %2291 = vmatpush2.msra.mxu0 0.0
        %2292 = vmatprep.subr.mxu0 0.0
        %2293 = vmatpush2.msra.mxu0 0.0
        %2294 = vmatprep.subr.mxu0 0.0
        %2295 = vmatpush2.msra.mxu0 0.0
        %2296 = vmatprep.subr.mxu0 0.0
        %2297 = vmatpush2.msra.mxu0 0.0
        %2298 = vmatprep.subr.mxu0 0.0
        %2299 = vmatpush2.msra.mxu0 0.0
        %2300 = vmatprep.subr.mxu0 0.0
        %2301 = vmatpush2.msra.mxu0 0.0
        %2302 = vmatprep.subr.mxu0 0.0
        %2303 = vmatpush2.msra.mxu0 0.0
        %2304 = vmatprep.subr.mxu0 0.0
        %2305 = vmatpush2.msra.mxu0 0.0
        %2306 = vmatprep.subr.mxu0 0.0
        %2307 = vmatpush2.msra.mxu0 0.0
        %2308 = vmatprep.subr.mxu0 0.0
        %2309 = vmatpush2.msra.mxu0 0.0
        %2310 = vmatprep.subr.mxu0 0.0
        %2311 = vmatpush2.msra.mxu0 0.0
        %2312 = vmatprep.subr.mxu0 0.0
        %2313 = vmatpush2.msra.mxu0 0.0
        %2314 = vmatprep.subr.mxu0 0.0
        %2315 = vmatpush2.msra.mxu0 0.0
        %2316 = vmatprep.subr.mxu0 0.0
        %2317 = vmatpush2.msra.mxu0 0.0
        %2318 = vmatprep.subr.mxu0 0.0
        %2319 = vmatpush2.msra.mxu0 0.0
        %2320 = vmatprep.subr.mxu0 0.0
        %2321 = vmatpush2.msra.mxu0 0.0
        %2322 = vmatprep.mubr.f32.mxu0 0.0
        %v2323 = vand.u32 %v496, 4294901760
        %v2324 = vsub.f32 %v496, %v2323
        %v2325 = vand.u32 %v2324, 4294901760
        %2326 = vmatmul.mubr.f32.gmra.mxu0 %v2325
        %v2327 = vpop.f32.mrf.mxu0
        %v2328 = vadd.f32 %v2222, %v2327
        %v2329 = vpop.f32.mrf.mxu0
        %v2330 = vadd.f32 %v2224, %v2329
        %2331 = vmatprep.mubr.f32.mxu0 0.0
        %v2332 = vand.u32 %v499, 4294901760
        %v2333 = vsub.f32 %v499, %v2332
        %v2334 = vand.u32 %v2333, 4294901760
        %2335 = vmatmul.mubr.f32.gmra.mxu0 %v2334
        %v2336 = vpop.f32.mrf.mxu0
        %v2337 = vadd.f32 %v2230, %v2336
        %v2338 = vpop.f32.mrf.mxu0
        %v2339 = vadd.f32 %v2232, %v2338
        %2340 = vmatprep.mubr.f32.mxu0 0.0
        %v2341 = vand.u32 %v502, 4294901760
        %v2342 = vsub.f32 %v502, %v2341
        %v2343 = vand.u32 %v2342, 4294901760
        %2344 = vmatmul.mubr.f32.gmra.mxu0 %v2343
        %v2345 = vpop.f32.mrf.mxu0
        %v2346 = vadd.f32 %v2238, %v2345
        %v2347 = vpop.f32.mrf.mxu0
        %v2348 = vadd.f32 %v2240, %v2347
        %2349 = vmatprep.mubr.f32.mxu0 0.0
        %v2350 = vand.u32 %v505, 4294901760
        %v2351 = vsub.f32 %v505, %v2350
        %v2352 = vand.u32 %v2351, 4294901760
        %2353 = vmatmul.mubr.f32.gmra.mxu0 %v2352
        %v2354 = vpop.f32.mrf.mxu0
        %v2355 = vadd.f32 %v2246, %v2354
        %v2356 = vpop.f32.mrf.mxu0
        %v2357 = vadd.f32 %v2248, %v2356
        %2358 = vdwg.mxu0
        %2359 = vmatprep.subr.mxu0 0.0
        %2360 = vmatpush1.msra.mxu0 0.0
        %2361 = vmatprep.subr.mxu0 0.0
        %2362 = vmatpush1.msra.mxu0 0.0
        %2363 = vmatprep.subr.mxu0 0.0
        %2364 = vmatpush1.msra.mxu0 0.0
        %2365 = vmatprep.subr.mxu0 0.0
        %2366 = vmatpush1.msra.mxu0 0.0
        %2367 = vmatprep.subr.mxu0 0.0
        %2368 = vmatpush1.msra.mxu0 0.0
        %2369 = vmatprep.subr.mxu0 0.0
        %2370 = vmatpush1.msra.mxu0 0.0
        %2371 = vmatprep.subr.mxu0 0.0
        %2372 = vmatpush1.msra.mxu0 0.0
        %2373 = vmatprep.subr.mxu0 0.0
        %2374 = vmatpush1.msra.mxu0 0.0
        %2375 = vmatprep.subr.mxu0 0.0
        %2376 = vmatpush1.msra.mxu0 0.0
        %2377 = vmatprep.subr.mxu0 0.0
        %2378 = vmatpush1.msra.mxu0 0.0
        %2379 = vmatprep.subr.mxu0 0.0
        %2380 = vmatpush1.msra.mxu0 0.0
        %2381 = vmatprep.subr.mxu0 0.0
        %2382 = vmatpush1.msra.mxu0 0.0
        %v2383 = vand.u32 %v471, 4294901760
        %v2384 = vsub.f32 %v471, %v2383
        %v2385 = vand.u32 %v2384, 4294901760
        %2386 = vmatprep.subr.mxu0 %v2385
        %v2387 = vand.u32 %v470, 4294901760
        %v2388 = vsub.f32 %v470, %v2387
        %v2389 = vand.u32 %v2388, 4294901760
        %2390 = vmatpush1.msra.mxu0 %v2389
        %v2391 = vand.u32 %v463, 4294901760
        %v2392 = vsub.f32 %v463, %v2391
        %v2393 = vand.u32 %v2392, 4294901760
        %2394 = vmatprep.subr.mxu0 %v2393
        %v2395 = vand.u32 %v462, 4294901760
        %v2396 = vsub.f32 %v462, %v2395
        %v2397 = vand.u32 %v2396, 4294901760
        %2398 = vmatpush1.msra.mxu0 %v2397
        %v2399 = vand.u32 %v455, 4294901760
        %v2400 = vsub.f32 %v455, %v2399
        %v2401 = vand.u32 %v2400, 4294901760
        %2402 = vmatprep.subr.mxu0 %v2401
        %v2403 = vand.u32 %v454, 4294901760
        %v2404 = vsub.f32 %v454, %v2403
        %v2405 = vand.u32 %v2404, 4294901760
        %2406 = vmatpush1.msra.mxu0 %v2405
        %v2407 = vand.u32 %v447, 4294901760
        %v2408 = vsub.f32 %v447, %v2407
        %v2409 = vand.u32 %v2408, 4294901760
        %2410 = vmatprep.subr.mxu0 %v2409
        %v2411 = vand.u32 %v446, 4294901760
        %v2412 = vsub.f32 %v446, %v2411
        %v2413 = vand.u32 %v2412, 4294901760
        %2414 = vmatpush1.msra.mxu0 %v2413
        %2415 = vmatprep.subr.mxu0 0.0
        %2416 = vmatpush2.msra.mxu0 0.0
        %2417 = vmatprep.subr.mxu0 0.0
        %2418 = vmatpush2.msra.mxu0 0.0
        %2419 = vmatprep.subr.mxu0 0.0
        %2420 = vmatpush2.msra.mxu0 0.0
        %2421 = vmatprep.subr.mxu0 0.0
        %2422 = vmatpush2.msra.mxu0 0.0
        %2423 = vmatprep.subr.mxu0 0.0
        %2424 = vmatpush2.msra.mxu0 0.0
        %2425 = vmatprep.subr.mxu0 0.0
        %2426 = vmatpush2.msra.mxu0 0.0
        %2427 = vmatprep.subr.mxu0 0.0
        %2428 = vmatpush2.msra.mxu0 0.0
        %2429 = vmatprep.subr.mxu0 0.0
        %2430 = vmatpush2.msra.mxu0 0.0
        %2431 = vmatprep.subr.mxu0 0.0
        %2432 = vmatpush2.msra.mxu0 0.0
        %2433 = vmatprep.subr.mxu0 0.0
        %2434 = vmatpush2.msra.mxu0 0.0
        %2435 = vmatprep.subr.mxu0 0.0
        %2436 = vmatpush2.msra.mxu0 0.0
        %2437 = vmatprep.subr.mxu0 0.0
        %2438 = vmatpush2.msra.mxu0 0.0
        %2439 = vmatprep.subr.mxu0 0.0
        %2440 = vmatpush2.msra.mxu0 0.0
        %2441 = vmatprep.subr.mxu0 0.0
        %2442 = vmatpush2.msra.mxu0 0.0
        %2443 = vmatprep.subr.mxu0 0.0
        %2444 = vmatpush2.msra.mxu0 0.0
        %2445 = vmatprep.subr.mxu0 0.0
        %2446 = vmatpush2.msra.mxu0 0.0
        %2447 = vmatprep.mubr.f32.mxu0 0.0
        %v2448 = vand.u32 %v496, 4294901760
        %2449 = vmatmul.mubr.f32.gmra.mxu0 %v2448
        %v2450 = vpop.f32.mrf.mxu0
        %v2451 = vadd.f32 %v2328, %v2450
        %v2452 = vpop.f32.mrf.mxu0
        %v2453 = vadd.f32 %v2330, %v2452
        %2454 = vmatprep.mubr.f32.mxu0 0.0
        %v2455 = vand.u32 %v499, 4294901760
        %2456 = vmatmul.mubr.f32.gmra.mxu0 %v2455
        %v2457 = vpop.f32.mrf.mxu0
        %v2458 = vadd.f32 %v2337, %v2457
        %v2459 = vpop.f32.mrf.mxu0
        %v2460 = vadd.f32 %v2339, %v2459
        %2461 = vmatprep.mubr.f32.mxu0 0.0
        %v2462 = vand.u32 %v502, 4294901760
        %2463 = vmatmul.mubr.f32.gmra.mxu0 %v2462
        %v2464 = vpop.f32.mrf.mxu0
        %v2465 = vadd.f32 %v2346, %v2464
        %v2466 = vpop.f32.mrf.mxu0
        %v2467 = vadd.f32 %v2348, %v2466
        %2468 = vmatprep.mubr.f32.mxu0 0.0
        %v2469 = vand.u32 %v505, 4294901760
        %2470 = vmatmul.mubr.f32.gmra.mxu0 %v2469
        %v2471 = vpop.f32.mrf.mxu0
        %v2472 = vadd.f32 %v2355, %v2471
        %v2473 = vpop.f32.mrf.mxu0
        %v2474 = vadd.f32 %v2357, %v2473
        %2475 = vdwg.mxu0
        %2476 = vmatprep.subr.mxu0 0.0
        %2477 = vmatpush1.msra.mxu0 0.0
        %2478 = vmatprep.subr.mxu0 0.0
        %2479 = vmatpush1.msra.mxu0 0.0
        %2480 = vmatprep.subr.mxu0 0.0
        %2481 = vmatpush1.msra.mxu0 0.0
        %2482 = vmatprep.subr.mxu0 0.0
        %2483 = vmatpush1.msra.mxu0 0.0
        %2484 = vmatprep.subr.mxu0 0.0
        %2485 = vmatpush1.msra.mxu0 0.0
        %2486 = vmatprep.subr.mxu0 0.0
        %2487 = vmatpush1.msra.mxu0 0.0
        %2488 = vmatprep.subr.mxu0 0.0
        %2489 = vmatpush1.msra.mxu0 0.0
        %2490 = vmatprep.subr.mxu0 0.0
        %2491 = vmatpush1.msra.mxu0 0.0
        %2492 = vmatprep.subr.mxu0 0.0
        %2493 = vmatpush1.msra.mxu0 0.0
        %2494 = vmatprep.subr.mxu0 0.0
        %2495 = vmatpush1.msra.mxu0 0.0
        %2496 = vmatprep.subr.mxu0 0.0
        %2497 = vmatpush1.msra.mxu0 0.0
        %2498 = vmatprep.subr.mxu0 0.0
        %2499 = vmatpush1.msra.mxu0 0.0
        %v2500 = vand.u32 %v471, 4294901760
        %2501 = vmatprep.subr.mxu0 %v2500
        %v2502 = vand.u32 %v470, 4294901760
        %2503 = vmatpush1.msra.mxu0 %v2502
        %v2504 = vand.u32 %v463, 4294901760
        %2505 = vmatprep.subr.mxu0 %v2504
        %v2506 = vand.u32 %v462, 4294901760
        %2507 = vmatpush1.msra.mxu0 %v2506
        %v2508 = vand.u32 %v455, 4294901760
        %2509 = vmatprep.subr.mxu0 %v2508
        %v2510 = vand.u32 %v454, 4294901760
        %2511 = vmatpush1.msra.mxu0 %v2510
        %v2512 = vand.u32 %v447, 4294901760
        %2513 = vmatprep.subr.mxu0 %v2512
        %v2514 = vand.u32 %v446, 4294901760
        %2515 = vmatpush1.msra.mxu0 %v2514
        %2516 = vmatprep.subr.mxu0 0.0
        %2517 = vmatpush2.msra.mxu0 0.0
        %2518 = vmatprep.subr.mxu0 0.0
        %2519 = vmatpush2.msra.mxu0 0.0
        %2520 = vmatprep.subr.mxu0 0.0
        %2521 = vmatpush2.msra.mxu0 0.0
        %2522 = vmatprep.subr.mxu0 0.0
        %2523 = vmatpush2.msra.mxu0 0.0
        %2524 = vmatprep.subr.mxu0 0.0
        %2525 = vmatpush2.msra.mxu0 0.0
        %2526 = vmatprep.subr.mxu0 0.0
        %2527 = vmatpush2.msra.mxu0 0.0
        %2528 = vmatprep.subr.mxu0 0.0
        %2529 = vmatpush2.msra.mxu0 0.0
        %2530 = vmatprep.subr.mxu0 0.0
        %2531 = vmatpush2.msra.mxu0 0.0
        %2532 = vmatprep.subr.mxu0 0.0
        %2533 = vmatpush2.msra.mxu0 0.0
        %2534 = vmatprep.subr.mxu0 0.0
        %2535 = vmatpush2.msra.mxu0 0.0
        %2536 = vmatprep.subr.mxu0 0.0
        %2537 = vmatpush2.msra.mxu0 0.0
        %2538 = vmatprep.subr.mxu0 0.0
        %2539 = vmatpush2.msra.mxu0 0.0
        %2540 = vmatprep.subr.mxu0 0.0
        %2541 = vmatpush2.msra.mxu0 0.0
        %2542 = vmatprep.subr.mxu0 0.0
        %2543 = vmatpush2.msra.mxu0 0.0
        %2544 = vmatprep.subr.mxu0 0.0
        %2545 = vmatpush2.msra.mxu0 0.0
        %2546 = vmatprep.subr.mxu0 0.0
        %2547 = vmatpush2.msra.mxu0 0.0
        %2548 = vmatprep.mubr.f32.mxu0 0.0
        %v2549 = vand.u32 %v496, 4294901760
        %2550 = vmatmul.mubr.f32.gmra.mxu0 %v2549
        %v2551 = vpop.f32.mrf.mxu0
        %v2552 = vadd.f32 %v2451, %v2551
        %v2553 = vpop.f32.mrf.mxu0
        %v2554 = vadd.f32 %v2453, %v2553
        %2555 = vmatprep.mubr.f32.mxu0 0.0
        %v2556 = vand.u32 %v499, 4294901760
        %2557 = vmatmul.mubr.f32.gmra.mxu0 %v2556
        %v2558 = vpop.f32.mrf.mxu0
        %v2559 = vadd.f32 %v2458, %v2558
        %v2560 = vpop.f32.mrf.mxu0
        %v2561 = vadd.f32 %v2460, %v2560
        %2562 = vmatprep.mubr.f32.mxu0 0.0
        %v2563 = vand.u32 %v502, 4294901760
        %2564 = vmatmul.mubr.f32.gmra.mxu0 %v2563
        %v2565 = vpop.f32.mrf.mxu0
        %v2566 = vadd.f32 %v2465, %v2565
        %v2567 = vpop.f32.mrf.mxu0
        %v2568 = vadd.f32 %v2467, %v2567
        %2569 = vmatprep.mubr.f32.mxu0 0.0
        %v2570 = vand.u32 %v505, 4294901760
        %2571 = vmatmul.mubr.f32.gmra.mxu0 %v2570
        %v2572 = vpop.f32.mrf.mxu0
        %v2573 = vadd.f32 %v2472, %v2572
        %v2574 = vpop.f32.mrf.mxu0
        %v2575 = vadd.f32 %v2474, %v2574
        %2576 = vdwg.mxu0
        %2577 = vmatprep.subr.mxu0 0.0
        %2578 = vmatpush1.msra.mxu0 0.0
        %2579 = vmatprep.subr.mxu0 0.0
        %2580 = vmatpush1.msra.mxu0 0.0
        %2581 = vmatprep.subr.mxu0 0.0
        %2582 = vmatpush1.msra.mxu0 0.0
        %2583 = vmatprep.subr.mxu0 0.0
        %2584 = vmatpush1.msra.mxu0 0.0
        %2585 = vmatprep.subr.mxu0 0.0
        %2586 = vmatpush1.msra.mxu0 0.0
        %2587 = vmatprep.subr.mxu0 0.0
        %2588 = vmatpush1.msra.mxu0 0.0
        %2589 = vmatprep.subr.mxu0 0.0
        %2590 = vmatpush1.msra.mxu0 0.0
        %2591 = vmatprep.subr.mxu0 0.0
        %2592 = vmatpush1.msra.mxu0 0.0
        %2593 = vmatprep.subr.mxu0 0.0
        %2594 = vmatpush1.msra.mxu0 0.0
        %2595 = vmatprep.subr.mxu0 0.0
        %2596 = vmatpush1.msra.mxu0 0.0
        %2597 = vmatprep.subr.mxu0 0.0
        %2598 = vmatpush1.msra.mxu0 0.0
        %2599 = vmatprep.subr.mxu0 0.0
        %2600 = vmatpush1.msra.mxu0 0.0
        %v2601 = vand.u32 %v473, 4294901760
        %2602 = vmatprep.subr.mxu0 %v2601
        %v2603 = vand.u32 %v472, 4294901760
        %2604 = vmatpush1.msra.mxu0 %v2603
        %v2605 = vand.u32 %v465, 4294901760
        %2606 = vmatprep.subr.mxu0 %v2605
        %v2607 = vand.u32 %v464, 4294901760
        %2608 = vmatpush1.msra.mxu0 %v2607
        %v2609 = vand.u32 %v457, 4294901760
        %2610 = vmatprep.subr.mxu0 %v2609
        %v2611 = vand.u32 %v456, 4294901760
        %2612 = vmatpush1.msra.mxu0 %v2611
        %v2613 = vand.u32 %v449, 4294901760
        %2614 = vmatprep.subr.mxu0 %v2613
        %v2615 = vand.u32 %v448, 4294901760
        %2616 = vmatpush1.msra.mxu0 %v2615
        %2617 = vmatprep.subr.mxu0 0.0
        %2618 = vmatpush2.msra.mxu0 0.0
        %2619 = vmatprep.subr.mxu0 0.0
        %2620 = vmatpush2.msra.mxu0 0.0
        %2621 = vmatprep.subr.mxu0 0.0
        %2622 = vmatpush2.msra.mxu0 0.0
        %2623 = vmatprep.subr.mxu0 0.0
        %2624 = vmatpush2.msra.mxu0 0.0
        %2625 = vmatprep.subr.mxu0 0.0
        %2626 = vmatpush2.msra.mxu0 0.0
        %2627 = vmatprep.subr.mxu0 0.0
        %2628 = vmatpush2.msra.mxu0 0.0
        %2629 = vmatprep.subr.mxu0 0.0
        %2630 = vmatpush2.msra.mxu0 0.0
        %2631 = vmatprep.subr.mxu0 0.0
        %2632 = vmatpush2.msra.mxu0 0.0
        %2633 = vmatprep.subr.mxu0 0.0
        %2634 = vmatpush2.msra.mxu0 0.0
        %2635 = vmatprep.subr.mxu0 0.0
        %2636 = vmatpush2.msra.mxu0 0.0
        %2637 = vmatprep.subr.mxu0 0.0
        %2638 = vmatpush2.msra.mxu0 0.0
        %2639 = vmatprep.subr.mxu0 0.0
        %2640 = vmatpush2.msra.mxu0 0.0
        %2641 = vmatprep.subr.mxu0 0.0
        %2642 = vmatpush2.msra.mxu0 0.0
        %2643 = vmatprep.subr.mxu0 0.0
        %2644 = vmatpush2.msra.mxu0 0.0
        %2645 = vmatprep.subr.mxu0 0.0
        %2646 = vmatpush2.msra.mxu0 0.0
        %2647 = vmatprep.subr.mxu0 0.0
        %2648 = vmatpush2.msra.mxu0 0.0
        %2649 = vmatprep.mubr.f32.mxu0 0.0
        %v2650 = vand.u32 %v496, 4294901760
        %v2651 = vsub.f32 %v496, %v2650
        %v2652 = vand.u32 %v2651, 4294901760
        %v2653 = vsub.f32 %v2651, %v2652
        %v2654 = vand.u32 %v2653, 4294901760
        %2655 = vmatmul.mubr.f32.gmra.mxu0 %v2654
        %v2656 = vpop.f32.mrf.mxu0
        %v2657 = vadd.f32 %v477, %v2656
        %v2658 = vpop.f32.mrf.mxu0
        %v2659 = vadd.f32 %v477, %v2658
        %2660 = vmatprep.mubr.f32.mxu0 0.0
        %v2661 = vand.u32 %v499, 4294901760
        %v2662 = vsub.f32 %v499, %v2661
        %v2663 = vand.u32 %v2662, 4294901760
        %v2664 = vsub.f32 %v2662, %v2663
        %v2665 = vand.u32 %v2664, 4294901760
        %2666 = vmatmul.mubr.f32.gmra.mxu0 %v2665
        %v2667 = vpop.f32.mrf.mxu0
        %v2668 = vadd.f32 %v482, %v2667
        %v2669 = vpop.f32.mrf.mxu0
        %v2670 = vadd.f32 %v482, %v2669
        %2671 = vmatprep.mubr.f32.mxu0 0.0
        %v2672 = vand.u32 %v502, 4294901760
        %v2673 = vsub.f32 %v502, %v2672
        %v2674 = vand.u32 %v2673, 4294901760
        %v2675 = vsub.f32 %v2673, %v2674
        %v2676 = vand.u32 %v2675, 4294901760
        %2677 = vmatmul.mubr.f32.gmra.mxu0 %v2676
        %v2678 = vpop.f32.mrf.mxu0
        %v2679 = vadd.f32 %v487, %v2678
        %v2680 = vpop.f32.mrf.mxu0
        %v2681 = vadd.f32 %v487, %v2680
        %2682 = vmatprep.mubr.f32.mxu0 0.0
        %v2683 = vand.u32 %v505, 4294901760
        %v2684 = vsub.f32 %v505, %v2683
        %v2685 = vand.u32 %v2684, 4294901760
        %v2686 = vsub.f32 %v2684, %v2685
        %v2687 = vand.u32 %v2686, 4294901760
        %2688 = vmatmul.mubr.f32.gmra.mxu0 %v2687
        %v2689 = vpop.f32.mrf.mxu0
        %v2690 = vadd.f32 %v492, %v2689
        %v2691 = vpop.f32.mrf.mxu0
        %v2692 = vadd.f32 %v492, %v2691
        %2693 = vdwg.mxu0
        %2694 = vmatprep.subr.mxu0 0.0
        %2695 = vmatpush1.msra.mxu0 0.0
        %2696 = vmatprep.subr.mxu0 0.0
        %2697 = vmatpush1.msra.mxu0 0.0
        %2698 = vmatprep.subr.mxu0 0.0
        %2699 = vmatpush1.msra.mxu0 0.0
        %2700 = vmatprep.subr.mxu0 0.0
        %2701 = vmatpush1.msra.mxu0 0.0
        %2702 = vmatprep.subr.mxu0 0.0
        %2703 = vmatpush1.msra.mxu0 0.0
        %2704 = vmatprep.subr.mxu0 0.0
        %2705 = vmatpush1.msra.mxu0 0.0
        %2706 = vmatprep.subr.mxu0 0.0
        %2707 = vmatpush1.msra.mxu0 0.0
        %2708 = vmatprep.subr.mxu0 0.0
        %2709 = vmatpush1.msra.mxu0 0.0
        %2710 = vmatprep.subr.mxu0 0.0
        %2711 = vmatpush1.msra.mxu0 0.0
        %2712 = vmatprep.subr.mxu0 0.0
        %2713 = vmatpush1.msra.mxu0 0.0
        %2714 = vmatprep.subr.mxu0 0.0
        %2715 = vmatpush1.msra.mxu0 0.0
        %2716 = vmatprep.subr.mxu0 0.0
        %2717 = vmatpush1.msra.mxu0 0.0
        %v2718 = vand.u32 %v473, 4294901760
        %v2719 = vsub.f32 %v473, %v2718
        %v2720 = vand.u32 %v2719, 4294901760
        %v2721 = vsub.f32 %v2719, %v2720
        %v2722 = vand.u32 %v2721, 4294901760
        %2723 = vmatprep.subr.mxu0 %v2722
        %v2724 = vand.u32 %v472, 4294901760
        %v2725 = vsub.f32 %v472, %v2724
        %v2726 = vand.u32 %v2725, 4294901760
        %v2727 = vsub.f32 %v2725, %v2726
        %v2728 = vand.u32 %v2727, 4294901760
        %2729 = vmatpush1.msra.mxu0 %v2728
        %v2730 = vand.u32 %v465, 4294901760
        %v2731 = vsub.f32 %v465, %v2730
        %v2732 = vand.u32 %v2731, 4294901760
        %v2733 = vsub.f32 %v2731, %v2732
        %v2734 = vand.u32 %v2733, 4294901760
        %2735 = vmatprep.subr.mxu0 %v2734
        %v2736 = vand.u32 %v464, 4294901760
        %v2737 = vsub.f32 %v464, %v2736
        %v2738 = vand.u32 %v2737, 4294901760
        %v2739 = vsub.f32 %v2737, %v2738
        %v2740 = vand.u32 %v2739, 4294901760
        %2741 = vmatpush1.msra.mxu0 %v2740
        %v2742 = vand.u32 %v457, 4294901760
        %v2743 = vsub.f32 %v457, %v2742
        %v2744 = vand.u32 %v2743, 4294901760
        %v2745 = vsub.f32 %v2743, %v2744
        %v2746 = vand.u32 %v2745, 4294901760
        %2747 = vmatprep.subr.mxu0 %v2746
        %v2748 = vand.u32 %v456, 4294901760
        %v2749 = vsub.f32 %v456, %v2748
        %v2750 = vand.u32 %v2749, 4294901760
        %v2751 = vsub.f32 %v2749, %v2750
        %v2752 = vand.u32 %v2751, 4294901760
        %2753 = vmatpush1.msra.mxu0 %v2752
        %v2754 = vand.u32 %v449, 4294901760
        %v2755 = vsub.f32 %v449, %v2754
        %v2756 = vand.u32 %v2755, 4294901760
        %v2757 = vsub.f32 %v2755, %v2756
        %v2758 = vand.u32 %v2757, 4294901760
        %2759 = vmatprep.subr.mxu0 %v2758
        %v2760 = vand.u32 %v448, 4294901760
        %v2761 = vsub.f32 %v448, %v2760
        %v2762 = vand.u32 %v2761, 4294901760
        %v2763 = vsub.f32 %v2761, %v2762
        %v2764 = vand.u32 %v2763, 4294901760
        %2765 = vmatpush1.msra.mxu0 %v2764
        %2766 = vmatprep.subr.mxu0 0.0
        %2767 = vmatpush2.msra.mxu0 0.0
        %2768 = vmatprep.subr.mxu0 0.0
        %2769 = vmatpush2.msra.mxu0 0.0
        %2770 = vmatprep.subr.mxu0 0.0
        %2771 = vmatpush2.msra.mxu0 0.0
        %2772 = vmatprep.subr.mxu0 0.0
        %2773 = vmatpush2.msra.mxu0 0.0
        %2774 = vmatprep.subr.mxu0 0.0
        %2775 = vmatpush2.msra.mxu0 0.0
        %2776 = vmatprep.subr.mxu0 0.0
        %2777 = vmatpush2.msra.mxu0 0.0
        %2778 = vmatprep.subr.mxu0 0.0
        %2779 = vmatpush2.msra.mxu0 0.0
        %2780 = vmatprep.subr.mxu0 0.0
        %2781 = vmatpush2.msra.mxu0 0.0
        %2782 = vmatprep.subr.mxu0 0.0
        %2783 = vmatpush2.msra.mxu0 0.0
        %2784 = vmatprep.subr.mxu0 0.0
        %2785 = vmatpush2.msra.mxu0 0.0
        %2786 = vmatprep.subr.mxu0 0.0
        %2787 = vmatpush2.msra.mxu0 0.0
        %2788 = vmatprep.subr.mxu0 0.0
        %2789 = vmatpush2.msra.mxu0 0.0
        %2790 = vmatprep.subr.mxu0 0.0
        %2791 = vmatpush2.msra.mxu0 0.0
        %2792 = vmatprep.subr.mxu0 0.0
        %2793 = vmatpush2.msra.mxu0 0.0
        %2794 = vmatprep.subr.mxu0 0.0
        %2795 = vmatpush2.msra.mxu0 0.0
        %2796 = vmatprep.subr.mxu0 0.0
        %2797 = vmatpush2.msra.mxu0 0.0
        %2798 = vmatprep.mubr.f32.mxu0 0.0
        %v2799 = vand.u32 %v496, 4294901760
        %2800 = vmatmul.mubr.f32.gmra.mxu0 %v2799
        %v2801 = vpop.f32.mrf.mxu0
        %v2802 = vadd.f32 %v2657, %v2801
        %v2803 = vpop.f32.mrf.mxu0
        %v2804 = vadd.f32 %v2659, %v2803
        %2805 = vmatprep.mubr.f32.mxu0 0.0
        %v2806 = vand.u32 %v499, 4294901760
        %2807 = vmatmul.mubr.f32.gmra.mxu0 %v2806
        %v2808 = vpop.f32.mrf.mxu0
        %v2809 = vadd.f32 %v2668, %v2808
        %v2810 = vpop.f32.mrf.mxu0
        %v2811 = vadd.f32 %v2670, %v2810
        %2812 = vmatprep.mubr.f32.mxu0 0.0
        %v2813 = vand.u32 %v502, 4294901760
        %2814 = vmatmul.mubr.f32.gmra.mxu0 %v2813
        %v2815 = vpop.f32.mrf.mxu0
        %v2816 = vadd.f32 %v2679, %v2815
        %v2817 = vpop.f32.mrf.mxu0
        %v2818 = vadd.f32 %v2681, %v2817
        %2819 = vmatprep.mubr.f32.mxu0 0.0
        %v2820 = vand.u32 %v505, 4294901760
        %2821 = vmatmul.mubr.f32.gmra.mxu0 %v2820
        %v2822 = vpop.f32.mrf.mxu0
        %v2823 = vadd.f32 %v2690, %v2822
        %v2824 = vpop.f32.mrf.mxu0
        %v2825 = vadd.f32 %v2692, %v2824
        %2826 = vdwg.mxu0
        %2827 = vmatprep.subr.mxu0 0.0
        %2828 = vmatpush1.msra.mxu0 0.0
        %2829 = vmatprep.subr.mxu0 0.0
        %2830 = vmatpush1.msra.mxu0 0.0
        %2831 = vmatprep.subr.mxu0 0.0
        %2832 = vmatpush1.msra.mxu0 0.0
        %2833 = vmatprep.subr.mxu0 0.0
        %2834 = vmatpush1.msra.mxu0 0.0
        %2835 = vmatprep.subr.mxu0 0.0
        %2836 = vmatpush1.msra.mxu0 0.0
        %2837 = vmatprep.subr.mxu0 0.0
        %2838 = vmatpush1.msra.mxu0 0.0
        %2839 = vmatprep.subr.mxu0 0.0
        %2840 = vmatpush1.msra.mxu0 0.0
        %2841 = vmatprep.subr.mxu0 0.0
        %2842 = vmatpush1.msra.mxu0 0.0
        %2843 = vmatprep.subr.mxu0 0.0
        %2844 = vmatpush1.msra.mxu0 0.0
        %2845 = vmatprep.subr.mxu0 0.0
        %2846 = vmatpush1.msra.mxu0 0.0
        %2847 = vmatprep.subr.mxu0 0.0
        %2848 = vmatpush1.msra.mxu0 0.0
        %2849 = vmatprep.subr.mxu0 0.0
        %2850 = vmatpush1.msra.mxu0 0.0
        %v2851 = vand.u32 %v473, 4294901760
        %v2852 = vsub.f32 %v473, %v2851
        %2853 = vmatprep.subr.mxu0 %v2852
        %v2854 = vand.u32 %v472, 4294901760
        %v2855 = vsub.f32 %v472, %v2854
        %2856 = vmatpush1.msra.mxu0 %v2855
        %v2857 = vand.u32 %v465, 4294901760
        %v2858 = vsub.f32 %v465, %v2857
        %2859 = vmatprep.subr.mxu0 %v2858
        %v2860 = vand.u32 %v464, 4294901760
        %v2861 = vsub.f32 %v464, %v2860
        %2862 = vmatpush1.msra.mxu0 %v2861
        %v2863 = vand.u32 %v457, 4294901760
        %v2864 = vsub.f32 %v457, %v2863
        %2865 = vmatprep.subr.mxu0 %v2864
        %v2866 = vand.u32 %v456, 4294901760
        %v2867 = vsub.f32 %v456, %v2866
        %2868 = vmatpush1.msra.mxu0 %v2867
        %v2869 = vand.u32 %v449, 4294901760
        %v2870 = vsub.f32 %v449, %v2869
        %2871 = vmatprep.subr.mxu0 %v2870
        %v2872 = vand.u32 %v448, 4294901760
        %v2873 = vsub.f32 %v448, %v2872
        %2874 = vmatpush1.msra.mxu0 %v2873
        %2875 = vmatprep.subr.mxu0 0.0
        %2876 = vmatpush2.msra.mxu0 0.0
        %2877 = vmatprep.subr.mxu0 0.0
        %2878 = vmatpush2.msra.mxu0 0.0
        %2879 = vmatprep.subr.mxu0 0.0
        %2880 = vmatpush2.msra.mxu0 0.0
        %2881 = vmatprep.subr.mxu0 0.0
        %2882 = vmatpush2.msra.mxu0 0.0
        %2883 = vmatprep.subr.mxu0 0.0
        %2884 = vmatpush2.msra.mxu0 0.0
        %2885 = vmatprep.subr.mxu0 0.0
        %2886 = vmatpush2.msra.mxu0 0.0
        %2887 = vmatprep.subr.mxu0 0.0
        %2888 = vmatpush2.msra.mxu0 0.0
        %2889 = vmatprep.subr.mxu0 0.0
        %2890 = vmatpush2.msra.mxu0 0.0
        %2891 = vmatprep.subr.mxu0 0.0
        %2892 = vmatpush2.msra.mxu0 0.0
        %2893 = vmatprep.subr.mxu0 0.0
        %2894 = vmatpush2.msra.mxu0 0.0
        %2895 = vmatprep.subr.mxu0 0.0
        %2896 = vmatpush2.msra.mxu0 0.0
        %2897 = vmatprep.subr.mxu0 0.0
        %2898 = vmatpush2.msra.mxu0 0.0
        %2899 = vmatprep.subr.mxu0 0.0
        %2900 = vmatpush2.msra.mxu0 0.0
        %2901 = vmatprep.subr.mxu0 0.0
        %2902 = vmatpush2.msra.mxu0 0.0
        %2903 = vmatprep.subr.mxu0 0.0
        %2904 = vmatpush2.msra.mxu0 0.0
        %2905 = vmatprep.subr.mxu0 0.0
        %2906 = vmatpush2.msra.mxu0 0.0
        %2907 = vmatprep.mubr.f32.mxu0 0.0
        %v2908 = vand.u32 %v496, 4294901760
        %v2909 = vsub.f32 %v496, %v2908
        %2910 = vmatmul.mubr.f32.gmra.mxu0 %v2909
        %v2911 = vpop.f32.mrf.mxu0
        %v2912 = vadd.f32 %v2802, %v2911
        %v2913 = vpop.f32.mrf.mxu0
        %v2914 = vadd.f32 %v2804, %v2913
        %2915 = vmatprep.mubr.f32.mxu0 0.0
        %v2916 = vand.u32 %v499, 4294901760
        %v2917 = vsub.f32 %v499, %v2916
        %2918 = vmatmul.mubr.f32.gmra.mxu0 %v2917
        %v2919 = vpop.f32.mrf.mxu0
        %v2920 = vadd.f32 %v2809, %v2919
        %v2921 = vpop.f32.mrf.mxu0
        %v2922 = vadd.f32 %v2811, %v2921
        %2923 = vmatprep.mubr.f32.mxu0 0.0
        %v2924 = vand.u32 %v502, 4294901760
        %v2925 = vsub.f32 %v502, %v2924
        %2926 = vmatmul.mubr.f32.gmra.mxu0 %v2925
        %v2927 = vpop.f32.mrf.mxu0
        %v2928 = vadd.f32 %v2816, %v2927
        %v2929 = vpop.f32.mrf.mxu0
        %v2930 = vadd.f32 %v2818, %v2929
        %2931 = vmatprep.mubr.f32.mxu0 0.0
        %v2932 = vand.u32 %v505, 4294901760
        %v2933 = vsub.f32 %v505, %v2932
        %2934 = vmatmul.mubr.f32.gmra.mxu0 %v2933
        %v2935 = vpop.f32.mrf.mxu0
        %v2936 = vadd.f32 %v2823, %v2935
        %v2937 = vpop.f32.mrf.mxu0
        %v2938 = vadd.f32 %v2825, %v2937
        %2939 = vdwg.mxu0
        %2940 = vmatprep.subr.mxu0 0.0
        %2941 = vmatpush1.msra.mxu0 0.0
        %2942 = vmatprep.subr.mxu0 0.0
        %2943 = vmatpush1.msra.mxu0 0.0
        %2944 = vmatprep.subr.mxu0 0.0
        %2945 = vmatpush1.msra.mxu0 0.0
        %2946 = vmatprep.subr.mxu0 0.0
        %2947 = vmatpush1.msra.mxu0 0.0
        %2948 = vmatprep.subr.mxu0 0.0
        %2949 = vmatpush1.msra.mxu0 0.0
        %2950 = vmatprep.subr.mxu0 0.0
        %2951 = vmatpush1.msra.mxu0 0.0
        %2952 = vmatprep.subr.mxu0 0.0
        %2953 = vmatpush1.msra.mxu0 0.0
        %2954 = vmatprep.subr.mxu0 0.0
        %2955 = vmatpush1.msra.mxu0 0.0
        %2956 = vmatprep.subr.mxu0 0.0
        %2957 = vmatpush1.msra.mxu0 0.0
        %2958 = vmatprep.subr.mxu0 0.0
        %2959 = vmatpush1.msra.mxu0 0.0
        %2960 = vmatprep.subr.mxu0 0.0
        %2961 = vmatpush1.msra.mxu0 0.0
        %2962 = vmatprep.subr.mxu0 0.0
        %2963 = vmatpush1.msra.mxu0 0.0
        %v2964 = vand.u32 %v473, 4294901760
        %2965 = vmatprep.subr.mxu0 %v2964
        %v2966 = vand.u32 %v472, 4294901760
        %2967 = vmatpush1.msra.mxu0 %v2966
        %v2968 = vand.u32 %v465, 4294901760
        %2969 = vmatprep.subr.mxu0 %v2968
        %v2970 = vand.u32 %v464, 4294901760
        %2971 = vmatpush1.msra.mxu0 %v2970
        %v2972 = vand.u32 %v457, 4294901760
        %2973 = vmatprep.subr.mxu0 %v2972
        %v2974 = vand.u32 %v456, 4294901760
        %2975 = vmatpush1.msra.mxu0 %v2974
        %v2976 = vand.u32 %v449, 4294901760
        %2977 = vmatprep.subr.mxu0 %v2976
        %v2978 = vand.u32 %v448, 4294901760
        %2979 = vmatpush1.msra.mxu0 %v2978
        %2980 = vmatprep.subr.mxu0 0.0
        %2981 = vmatpush2.msra.mxu0 0.0
        %2982 = vmatprep.subr.mxu0 0.0
        %2983 = vmatpush2.msra.mxu0 0.0
        %2984 = vmatprep.subr.mxu0 0.0
        %2985 = vmatpush2.msra.mxu0 0.0
        %2986 = vmatprep.subr.mxu0 0.0
        %2987 = vmatpush2.msra.mxu0 0.0
        %2988 = vmatprep.subr.mxu0 0.0
        %2989 = vmatpush2.msra.mxu0 0.0
        %2990 = vmatprep.subr.mxu0 0.0
        %2991 = vmatpush2.msra.mxu0 0.0
        %2992 = vmatprep.subr.mxu0 0.0
        %2993 = vmatpush2.msra.mxu0 0.0
        %2994 = vmatprep.subr.mxu0 0.0
        %2995 = vmatpush2.msra.mxu0 0.0
        %2996 = vmatprep.subr.mxu0 0.0
        %2997 = vmatpush2.msra.mxu0 0.0
        %2998 = vmatprep.subr.mxu0 0.0
        %2999 = vmatpush2.msra.mxu0 0.0
        %3000 = vmatprep.subr.mxu0 0.0
        %3001 = vmatpush2.msra.mxu0 0.0
        %3002 = vmatprep.subr.mxu0 0.0
        %3003 = vmatpush2.msra.mxu0 0.0
        %3004 = vmatprep.subr.mxu0 0.0
        %3005 = vmatpush2.msra.mxu0 0.0
        %3006 = vmatprep.subr.mxu0 0.0
        %3007 = vmatpush2.msra.mxu0 0.0
        %3008 = vmatprep.subr.mxu0 0.0
        %3009 = vmatpush2.msra.mxu0 0.0
        %3010 = vmatprep.subr.mxu0 0.0
        %3011 = vmatpush2.msra.mxu0 0.0
        %3012 = vmatprep.mubr.f32.mxu0 0.0
        %v3013 = vand.u32 %v496, 4294901760
        %v3014 = vsub.f32 %v496, %v3013
        %v3015 = vand.u32 %v3014, 4294901760
        %3016 = vmatmul.mubr.f32.gmra.mxu0 %v3015
        %v3017 = vpop.f32.mrf.mxu0
        %v3018 = vadd.f32 %v2912, %v3017
        %v3019 = vpop.f32.mrf.mxu0
        %v3020 = vadd.f32 %v2914, %v3019
        %3021 = vmatprep.mubr.f32.mxu0 0.0
        %v3022 = vand.u32 %v499, 4294901760
        %v3023 = vsub.f32 %v499, %v3022
        %v3024 = vand.u32 %v3023, 4294901760
        %3025 = vmatmul.mubr.f32.gmra.mxu0 %v3024
        %v3026 = vpop.f32.mrf.mxu0
        %v3027 = vadd.f32 %v2920, %v3026
        %v3028 = vpop.f32.mrf.mxu0
        %v3029 = vadd.f32 %v2922, %v3028
        %3030 = vmatprep.mubr.f32.mxu0 0.0
        %v3031 = vand.u32 %v502, 4294901760
        %v3032 = vsub.f32 %v502, %v3031
        %v3033 = vand.u32 %v3032, 4294901760
        %3034 = vmatmul.mubr.f32.gmra.mxu0 %v3033
        %v3035 = vpop.f32.mrf.mxu0
        %v3036 = vadd.f32 %v2928, %v3035
        %v3037 = vpop.f32.mrf.mxu0
        %v3038 = vadd.f32 %v2930, %v3037
        %3039 = vmatprep.mubr.f32.mxu0 0.0
        %v3040 = vand.u32 %v505, 4294901760
        %v3041 = vsub.f32 %v505, %v3040
        %v3042 = vand.u32 %v3041, 4294901760
        %3043 = vmatmul.mubr.f32.gmra.mxu0 %v3042
        %v3044 = vpop.f32.mrf.mxu0
        %v3045 = vadd.f32 %v2936, %v3044
        %v3046 = vpop.f32.mrf.mxu0
        %v3047 = vadd.f32 %v2938, %v3046
        %3048 = vdwg.mxu0
        %3049 = vmatprep.subr.mxu0 0.0
        %3050 = vmatpush1.msra.mxu0 0.0
        %3051 = vmatprep.subr.mxu0 0.0
        %3052 = vmatpush1.msra.mxu0 0.0
        %3053 = vmatprep.subr.mxu0 0.0
        %3054 = vmatpush1.msra.mxu0 0.0
        %3055 = vmatprep.subr.mxu0 0.0
        %3056 = vmatpush1.msra.mxu0 0.0
        %3057 = vmatprep.subr.mxu0 0.0
        %3058 = vmatpush1.msra.mxu0 0.0
        %3059 = vmatprep.subr.mxu0 0.0
        %3060 = vmatpush1.msra.mxu0 0.0
        %3061 = vmatprep.subr.mxu0 0.0
        %3062 = vmatpush1.msra.mxu0 0.0
        %3063 = vmatprep.subr.mxu0 0.0
        %3064 = vmatpush1.msra.mxu0 0.0
        %3065 = vmatprep.subr.mxu0 0.0
        %3066 = vmatpush1.msra.mxu0 0.0
        %3067 = vmatprep.subr.mxu0 0.0
        %3068 = vmatpush1.msra.mxu0 0.0
        %3069 = vmatprep.subr.mxu0 0.0
        %3070 = vmatpush1.msra.mxu0 0.0
        %3071 = vmatprep.subr.mxu0 0.0
        %3072 = vmatpush1.msra.mxu0 0.0
        %v3073 = vand.u32 %v473, 4294901760
        %v3074 = vsub.f32 %v473, %v3073
        %v3075 = vand.u32 %v3074, 4294901760
        %3076 = vmatprep.subr.mxu0 %v3075
        %v3077 = vand.u32 %v472, 4294901760
        %v3078 = vsub.f32 %v472, %v3077
        %v3079 = vand.u32 %v3078, 4294901760
        %3080 = vmatpush1.msra.mxu0 %v3079
        %v3081 = vand.u32 %v465, 4294901760
        %v3082 = vsub.f32 %v465, %v3081
        %v3083 = vand.u32 %v3082, 4294901760
        %3084 = vmatprep.subr.mxu0 %v3083
        %v3085 = vand.u32 %v464, 4294901760
        %v3086 = vsub.f32 %v464, %v3085
        %v3087 = vand.u32 %v3086, 4294901760
        %3088 = vmatpush1.msra.mxu0 %v3087
        %v3089 = vand.u32 %v457, 4294901760
        %v3090 = vsub.f32 %v457, %v3089
        %v3091 = vand.u32 %v3090, 4294901760
        %3092 = vmatprep.subr.mxu0 %v3091
        %v3093 = vand.u32 %v456, 4294901760
        %v3094 = vsub.f32 %v456, %v3093
        %v3095 = vand.u32 %v3094, 4294901760
        %3096 = vmatpush1.msra.mxu0 %v3095
        %v3097 = vand.u32 %v449, 4294901760
        %v3098 = vsub.f32 %v449, %v3097
        %v3099 = vand.u32 %v3098, 4294901760
        %3100 = vmatprep.subr.mxu0 %v3099
        %v3101 = vand.u32 %v448, 4294901760
        %v3102 = vsub.f32 %v448, %v3101
        %v3103 = vand.u32 %v3102, 4294901760
        %3104 = vmatpush1.msra.mxu0 %v3103
        %3105 = vmatprep.subr.mxu0 0.0
        %3106 = vmatpush2.msra.mxu0 0.0
        %3107 = vmatprep.subr.mxu0 0.0
        %3108 = vmatpush2.msra.mxu0 0.0
        %3109 = vmatprep.subr.mxu0 0.0
        %3110 = vmatpush2.msra.mxu0 0.0
        %3111 = vmatprep.subr.mxu0 0.0
        %3112 = vmatpush2.msra.mxu0 0.0
        %3113 = vmatprep.subr.mxu0 0.0
        %3114 = vmatpush2.msra.mxu0 0.0
        %3115 = vmatprep.subr.mxu0 0.0
        %3116 = vmatpush2.msra.mxu0 0.0
        %3117 = vmatprep.subr.mxu0 0.0
        %3118 = vmatpush2.msra.mxu0 0.0
        %3119 = vmatprep.subr.mxu0 0.0
        %3120 = vmatpush2.msra.mxu0 0.0
        %3121 = vmatprep.subr.mxu0 0.0
        %3122 = vmatpush2.msra.mxu0 0.0
        %3123 = vmatprep.subr.mxu0 0.0
        %3124 = vmatpush2.msra.mxu0 0.0
        %3125 = vmatprep.subr.mxu0 0.0
        %3126 = vmatpush2.msra.mxu0 0.0
        %3127 = vmatprep.subr.mxu0 0.0
        %3128 = vmatpush2.msra.mxu0 0.0
        %3129 = vmatprep.subr.mxu0 0.0
        %3130 = vmatpush2.msra.mxu0 0.0
        %3131 = vmatprep.subr.mxu0 0.0
        %3132 = vmatpush2.msra.mxu0 0.0
        %3133 = vmatprep.subr.mxu0 0.0
        %3134 = vmatpush2.msra.mxu0 0.0
        %3135 = vmatprep.subr.mxu0 0.0
        %3136 = vmatpush2.msra.mxu0 0.0
        %3137 = vmatprep.mubr.f32.mxu0 0.0
        %v3138 = vand.u32 %v496, 4294901760
        %3139 = vmatmul.mubr.f32.gmra.mxu0 %v3138
        %v3140 = vpop.f32.mrf.mxu0
        %v3141 = vadd.f32 %v3018, %v3140
        %v3142 = vpop.f32.mrf.mxu0
        %v3143 = vadd.f32 %v3020, %v3142
        %3144 = vmatprep.mubr.f32.mxu0 0.0
        %v3145 = vand.u32 %v499, 4294901760
        %3146 = vmatmul.mubr.f32.gmra.mxu0 %v3145
        %v3147 = vpop.f32.mrf.mxu0
        %v3148 = vadd.f32 %v3027, %v3147
        %v3149 = vpop.f32.mrf.mxu0
        %v3150 = vadd.f32 %v3029, %v3149
        %3151 = vmatprep.mubr.f32.mxu0 0.0
        %v3152 = vand.u32 %v502, 4294901760
        %3153 = vmatmul.mubr.f32.gmra.mxu0 %v3152
        %v3154 = vpop.f32.mrf.mxu0
        %v3155 = vadd.f32 %v3036, %v3154
        %v3156 = vpop.f32.mrf.mxu0
        %v3157 = vadd.f32 %v3038, %v3156
        %3158 = vmatprep.mubr.f32.mxu0 0.0
        %v3159 = vand.u32 %v505, 4294901760
        %3160 = vmatmul.mubr.f32.gmra.mxu0 %v3159
        %v3161 = vpop.f32.mrf.mxu0
        %v3162 = vadd.f32 %v3045, %v3161
        %v3163 = vpop.f32.mrf.mxu0
        %v3164 = vadd.f32 %v3047, %v3163
        %3165 = vdwg.mxu0
        %3166 = vmatprep.subr.mxu0 0.0
        %3167 = vmatpush1.msra.mxu0 0.0
        %3168 = vmatprep.subr.mxu0 0.0
        %3169 = vmatpush1.msra.mxu0 0.0
        %3170 = vmatprep.subr.mxu0 0.0
        %3171 = vmatpush1.msra.mxu0 0.0
        %3172 = vmatprep.subr.mxu0 0.0
        %3173 = vmatpush1.msra.mxu0 0.0
        %3174 = vmatprep.subr.mxu0 0.0
        %3175 = vmatpush1.msra.mxu0 0.0
        %3176 = vmatprep.subr.mxu0 0.0
        %3177 = vmatpush1.msra.mxu0 0.0
        %3178 = vmatprep.subr.mxu0 0.0
        %3179 = vmatpush1.msra.mxu0 0.0
        %3180 = vmatprep.subr.mxu0 0.0
        %3181 = vmatpush1.msra.mxu0 0.0
        %3182 = vmatprep.subr.mxu0 0.0
        %3183 = vmatpush1.msra.mxu0 0.0
        %3184 = vmatprep.subr.mxu0 0.0
        %3185 = vmatpush1.msra.mxu0 0.0
        %3186 = vmatprep.subr.mxu0 0.0
        %3187 = vmatpush1.msra.mxu0 0.0
        %3188 = vmatprep.subr.mxu0 0.0
        %3189 = vmatpush1.msra.mxu0 0.0
        %v3190 = vand.u32 %v473, 4294901760
        %3191 = vmatprep.subr.mxu0 %v3190
        %v3192 = vand.u32 %v472, 4294901760
        %3193 = vmatpush1.msra.mxu0 %v3192
        %v3194 = vand.u32 %v465, 4294901760
        %3195 = vmatprep.subr.mxu0 %v3194
        %v3196 = vand.u32 %v464, 4294901760
        %3197 = vmatpush1.msra.mxu0 %v3196
        %v3198 = vand.u32 %v457, 4294901760
        %3199 = vmatprep.subr.mxu0 %v3198
        %v3200 = vand.u32 %v456, 4294901760
        %3201 = vmatpush1.msra.mxu0 %v3200
        %v3202 = vand.u32 %v449, 4294901760
        %3203 = vmatprep.subr.mxu0 %v3202
        %v3204 = vand.u32 %v448, 4294901760
        %3205 = vmatpush1.msra.mxu0 %v3204
        %3206 = vmatprep.subr.mxu0 0.0
        %3207 = vmatpush2.msra.mxu0 0.0
        %3208 = vmatprep.subr.mxu0 0.0
        %3209 = vmatpush2.msra.mxu0 0.0
        %3210 = vmatprep.subr.mxu0 0.0
        %3211 = vmatpush2.msra.mxu0 0.0
        %3212 = vmatprep.subr.mxu0 0.0
        %3213 = vmatpush2.msra.mxu0 0.0
        %3214 = vmatprep.subr.mxu0 0.0
        %3215 = vmatpush2.msra.mxu0 0.0
        %3216 = vmatprep.subr.mxu0 0.0
        %3217 = vmatpush2.msra.mxu0 0.0
        %3218 = vmatprep.subr.mxu0 0.0
        %3219 = vmatpush2.msra.mxu0 0.0
        %3220 = vmatprep.subr.mxu0 0.0
        %3221 = vmatpush2.msra.mxu0 0.0
        %3222 = vmatprep.subr.mxu0 0.0
        %3223 = vmatpush2.msra.mxu0 0.0
        %3224 = vmatprep.subr.mxu0 0.0
        %3225 = vmatpush2.msra.mxu0 0.0
        %3226 = vmatprep.subr.mxu0 0.0
        %3227 = vmatpush2.msra.mxu0 0.0
        %3228 = vmatprep.subr.mxu0 0.0
        %3229 = vmatpush2.msra.mxu0 0.0
        %3230 = vmatprep.subr.mxu0 0.0
        %3231 = vmatpush2.msra.mxu0 0.0
        %3232 = vmatprep.subr.mxu0 0.0
        %3233 = vmatpush2.msra.mxu0 0.0
        %3234 = vmatprep.subr.mxu0 0.0
        %3235 = vmatpush2.msra.mxu0 0.0
        %3236 = vmatprep.subr.mxu0 0.0
        %3237 = vmatpush2.msra.mxu0 0.0
        %3238 = vmatprep.mubr.f32.mxu0 0.0
        %v3239 = vand.u32 %v496, 4294901760
        %3240 = vmatmul.mubr.f32.gmra.mxu0 %v3239
        %v3241 = vpop.f32.mrf.mxu0
        %v3242 = vadd.f32 %v3141, %v3241
        %v3243 = vpop.f32.mrf.mxu0
        %v3244 = vadd.f32 %v3143, %v3243
        %3245 = vmatprep.mubr.f32.mxu0 0.0
        %v3246 = vand.u32 %v499, 4294901760
        %3247 = vmatmul.mubr.f32.gmra.mxu0 %v3246
        %v3248 = vpop.f32.mrf.mxu0
        %v3249 = vadd.f32 %v3148, %v3248
        %v3250 = vpop.f32.mrf.mxu0
        %v3251 = vadd.f32 %v3150, %v3250
        %3252 = vmatprep.mubr.f32.mxu0 0.0
        %v3253 = vand.u32 %v502, 4294901760
        %3254 = vmatmul.mubr.f32.gmra.mxu0 %v3253
        %v3255 = vpop.f32.mrf.mxu0
        %v3256 = vadd.f32 %v3155, %v3255
        %v3257 = vpop.f32.mrf.mxu0
        %v3258 = vadd.f32 %v3157, %v3257
        %3259 = vmatprep.mubr.f32.mxu0 0.0
        %v3260 = vand.u32 %v505, 4294901760
        %3261 = vmatmul.mubr.f32.gmra.mxu0 %v3260
        %v3262 = vpop.f32.mrf.mxu0
        %v3263 = vadd.f32 %v3162, %v3262
        %v3264 = vpop.f32.mrf.mxu0
        %v3265 = vadd.f32 %v3164, %v3264
        %3266 = vdwg.mxu0
        %v3267 = vtanh.pop %v1172
        %v3268 = vtanh.pop %v1174
        %v3269 = vtanh.pop %v1862
        %v3270 = vtanh.pop %v1864
        %v3271 = vtanh.pop %v2552
        %v3272 = vtanh.pop %v2554
        %v3273 = vtanh.pop %v3242
        %v3274 = vtanh.pop %v3244
        %v3275 = vtanh.pop %v1179
        %v3276 = vtanh.pop %v1181
        %v3277 = vtanh.pop %v1869
        %v3278 = vtanh.pop %v1871
        %v3279 = vtanh.pop %v2559
        %v3280 = vtanh.pop %v2561
        %v3281 = vtanh.pop %v3249
        %v3282 = vtanh.pop %v3251
        %v3283 = vtanh.pop %v1186
        %v3284 = vtanh.pop %v1188
        %v3285 = vtanh.pop %v1876
        %v3286 = vtanh.pop %v1878
        %v3287 = vtanh.pop %v2566
        %v3288 = vtanh.pop %v2568
        %v3289 = vtanh.pop %v3256
        %v3290 = vtanh.pop %v3258
        %v3291 = vtanh.pop %v1193
        %v3292 = vtanh.pop %v1195
        %v3293 = vtanh.pop %v1883
        %v3294 = vtanh.pop %v1885
        %v3295 = vtanh.pop %v2573
        %v3296 = vtanh.pop %v2575
        %v3297 = vtanh.pop %v3263
        %v3298 = vtanh.pop %v3265
        %3300 = vset.pattern.permute.xlu0 0
        %3301 = vperm.xlu0 %3300, %v292
        %v3302 = vpop.permute.xlu0 %3301
        %3305 = vset.pattern.permute.xlu0 0
        %3306 = vperm.xlu0 %3305, %v293
        %v3307 = vpop.permute.xlu0 %3306
        %3310 = vset.pattern.permute.xlu0 0
        %3311 = vperm.xlu0 %3310, %v294
        %v3312 = vpop.permute.xlu0 %3311
        %3315 = vset.pattern.permute.xlu0 0
        %3316 = vperm.xlu0 %3315, %v295
        %v3317 = vpop.permute.xlu0 %3316
        %v3319 = vmul.f32 %v3302, %v3267
        %v3320 = vmul.f32 %v3302, %v3268
        %v3321 = vmul.f32 %v3302, %v3269
        %v3322 = vmul.f32 %v3302, %v3270
        %v3323 = vmul.f32 %v3302, %v3271
        %v3324 = vmul.f32 %v3302, %v3272
        %v3325 = vmul.f32 %v3302, %v3273
        %v3326 = vmul.f32 %v3302, %v3274
        %v3327 = vmul.f32 %v3307, %v3275
        %v3328 = vmul.f32 %v3307, %v3276
        %v3329 = vmul.f32 %v3307, %v3277
        %v3330 = vmul.f32 %v3307, %v3278
        %v3331 = vmul.f32 %v3307, %v3279
        %v3332 = vmul.f32 %v3307, %v3280
        %v3333 = vmul.f32 %v3307, %v3281
        %v3334 = vmul.f32 %v3307, %v3282
        %v3335 = vmul.f32 %v3312, %v3283
        %v3336 = vmul.f32 %v3312, %v3284
        %v3337 = vmul.f32 %v3312, %v3285
        %v3338 = vmul.f32 %v3312, %v3286
        %v3339 = vmul.f32 %v3312, %v3287
        %v3340 = vmul.f32 %v3312, %v3288
        %v3341 = vmul.f32 %v3312, %v3289
        %v3342 = vmul.f32 %v3312, %v3290
        %v3343 = vmul.f32 %v3317, %v3291
        %v3344 = vmul.f32 %v3317, %v3292
        %v3345 = vmul.f32 %v3317, %v3293
        %v3346 = vmul.f32 %v3317, %v3294
        %v3347 = vmul.f32 %v3317, %v3295
        %v3348 = vmul.f32 %v3317, %v3296
        %v3349 = vmul.f32 %v3317, %v3297
        %v3350 = vmul.f32 %v3317, %v3298
        %v3351 = vadd.f32 %v3319, %v3327
        %v3352 = vadd.f32 %v3351, %v3335
        %v3353 = vadd.f32 %v3352, %v3343
        %v3354 = vrot.slane %v3353, 4
        %v3355 = vadd.f32 %v3353, %v3354
        %v3356 = vrot.slane %v3355, 2
        %v3357 = vadd.f32 %v3355, %v3356
        %v3358 = vrot.slane %v3357, 1
        %v3359 = vadd.f32 %v3357, %v3358
        %v3360 = vadd.f32 %v3320, %v3328
        %v3361 = vadd.f32 %v3360, %v3336
        %v3362 = vadd.f32 %v3361, %v3344
        %v3363 = vrot.slane %v3362, 4
        %v3364 = vadd.f32 %v3362, %v3363
        %v3365 = vrot.slane %v3364, 2
        %v3366 = vadd.f32 %v3364, %v3365
        %v3367 = vrot.slane %v3366, 1
        %v3368 = vadd.f32 %v3366, %v3367
        %v3369 = vadd.f32 %v3321, %v3329
        %v3370 = vadd.f32 %v3369, %v3337
        %v3371 = vadd.f32 %v3370, %v3345
        %v3372 = vrot.slane %v3371, 4
        %v3373 = vadd.f32 %v3371, %v3372
        %v3374 = vrot.slane %v3373, 2
        %v3375 = vadd.f32 %v3373, %v3374
        %v3376 = vrot.slane %v3375, 1
        %v3377 = vadd.f32 %v3375, %v3376
        %v3378 = vadd.f32 %v3322, %v3330
        %v3379 = vadd.f32 %v3378, %v3338
        %v3380 = vadd.f32 %v3379, %v3346
        %v3381 = vrot.slane %v3380, 4
        %v3382 = vadd.f32 %v3380, %v3381
        %v3383 = vrot.slane %v3382, 2
        %v3384 = vadd.f32 %v3382, %v3383
        %v3385 = vrot.slane %v3384, 1
        %v3386 = vadd.f32 %v3384, %v3385
        %v3387 = vadd.f32 %v3323, %v3331
        %v3388 = vadd.f32 %v3387, %v3339
        %v3389 = vadd.f32 %v3388, %v3347
        %v3390 = vrot.slane %v3389, 4
        %v3391 = vadd.f32 %v3389, %v3390
        %v3392 = vrot.slane %v3391, 2
        %v3393 = vadd.f32 %v3391, %v3392
        %v3394 = vrot.slane %v3393, 1
        %v3395 = vadd.f32 %v3393, %v3394
        %v3396 = vadd.f32 %v3324, %v3332
        %v3397 = vadd.f32 %v3396, %v3340
        %v3398 = vadd.f32 %v3397, %v3348
        %v3399 = vrot.slane %v3398, 4
        %v3400 = vadd.f32 %v3398, %v3399
        %v3401 = vrot.slane %v3400, 2
        %v3402 = vadd.f32 %v3400, %v3401
        %v3403 = vrot.slane %v3402, 1
        %v3404 = vadd.f32 %v3402, %v3403
        %v3405 = vadd.f32 %v3325, %v3333
        %v3406 = vadd.f32 %v3405, %v3341
        %v3407 = vadd.f32 %v3406, %v3349
        %v3408 = vrot.slane %v3407, 4
        %v3409 = vadd.f32 %v3407, %v3408
        %v3410 = vrot.slane %v3409, 2
        %v3411 = vadd.f32 %v3409, %v3410
        %v3412 = vrot.slane %v3411, 1
        %v3413 = vadd.f32 %v3411, %v3412
        %v3414 = vadd.f32 %v3326, %v3334
        %v3415 = vadd.f32 %v3414, %v3342
        %v3416 = vadd.f32 %v3415, %v3350
        %v3417 = vrot.slane %v3416, 4
        %v3418 = vadd.f32 %v3416, %v3417
        %v3419 = vrot.slane %v3418, 2
        %v3420 = vadd.f32 %v3418, %v3419
        %v3421 = vrot.slane %v3420, 1
        %v3422 = vadd.f32 %v3420, %v3421
        %v3423 = vstv %s296
        %v3424 = vadd.f32 %v3359, %v3423
        %v3425 = vadd.f32 %v3368, %v3423
        %v3426 = vadd.f32 %v3377, %v3423
        %v3427 = vadd.f32 %v3386, %v3423
        %v3428 = vadd.f32 %v3395, %v3423
        %v3429 = vadd.f32 %v3404, %v3423
        %v3430 = vadd.f32 %v3413, %v3423
        %v3431 = vadd.f32 %v3422, %v3423
        %v3440 = vcombine.low %v3424, %v3425
        %v3441 = vcombine.low %v3426, %v3427
        %v3442 = vcombine.low %v3428, %v3429
        %v3443 = vcombine.low %v3430, %v3431
        %v3445 = vunpack.c.l.s4 1966171168
        %v3446 = vunpack.c.0.s8 %v3445
        %v3447 = vlaneseq
        %v3448 = vshrl.u32 %v3447, 7
        %v3449 = vsub.s32 %v3446, %v3448
        %v3450 = vrot.slane %v3440, %v3449
        %v3452 = vunpack.c.l.s4 1966171168
        %v3453 = vunpack.c.0.s8 %v3452
        %v3454 = vlaneseq
        %v3455 = vshrl.u32 %v3454, 7
        %v3456 = vsub.s32 %v3453, %v3455
        %v3457 = vrot.slane %v3441, %v3456
        %v3459 = vunpack.c.l.s4 1966171168
        %v3460 = vunpack.c.0.s8 %v3459
        %v3461 = vlaneseq
        %v3462 = vshrl.u32 %v3461, 7
        %v3463 = vsub.s32 %v3460, %v3462
        %v3464 = vrot.slane %v3442, %v3463
        %v3466 = vunpack.c.l.s4 1966171168
        %v3467 = vunpack.c.0.s8 %v3466
        %v3468 = vlaneseq
        %v3469 = vshrl.u32 %v3468, 7
        %v3470 = vsub.s32 %v3467, %v3469
        %v3471 = vrot.slane %v3443, %v3470
        %v3472 = vcombine.low %v3450, %v3457
        %v3473 = vcombine.low %v3464, %v3471
        %v3475 = vunpack.c.l.s4 1966171168
        %v3476 = vunpack.c.0.s8 %v3475
        %v3477 = vlaneseq
        %v3478 = vshrl.u32 %v3477, 7
        %v3479 = vsub.s32 %v3476, %v3478
        %v3480 = vrot.slane %v3472, %v3479
        %v3482 = vunpack.c.l.s4 1966171168
        %v3483 = vunpack.c.0.s8 %v3482
        %v3484 = vlaneseq
        %v3485 = vshrl.u32 %v3484, 7
        %v3486 = vsub.s32 %v3483, %v3485
        %v3487 = vrot.slane %v3473, %v3486
        %v3488 = vcombine.low %v3480, %v3487
        %3490 = vst [vmem:[%s270] sm:$0xff] %v3488
        %s3491 = sand.u32 %s182, 1
        %s3492 = scalar_lea.sflag [#allocation4], %s3491
        %s3493 = sand.u32 %s182, 1
        %s3494 = smul.addr %s3493, 8
        %s3495 = scalar_lea.vmem [#allocation3], %s3494
        // Predicated region
        $region49: #{tpu_custom_call.1} parent=47 // pred_check
          %p3496 = pneg %p192
        $region50: #{tpu_custom_call.1} parent=47 // pred_check_branch
          %3498 = sbr.rel (%p3496) target = $region52
        $region51: #{tpu_custom_call.1} parent=47 // pred_region
          %s3500 = ssub.s32 128, 128
          %3501 = vsyncadd %s3492, %s3500
          %s3502 = smul.addr %s22, 8
          %s3503 = smul.addr %s3502, 16
          %s3504 = scalar_lea.hbm %s7, %s3503
          %s3506 = sshll.u32 %s3495, 4
          %s3507 = int_to_ptr.vmem [resolvable:$true] %s3506
          %3509 = dma.vmem_to_hbm [thread:$0]  %s3507, 128, %s3504, %s3492
        $region52: #{tpu_custom_call.1} parent=47 // pred_fallthru
          _
      $region48: #{tpu_custom_call.1} parent=5 // pred_fallthru
        _
      %p3510 = scmp.le.s32.totalorder 2, %s17
      // Predicated region
      $region53: #{tpu_custom_call.1} parent=5 // pred_check
        %p3511 = pneg %p3510
      $region54: #{tpu_custom_call.1} parent=5 // pred_check_branch
        %3513 = sbr.rel (%p3511) target = $region56
      $region55: #{tpu_custom_call.1} parent=5 // pred_region
        %s3514 = ssub.s32 %s17, 2
        // Predicated region
        $region57: #{tpu_custom_call.1} parent=55 // pred_check
          %p3515 = pneg %p198
        $region58: #{tpu_custom_call.1} parent=55 // pred_check_branch
          %3517 = sbr.rel (%p3515) target = $region60
        $region59: #{tpu_custom_call.1} parent=55 // pred_region
          %s3518 = sand.u32 %s183, 1
          %s3519 = scalar_lea.sflag [#allocation4], %s3518
          %s3520 = sand.u32 %s183, 1
          %s3521 = smul.addr %s3520, 8
          %s3522 = scalar_lea.vmem [#allocation3], %s3521
          %3523 = dma.done %s3519, 128
        $region60: #{tpu_custom_call.1} parent=55 // pred_fallthru
          _
      $region56: #{tpu_custom_call.1} parent=5 // pred_fallthru
        _
    $region6: #{tpu_custom_call.1} parent=1 // loop_footer
      %s21 = sadd.s32 1, %s17
    $region7: #{tpu_custom_call.1} parent=1 // loop_footer_branch
      %16 = sbr.rel target = $region3
    $region8: #{tpu_custom_call.1} parent=1 // loop_exit
      _
    %3524 = vsyncpa [#allocation4], 1
    %s3525 = scalar_lea.sflag [#allocation4], 1
    %3526 = vsyncpa %s3525, 1

</llo_original>
